<compile_context>
chip_gen: v5e
topology: v5e:2x2
jax: 0.10.0
libtpu: 0.0.40
codegen_flags: <defaults>
</compile_context>

<pallas_src>
import functools

import jax
import jax.numpy as jnp
from jax import lax
from jax.experimental import pallas as pl
from jax.experimental.pallas import tpu as pltpu


def _sigmoid(x):
    # tanh-based logistic: numerically stable, runs on the EUP.
    return 0.5 * (jnp.tanh(0.5 * x) + 1.0)


def _pick_slab(bc):
    for s in (32, 16, 8):
        if bc % s == 0:
            return s
    return bc


def caa_kernel(x_ref, pool_ref, w1_ref, w2_ref, dwt_ref, masks_ref, bias_ref,
               o_ref, ybuf, zbuf, *, BC, H, W, KS, SLAB):
    """One grid step = B_blk images in a (BC, HW) = (B_blk*C, H*W) lane-dense tile.

    x_ref:     (BC, HW)   bf16 input images (channel-major, HW on lanes)
    pool_ref:  (HW, HW)   bf16 exact 0/1 avg-pool window matrix (1/49 folded into conv1)
    w1_ref:    (BC, BC)   bf16 block-diag conv1 weights (BN scale & 1/49 folded in)
    w2_ref:    (BC, BC)   bf16 block-diag conv2 weights (BN scale folded in)
    dwt_ref:   (BC, 2*KS) f32 depthwise taps: cols [0,KS)=h_conv, [KS,2KS)=v_conv
    masks_ref: (2*KS, HW) f32 per-tap boundary masks (1 inside image, 0 at zero padding)
    bias_ref:  (BC, 4)    f32 per-channel shifts: [bn1, h_bias, v_bias, bn2]
    o_ref:     (BC, HW)   f32 attention factor
    ybuf,zbuf: (BC, HW)   f32 VMEM scratch for the depthwise slab loop
    """
    HW = H * W
    f32 = jnp.float32
    bf16 = jnp.bfloat16

    # (1) AvgPool2d(7,1,3) as ONE bf16 MXU matmul against the exact 0/1 window matrix.
    p = jnp.dot(x_ref[...], pool_ref[...], preferred_element_type=f32)

    # (2) conv1: block-diagonal 1x1 weights (BN scale + 1/49 folded) + shift + SiLU.
    y = jnp.dot(w1_ref[...], p.astype(bf16), preferred_element_type=f32)
    y = y + bias_ref[:, 0:1]
    ybuf[...] = y * _sigmoid(y)

    # (3)+(4) depthwise (1,KS) then (KS,1) convs as roll+mask taps, in SLAB-row slabs
    # through VMEM scratch so vreg live ranges stay bounded when images are batched.
    n_slabs = BC // SLAB

    def depthwise(src_ref, dst_ref, tap0, lane_step, bias_col):
        def slab(s, carry):
            r0 = pl.multiple_of(s * SLAB, SLAB)
            rows = pl.ds(r0, SLAB)
            v = src_ref[rows, :]
            taps = dwt_ref[rows, :]
            # center tap (offset 0): mask is all-ones -> skip the mask multiply.
            acc = v * taps[:, tap0 + KS // 2: tap0 + KS // 2 + 1]
            for k in range(KS):
                d = k - KS // 2                    # spatial offset of this tap
                if d == 0:
                    continue
                t = tap0 + k
                rolled = pltpu.roll(v, shift=(-d * lane_step) % HW, axis=1)
                acc = acc + rolled * (masks_ref[t:t + 1, :] * taps[:, t:t + 1])
            dst_ref[rows, :] = acc + bias_ref[rows, bias_col:bias_col + 1]
            return carry
        lax.fori_loop(0, n_slabs, slab, 0, unroll=True)

    depthwise(ybuf, zbuf, 0, 1, 1)       # h_conv: along W (lane step 1) + bias
    depthwise(zbuf, ybuf, KS, W, 2)      # v_conv: along H (lane step W) + bias

    # (5) conv2: block-diagonal 1x1 (BN scale folded) + shift + SiLU; (6) sigmoid.
    v2 = jnp.dot(w2_ref[...], ybuf[...].astype(bf16), preferred_element_type=f32)
    v2 = v2 + bias_ref[:, 3:4]
    v2 = v2 * _sigmoid(v2)
    o_ref[...] = _sigmoid(v2).astype(o_ref.dtype)


def caa_forward(x_nchw, params, *, pool_k=7, dw_k=11, bn_eps=1e-3):
    """CAA forward. NCHW float32 in -> NCHW attention factor out."""
    N, C, H, W = (int(d) for d in x_nchw.shape)
    HW = H * W
    f32, bf16 = jnp.float32, jnp.bfloat16

    # --- batching: fill the MXU M-dim (~128 rows) with B_blk images per grid step,
    #     but keep >= 2 grid steps when possible (v7x has 2 TensorCores). ------------
    target = max(1, 128 // C)
    B_blk = 1
    for b in range(min(target, N), 0, -1):
        if N % b == 0 and (N // b >= 2 or N == 1):
            B_blk = b
            break
    G = N // B_blk
    BC = B_blk * C

    # --- fold BN(eval) scale into the 1x1 weights; fold the 1/49 pool divisor into
    #     conv1 so the pool matrix stays an exact 0/1 matrix (exact in bf16). --------
    s1 = params['bn1_g'] / jnp.sqrt(params['bn1_v'] + bn_eps)
    s2 = params['bn2_g'] / jnp.sqrt(params['bn2_v'] + bn_eps)
    w1f = params['conv1_w'][:, :, 0, 0] * s1[:, None] / float(pool_k * pool_k)
    w2f = params['conv2_w'][:, :, 0, 0] * s2[:, None]
    eye_b = jnp.eye(B_blk, dtype=f32)
    w1_bd = jnp.kron(eye_b, w1f.astype(f32)).astype(bf16)            # (BC, BC)
    w2_bd = jnp.kron(eye_b, w2f.astype(f32)).astype(bf16)            # (BC, BC)
    shift1 = params['bn1_b'] - params['bn1_m'] * s1
    shift2 = params['bn2_b'] - params['bn2_m'] * s2
    bias = jnp.stack([shift1, params['h_b'], params['v_b'], shift2], axis=1)
    bias = jnp.tile(bias.astype(f32), (B_blk, 1))                    # (BC, 4)

    # --- avg-pool window matrix: exact 0/1 (divisor folded out) -> bf16 -------------
    r = pool_k // 2
    hh, ww = jnp.arange(H), jnp.arange(W)
    ah = jnp.abs(hh[:, None] - hh[None, :]) <= r                     # (H_in, H_out)
    aw = jnp.abs(ww[:, None] - ww[None, :]) <= r                     # (W_in, W_out)
    pool_mat = (ah[:, None, :, None] & aw[None, :, None, :]).reshape(HW, HW).astype(bf16)

    # --- depthwise taps (tiled per image) + per-tap boundary masks -------------------
    dwt = jnp.concatenate([params['h_w'][:, 0, 0, :], params['v_w'][:, 0, :, 0]], axis=1)
    dwt = jnp.tile(dwt.astype(f32), (B_blk, 1))                      # (BC, 2*dw_k)
    offs = jnp.arange(dw_k) - dw_k // 2
    w_coord = jnp.arange(HW) % W
    h_coord = jnp.arange(HW) // W
    mask_h = (w_coord[None, :] + offs[:, None] >= 0) & (w_coord[None, :] + offs[:, None] < W)
    mask_v = (h_coord[None, :] + offs[:, None] >= 0) & (h_coord[None, :] + offs[:, None] < H)
    masks = jnp.concatenate([mask_h, mask_v], axis=0).astype(f32)    # (2*dw_k, HW)

    # NCHW -> lane-dense (G, B_blk*C, HW): pure reshape (no transpose), bf16 MXU operand.
    x_flat = x_nchw.reshape(G, BC, HW).astype(bf16)

    SLAB = _pick_slab(BC)
    kernel = functools.partial(caa_kernel, BC=BC, H=H, W=W, KS=dw_k, SLAB=SLAB)
    out_flat = pl.pallas_call(
        kernel,
        out_shape=jax.ShapeDtypeStruct((G, BC, HW), f32),
        grid=(G,),
        in_specs=[
            pl.BlockSpec((None, BC, HW), lambda g: (g, 0, 0)),
            pl.BlockSpec((HW, HW), lambda g: (0, 0)),
            pl.BlockSpec((BC, BC), lambda g: (0, 0)),
            pl.BlockSpec((BC, BC), lambda g: (0, 0)),
            pl.BlockSpec((BC, 2 * dw_k), lambda g: (0, 0)),
            pl.BlockSpec((2 * dw_k, HW), lambda g: (0, 0)),
            pl.BlockSpec((BC, 4), lambda g: (0, 0)),
        ],
        out_specs=pl.BlockSpec((None, BC, HW), lambda g: (g, 0, 0)),
        scratch_shapes=[pltpu.VMEM((BC, HW), f32),
                        pltpu.VMEM((BC, HW), f32)],
        compiler_params=pltpu.CompilerParams(dimension_semantics=("parallel",)),
    )(x_flat, pool_mat, w1_bd, w2_bd, dwt, masks, bias)

    return out_flat.reshape(N, C, H, W)


def _reference_forward(x, params, *, pool_k=7, bn_eps=1e-3):
    """Plain-JAX reference matching the PyTorch CAA forward (BatchNorm in eval mode)."""
    C = x.shape[1]
    hp = jax.lax.Precision.HIGHEST

    def conv(y, w, pad, groups=1):
        return jax.lax.conv_general_dilated(
            y, w, window_strides=(1, 1), padding=pad,
            dimension_numbers=('NCHW', 'OIHW', 'NCHW'),
            feature_group_count=groups, precision=hp)

    def bn(y, g, b, m, v):
        return ((y - m[None, :, None, None]) / jnp.sqrt(v + bn_eps)[None, :, None, None]
                * g[None, :, None, None] + b[None, :, None, None])

    r = pool_k // 2
    pooled = jax.lax.reduce_window(
        x, 0.0, jax.lax.add, (1, 1, pool_k, pool_k), (1, 1, 1, 1),
        ((0, 0), (0, 0), (r, r), (r, r))) / float(pool_k * pool_k)
    y = jax.nn.silu(bn(conv(pooled, params['conv1_w'], [(0, 0), (0, 0)]),
                       params['bn1_g'], params['bn1_b'], params['bn1_m'], params['bn1_v']))
    kh = params['h_w'].shape[-1]
    kv = params['v_w'].shape[-2]
    y = conv(y, params['h_w'], [(0, 0), (kh // 2, kh // 2)], groups=C) \
        + params['h_b'][None, :, None, None]
    y = conv(y, params['v_w'], [(kv // 2, kv // 2), (0, 0)], groups=C) \
        + params['v_b'][None, :, None, None]
    y = jax.nn.silu(bn(conv(y, params['conv2_w'], [(0, 0), (0, 0)]),
                       params['bn2_g'], params['bn2_b'], params['bn2_m'], params['bn2_v']))
    return jax.nn.sigmoid(y)


if __name__ == "__main__":
    N, C, H, W = 4, 32, 16, 16
    KS = 11  # CAA defaults: h_kernel_size = v_kernel_size = 11

    key = jax.random.PRNGKey(0)
    ks = jax.random.split(key, 15)
    x = jax.random.normal(ks[0], (N, C, H, W), jnp.float32)
    params = {
        'conv1_w': 0.25 * jax.random.normal(ks[1], (C, C, 1, 1), jnp.float32),
        'bn1_g': 1.0 + 0.1 * jax.random.normal(ks[2], (C,), jnp.float32),
        'bn1_b': 0.1 * jax.random.normal(ks[3], (C,), jnp.float32),
        'bn1_m': 0.05 * jax.random.normal(ks[4], (C,), jnp.float32),
        'bn1_v': 1.0 + 0.1 * jax.random.uniform(ks[5], (C,), jnp.float32),
        'h_w': 0.3 * jax.random.normal(ks[6], (C, 1, 1, KS), jnp.float32),
        'h_b': 0.1 * jax.random.normal(ks[7], (C,), jnp.float32),
        'v_w': 0.3 * jax.random.normal(ks[8], (C, 1, KS, 1), jnp.float32),
        'v_b': 0.1 * jax.random.normal(ks[9], (C,), jnp.float32),
        'conv2_w': 0.25 * jax.random.normal(ks[10], (C, C, 1, 1), jnp.float32),
        'bn2_g': 1.0 + 0.1 * jax.random.normal(ks[11], (C,), jnp.float32),
        'bn2_b': 0.1 * jax.random.normal(ks[12], (C,), jnp.float32),
        'bn2_m': 0.05 * jax.random.normal(ks[13], (C,), jnp.float32),
        'bn2_v': 1.0 + 0.1 * jax.random.uniform(ks[14], (C,), jnp.float32),
    }

    out = caa_forward(x, params, dw_k=KS)
    out = jax.block_until_ready(out)

    ref = _reference_forward(x, params)
    assert out.shape == (N, C, H, W), out.shape
    max_err = float(jnp.max(jnp.abs(out - ref)))
    # bf16 MXU operands (f32 accumulation) on a post-sigmoid [0,1] output: 3e-3 is ample.
    assert jnp.allclose(out, ref, atol=3e-3, rtol=3e-3), max_err

    print("KERNEL_OK")
</pallas_src>

<mosaic_0001>
module attributes {stable_mosaic.version = 11 : i64} {
  func.func @caa_kernel(%arg0: i32, %arg1: memref<1x64x256xbf16, #tpu.memory_space<vmem>>, %arg2: memref<256x256xbf16, #tpu.memory_space<vmem>>, %arg3: memref<64x64xbf16, #tpu.memory_space<vmem>>, %arg4: memref<64x64xbf16, #tpu.memory_space<vmem>>, %arg5: memref<64x22xf32, #tpu.memory_space<vmem>>, %arg6: memref<22x256xf32, #tpu.memory_space<vmem>>, %arg7: memref<64x4xf32, #tpu.memory_space<vmem>>, %arg8: memref<1x64x256xf32, #tpu.memory_space<vmem>>, %arg9: memref<64x256xf32, #tpu.memory_space<vmem>>, %arg10: memref<64x256xf32, #tpu.memory_space<vmem>>) attributes {dimension_semantics = [#tpu.dimension_semantics<parallel>], iteration_bounds = array<i64: 2>, scalar_prefetch = 0 : i64, scratch_operands = 2 : i64, tpu.core_type = #tpu.core_type<tc>, window_params = [{transform_indices = @transform_0, window_bounds = array<i64: 1, 64, 256>}, {pipeline_mode = #tpu.pipeline_mode<synchronous>, transform_indices = @transform_1, window_bounds = array<i64: 256, 256>}, {pipeline_mode = #tpu.pipeline_mode<synchronous>, transform_indices = @transform_2, window_bounds = array<i64: 64, 64>}, {pipeline_mode = #tpu.pipeline_mode<synchronous>, transform_indices = @transform_3, window_bounds = array<i64: 64, 64>}, {pipeline_mode = #tpu.pipeline_mode<synchronous>, transform_indices = @transform_4, window_bounds = array<i64: 64, 22>}, {pipeline_mode = #tpu.pipeline_mode<synchronous>, transform_indices = @transform_5, window_bounds = array<i64: 22, 256>}, {pipeline_mode = #tpu.pipeline_mode<synchronous>, transform_indices = @transform_6, window_bounds = array<i64: 64, 4>}, {transform_indices = @transform_7, window_bounds = array<i64: 1, 64, 256>}]} {
    %c0 = arith.constant 0 : index
    %c0_0 = arith.constant 0 : index
    %c0_1 = arith.constant 0 : index
    %0 = vector.load %arg1[%c0, %c0_0, %c0_1] : memref<1x64x256xbf16, #tpu.memory_space<vmem>>, vector<1x64x256xbf16>
    %1 = vector.shape_cast %0 : vector<1x64x256xbf16> to vector<64x256xbf16>
    %c0_2 = arith.constant 0 : index
    %c0_3 = arith.constant 0 : index
    %2 = vector.load %arg2[%c0_2, %c0_3] : memref<256x256xbf16, #tpu.memory_space<vmem>>, vector<256x256xbf16>
    %cst = arith.constant dense<0.000000e+00> : vector<64x256xf32>
    %3 = tpu.matmul %1, %2, %cst {dimension_numbers = #tpu.dot_dimension_numbers<[1], [0], [0], [1], [0, 0, 1, 1], [], []>} : vector<64x256xbf16>, vector<256x256xbf16>, vector<64x256xf32> -> vector<64x256xf32>
    %c0_4 = arith.constant 0 : index
    %c0_5 = arith.constant 0 : index
    %4 = vector.load %arg3[%c0_4, %c0_5] : memref<64x64xbf16, #tpu.memory_space<vmem>>, vector<64x64xbf16>
    %5 = arith.truncf %3 : vector<64x256xf32> to vector<64x256xbf16>
    %cst_6 = arith.constant dense<0.000000e+00> : vector<64x256xf32>
    %6 = tpu.matmul %4, %5, %cst_6 {dimension_numbers = #tpu.dot_dimension_numbers<[1], [0], [0], [1], [0, 0, 1, 1], [], []>} : vector<64x64xbf16>, vector<64x256xbf16>, vector<64x256xf32> -> vector<64x256xf32>
    %c0_7 = arith.constant 0 : index
    %c0_8 = arith.constant 0 : index
    %7 = vector.load %arg7[%c0_7, %c0_8] : memref<64x4xf32, #tpu.memory_space<vmem>>, vector<64x1xf32>
    %8 = vector.broadcast %7 : vector<64x1xf32> to vector<64x256xf32>
    %9 = arith.addf %6, %8 : vector<64x256xf32>
    %cst_9 = arith.constant 5.000000e-01 : f32
    %10 = vector.broadcast %cst_9 : f32 to vector<64x256xf32>
    %11 = arith.mulf %10, %9 : vector<64x256xf32>
    %12 = math.tanh %11 : vector<64x256xf32>
    %cst_10 = arith.constant 1.000000e+00 : f32
    %13 = vector.broadcast %cst_10 : f32 to vector<64x256xf32>
    %14 = arith.addf %12, %13 : vector<64x256xf32>
    %cst_11 = arith.constant 5.000000e-01 : f32
    %15 = vector.broadcast %cst_11 : f32 to vector<64x256xf32>
    %16 = arith.mulf %15, %14 : vector<64x256xf32>
    %17 = arith.mulf %9, %16 : vector<64x256xf32>
    %c0_12 = arith.constant 0 : index
    %c0_13 = arith.constant 0 : index
    %18 = vector.load %arg9[%c0_12, %c0_13] : memref<64x256xf32, #tpu.memory_space<vmem>>, vector<64x256xf32>
    tpu.vector_store %arg9[%c0_12, %c0_13], %17 {strides = array<i32>} : memref<64x256xf32, #tpu.memory_space<vmem>>, vector<64x256xf32>,
    %c0_i32 = arith.constant 0 : i32
    %c32_i32 = arith.constant 32 : i32
    %19 = arith.muli %c0_i32, %c32_i32 : i32
    %20 = tpu.assume_multiple %19, 32 : i32
    %21 = arith.index_cast %20 : i32 to index
    %c0_14 = arith.constant 0 : index
    %22 = vector.load %arg9[%21, %c0_14] : memref<64x256xf32, #tpu.memory_space<vmem>>, vector<32x256xf32>
    %23 = arith.index_cast %20 : i32 to index
    %c0_15 = arith.constant 0 : index
    %24 = vector.load %arg5[%23, %c0_15] : memref<64x22xf32, #tpu.memory_space<vmem>>, vector<32x22xf32>
    %25 = vector.extract_strided_slice %24 {offsets = [0, 5], sizes = [32, 1], strides = [1, 1]} : vector<32x22xf32> to vector<32x1xf32>
    %26 = vector.broadcast %25 : vector<32x1xf32> to vector<32x256xf32>
    %27 = arith.mulf %22, %26 : vector<32x256xf32>
    %c5_i32 = arith.constant 5 : i32
    %28 = tpu.dynamic_rotate %22 by %c5_i32 dim 1 : vector<32x256xf32>, i32 -> vector<32x256xf32>
    %c0_16 = arith.constant 0 : index
    %c0_17 = arith.constant 0 : index
    %29 = vector.load %arg6[%c0_16, %c0_17] : memref<22x256xf32, #tpu.memory_space<vmem>>, vector<1x256xf32>
    %30 = vector.extract_strided_slice %24 {offsets = [0, 0], sizes = [32, 1], strides = [1, 1]} : vector<32x22xf32> to vector<32x1xf32>
    %31 = vector.broadcast %29 : vector<1x256xf32> to vector<32x256xf32>
    %32 = vector.broadcast %30 : vector<32x1xf32> to vector<32x256xf32>
    %33 = arith.mulf %31, %32 : vector<32x256xf32>
    %34 = arith.mulf %28, %33 : vector<32x256xf32>
    %35 = arith.addf %27, %34 : vector<32x256xf32>
    %c4_i32 = arith.constant 4 : i32
    %36 = tpu.dynamic_rotate %22 by %c4_i32 dim 1 : vector<32x256xf32>, i32 -> vector<32x256xf32>
    %c1 = arith.constant 1 : index
    %c0_18 = arith.constant 0 : index
    %37 = vector.load %arg6[%c1, %c0_18] : memref<22x256xf32, #tpu.memory_space<vmem>>, vector<1x256xf32>
    %38 = vector.extract_strided_slice %24 {offsets = [0, 1], sizes = [32, 1], strides = [1, 1]} : vector<32x22xf32> to vector<32x1xf32>
    %39 = vector.broadcast %37 : vector<1x256xf32> to vector<32x256xf32>
    %40 = vector.broadcast %38 : vector<32x1xf32> to vector<32x256xf32>
    %41 = arith.mulf %39, %40 : vector<32x256xf32>
    %42 = arith.mulf %36, %41 : vector<32x256xf32>
    %43 = arith.addf %35, %42 : vector<32x256xf32>
    %c3_i32 = arith.constant 3 : i32
    %44 = tpu.dynamic_rotate %22 by %c3_i32 dim 1 : vector<32x256xf32>, i32 -> vector<32x256xf32>
    %c2 = arith.constant 2 : index
    %c0_19 = arith.constant 0 : index
    %45 = vector.load %arg6[%c2, %c0_19] : memref<22x256xf32, #tpu.memory_space<vmem>>, vector<1x256xf32>
    %46 = vector.extract_strided_slice %24 {offsets = [0, 2], sizes = [32, 1], strides = [1, 1]} : vector<32x22xf32> to vector<32x1xf32>
    %47 = vector.broadcast %45 : vector<1x256xf32> to vector<32x256xf32>
    %48 = vector.broadcast %46 : vector<32x1xf32> to vector<32x256xf32>
    %49 = arith.mulf %47, %48 : vector<32x256xf32>
    %50 = arith.mulf %44, %49 : vector<32x256xf32>
    %51 = arith.addf %43, %50 : vector<32x256xf32>
    %c2_i32 = arith.constant 2 : i32
    %52 = tpu.dynamic_rotate %22 by %c2_i32 dim 1 : vector<32x256xf32>, i32 -> vector<32x256xf32>
    %c3 = arith.constant 3 : index
    %c0_20 = arith.constant 0 : index
    %53 = vector.load %arg6[%c3, %c0_20] : memref<22x256xf32, #tpu.memory_space<vmem>>, vector<1x256xf32>
    %54 = vector.extract_strided_slice %24 {offsets = [0, 3], sizes = [32, 1], strides = [1, 1]} : vector<32x22xf32> to vector<32x1xf32>
    %55 = vector.broadcast %53 : vector<1x256xf32> to vector<32x256xf32>
    %56 = vector.broadcast %54 : vector<32x1xf32> to vector<32x256xf32>
    %57 = arith.mulf %55, %56 : vector<32x256xf32>
    %58 = arith.mulf %52, %57 : vector<32x256xf32>
    %59 = arith.addf %51, %58 : vector<32x256xf32>
    %c1_i32 = arith.constant 1 : i32
    %60 = tpu.dynamic_rotate %22 by %c1_i32 dim 1 : vector<32x256xf32>, i32 -> vector<32x256xf32>
    %c4 = arith.constant 4 : index
    %c0_21 = arith.constant 0 : index
    %61 = vector.load %arg6[%c4, %c0_21] : memref<22x256xf32, #tpu.memory_space<vmem>>, vector<1x256xf32>
    %62 = vector.extract_strided_slice %24 {offsets = [0, 4], sizes = [32, 1], strides = [1, 1]} : vector<32x22xf32> to vector<32x1xf32>
    %63 = vector.broadcast %61 : vector<1x256xf32> to vector<32x256xf32>
    %64 = vector.broadcast %62 : vector<32x1xf32> to vector<32x256xf32>
    %65 = arith.mulf %63, %64 : vector<32x256xf32>
    %66 = arith.mulf %60, %65 : vector<32x256xf32>
    %67 = arith.addf %59, %66 : vector<32x256xf32>
    %c255_i32 = arith.constant 255 : i32
    %68 = tpu.dynamic_rotate %22 by %c255_i32 dim 1 : vector<32x256xf32>, i32 -> vector<32x256xf32>
    %c6 = arith.constant 6 : index
    %c0_22 = arith.constant 0 : index
    %69 = vector.load %arg6[%c6, %c0_22] : memref<22x256xf32, #tpu.memory_space<vmem>>, vector<1x256xf32>
    %70 = vector.extract_strided_slice %24 {offsets = [0, 6], sizes = [32, 1], strides = [1, 1]} : vector<32x22xf32> to vector<32x1xf32>
    %71 = vector.broadcast %69 : vector<1x256xf32> to vector<32x256xf32>
    %72 = vector.broadcast %70 : vector<32x1xf32> to vector<32x256xf32>
    %73 = arith.mulf %71, %72 : vector<32x256xf32>
    %74 = arith.mulf %68, %73 : vector<32x256xf32>
    %75 = arith.addf %67, %74 : vector<32x256xf32>
    %c254_i32 = arith.constant 254 : i32
    %76 = tpu.dynamic_rotate %22 by %c254_i32 dim 1 : vector<32x256xf32>, i32 -> vector<32x256xf32>
    %c7 = arith.constant 7 : index
    %c0_23 = arith.constant 0 : index
    %77 = vector.load %arg6[%c7, %c0_23] : memref<22x256xf32, #tpu.memory_space<vmem>>, vector<1x256xf32>
    %78 = vector.extract_strided_slice %24 {offsets = [0, 7], sizes = [32, 1], strides = [1, 1]} : vector<32x22xf32> to vector<32x1xf32>
    %79 = vector.broadcast %77 : vector<1x256xf32> to vector<32x256xf32>
    %80 = vector.broadcast %78 : vector<32x1xf32> to vector<32x256xf32>
    %81 = arith.mulf %79, %80 : vector<32x256xf32>
    %82 = arith.mulf %76, %81 : vector<32x256xf32>
    %83 = arith.addf %75, %82 : vector<32x256xf32>
    %c253_i32 = arith.constant 253 : i32
    %84 = tpu.dynamic_rotate %22 by %c253_i32 dim 1 : vector<32x256xf32>, i32 -> vector<32x256xf32>
    %c8 = arith.constant 8 : index
    %c0_24 = arith.constant 0 : index
    %85 = vector.load %arg6[%c8, %c0_24] : memref<22x256xf32, #tpu.memory_space<vmem>>, vector<1x256xf32>
    %86 = vector.extract_strided_slice %24 {offsets = [0, 8], sizes = [32, 1], strides = [1, 1]} : vector<32x22xf32> to vector<32x1xf32>
    %87 = vector.broadcast %85 : vector<1x256xf32> to vector<32x256xf32>
    %88 = vector.broadcast %86 : vector<32x1xf32> to vector<32x256xf32>
    %89 = arith.mulf %87, %88 : vector<32x256xf32>
    %90 = arith.mulf %84, %89 : vector<32x256xf32>
    %91 = arith.addf %83, %90 : vector<32x256xf32>
    %c252_i32 = arith.constant 252 : i32
    %92 = tpu.dynamic_rotate %22 by %c252_i32 dim 1 : vector<32x256xf32>, i32 -> vector<32x256xf32>
    %c9 = arith.constant 9 : index
    %c0_25 = arith.constant 0 : index
    %93 = vector.load %arg6[%c9, %c0_25] : memref<22x256xf32, #tpu.memory_space<vmem>>, vector<1x256xf32>
    %94 = vector.extract_strided_slice %24 {offsets = [0, 9], sizes = [32, 1], strides = [1, 1]} : vector<32x22xf32> to vector<32x1xf32>
    %95 = vector.broadcast %93 : vector<1x256xf32> to vector<32x256xf32>
    %96 = vector.broadcast %94 : vector<32x1xf32> to vector<32x256xf32>
    %97 = arith.mulf %95, %96 : vector<32x256xf32>
    %98 = arith.mulf %92, %97 : vector<32x256xf32>
    %99 = arith.addf %91, %98 : vector<32x256xf32>
    %c251_i32 = arith.constant 251 : i32
    %100 = tpu.dynamic_rotate %22 by %c251_i32 dim 1 : vector<32x256xf32>, i32 -> vector<32x256xf32>
    %c10 = arith.constant 10 : index
    %c0_26 = arith.constant 0 : index
    %101 = vector.load %arg6[%c10, %c0_26] : memref<22x256xf32, #tpu.memory_space<vmem>>, vector<1x256xf32>
    %102 = vector.extract_strided_slice %24 {offsets = [0, 10], sizes = [32, 1], strides = [1, 1]} : vector<32x22xf32> to vector<32x1xf32>
    %103 = vector.broadcast %101 : vector<1x256xf32> to vector<32x256xf32>
    %104 = vector.broadcast %102 : vector<32x1xf32> to vector<32x256xf32>
    %105 = arith.mulf %103, %104 : vector<32x256xf32>
    %106 = arith.mulf %100, %105 : vector<32x256xf32>
    %107 = arith.addf %99, %106 : vector<32x256xf32>
    %108 = arith.index_cast %20 : i32 to index
    %c1_27 = arith.constant 1 : index
    %109 = vector.load %arg7[%108, %c1_27] : memref<64x4xf32, #tpu.memory_space<vmem>>, vector<32x1xf32>
    %110 = vector.broadcast %109 : vector<32x1xf32> to vector<32x256xf32>
    %111 = arith.addf %107, %110 : vector<32x256xf32>
    %112 = arith.index_cast %20 : i32 to index
    %c0_28 = arith.constant 0 : index
    %113 = vector.load %arg10[%112, %c0_28] : memref<64x256xf32, #tpu.memory_space<vmem>>, vector<32x256xf32>
    tpu.vector_store %arg10[%112, %c0_28], %111 {strides = array<i32>} : memref<64x256xf32, #tpu.memory_space<vmem>>, vector<32x256xf32>,
    %c1_i32_29 = arith.constant 1 : i32
    %c32_i32_30 = arith.constant 32 : i32
    %114 = arith.muli %c1_i32_29, %c32_i32_30 : i32
    %115 = tpu.assume_multiple %114, 32 : i32
    %116 = arith.index_cast %115 : i32 to index
    %c0_31 = arith.constant 0 : index
    %117 = vector.load %arg9[%116, %c0_31] : memref<64x256xf32, #tpu.memory_space<vmem>>, vector<32x256xf32>
    %118 = arith.index_cast %115 : i32 to index
    %c0_32 = arith.constant 0 : index
    %119 = vector.load %arg5[%118, %c0_32] : memref<64x22xf32, #tpu.memory_space<vmem>>, vector<32x22xf32>
    %120 = vector.extract_strided_slice %119 {offsets = [0, 5], sizes = [32, 1], strides = [1, 1]} : vector<32x22xf32> to vector<32x1xf32>
    %121 = vector.broadcast %120 : vector<32x1xf32> to vector<32x256xf32>
    %122 = arith.mulf %117, %121 : vector<32x256xf32>
    %c5_i32_33 = arith.constant 5 : i32
    %123 = tpu.dynamic_rotate %117 by %c5_i32_33 dim 1 : vector<32x256xf32>, i32 -> vector<32x256xf32>
    %c0_34 = arith.constant 0 : index
    %c0_35 = arith.constant 0 : index
    %124 = vector.load %arg6[%c0_34, %c0_35] : memref<22x256xf32, #tpu.memory_space<vmem>>, vector<1x256xf32>
    %125 = vector.extract_strided_slice %119 {offsets = [0, 0], sizes = [32, 1], strides = [1, 1]} : vector<32x22xf32> to vector<32x1xf32>
    %126 = vector.broadcast %124 : vector<1x256xf32> to vector<32x256xf32>
    %127 = vector.broadcast %125 : vector<32x1xf32> to vector<32x256xf32>
    %128 = arith.mulf %126, %127 : vector<32x256xf32>
    %129 = arith.mulf %123, %128 : vector<32x256xf32>
    %130 = arith.addf %122, %129 : vector<32x256xf32>
    %c4_i32_36 = arith.constant 4 : i32
    %131 = tpu.dynamic_rotate %117 by %c4_i32_36 dim 1 : vector<32x256xf32>, i32 -> vector<32x256xf32>
    %c1_37 = arith.constant 1 : index
    %c0_38 = arith.constant 0 : index
    %132 = vector.load %arg6[%c1_37, %c0_38] : memref<22x256xf32, #tpu.memory_space<vmem>>, vector<1x256xf32>
    %133 = vector.extract_strided_slice %119 {offsets = [0, 1], sizes = [32, 1], strides = [1, 1]} : vector<32x22xf32> to vector<32x1xf32>
    %134 = vector.broadcast %132 : vector<1x256xf32> to vector<32x256xf32>
    %135 = vector.broadcast %133 : vector<32x1xf32> to vector<32x256xf32>
    %136 = arith.mulf %134, %135 : vector<32x256xf32>
    %137 = arith.mulf %131, %136 : vector<32x256xf32>
    %138 = arith.addf %130, %137 : vector<32x256xf32>
    %c3_i32_39 = arith.constant 3 : i32
    %139 = tpu.dynamic_rotate %117 by %c3_i32_39 dim 1 : vector<32x256xf32>, i32 -> vector<32x256xf32>
    %c2_40 = arith.constant 2 : index
    %c0_41 = arith.constant 0 : index
    %140 = vector.load %arg6[%c2_40, %c0_41] : memref<22x256xf32, #tpu.memory_space<vmem>>, vector<1x256xf32>
    %141 = vector.extract_strided_slice %119 {offsets = [0, 2], sizes = [32, 1], strides = [1, 1]} : vector<32x22xf32> to vector<32x1xf32>
    %142 = vector.broadcast %140 : vector<1x256xf32> to vector<32x256xf32>
    %143 = vector.broadcast %141 : vector<32x1xf32> to vector<32x256xf32>
    %144 = arith.mulf %142, %143 : vector<32x256xf32>
    %145 = arith.mulf %139, %144 : vector<32x256xf32>
    %146 = arith.addf %138, %145 : vector<32x256xf32>
    %c2_i32_42 = arith.constant 2 : i32
    %147 = tpu.dynamic_rotate %117 by %c2_i32_42 dim 1 : vector<32x256xf32>, i32 -> vector<32x256xf32>
    %c3_43 = arith.constant 3 : index
    %c0_44 = arith.constant 0 : index
    %148 = vector.load %arg6[%c3_43, %c0_44] : memref<22x256xf32, #tpu.memory_space<vmem>>, vector<1x256xf32>
    %149 = vector.extract_strided_slice %119 {offsets = [0, 3], sizes = [32, 1], strides = [1, 1]} : vector<32x22xf32> to vector<32x1xf32>
    %150 = vector.broadcast %148 : vector<1x256xf32> to vector<32x256xf32>
    %151 = vector.broadcast %149 : vector<32x1xf32> to vector<32x256xf32>
    %152 = arith.mulf %150, %151 : vector<32x256xf32>
    %153 = arith.mulf %147, %152 : vector<32x256xf32>
    %154 = arith.addf %146, %153 : vector<32x256xf32>
    %c1_i32_45 = arith.constant 1 : i32
    %155 = tpu.dynamic_rotate %117 by %c1_i32_45 dim 1 : vector<32x256xf32>, i32 -> vector<32x256xf32>
    %c4_46 = arith.constant 4 : index
    %c0_47 = arith.constant 0 : index
    %156 = vector.load %arg6[%c4_46, %c0_47] : memref<22x256xf32, #tpu.memory_space<vmem>>, vector<1x256xf32>
    %157 = vector.extract_strided_slice %119 {offsets = [0, 4], sizes = [32, 1], strides = [1, 1]} : vector<32x22xf32> to vector<32x1xf32>
    %158 = vector.broadcast %156 : vector<1x256xf32> to vector<32x256xf32>
    %159 = vector.broadcast %157 : vector<32x1xf32> to vector<32x256xf32>
    %160 = arith.mulf %158, %159 : vector<32x256xf32>
    %161 = arith.mulf %155, %160 : vector<32x256xf32>
    %162 = arith.addf %154, %161 : vector<32x256xf32>
    %c255_i32_48 = arith.constant 255 : i32
    %163 = tpu.dynamic_rotate %117 by %c255_i32_48 dim 1 : vector<32x256xf32>, i32 -> vector<32x256xf32>
    %c6_49 = arith.constant 6 : index
    %c0_50 = arith.constant 0 : index
    %164 = vector.load %arg6[%c6_49, %c0_50] : memref<22x256xf32, #tpu.memory_space<vmem>>, vector<1x256xf32>
    %165 = vector.extract_strided_slice %119 {offsets = [0, 6], sizes = [32, 1], strides = [1, 1]} : vector<32x22xf32> to vector<32x1xf32>
    %166 = vector.broadcast %164 : vector<1x256xf32> to vector<32x256xf32>
    %167 = vector.broadcast %165 : vector<32x1xf32> to vector<32x256xf32>
    %168 = arith.mulf %166, %167 : vector<32x256xf32>
    %169 = arith.mulf %163, %168 : vector<32x256xf32>
    %170 = arith.addf %162, %169 : vector<32x256xf32>
    %c254_i32_51 = arith.constant 254 : i32
    %171 = tpu.dynamic_rotate %117 by %c254_i32_51 dim 1 : vector<32x256xf32>, i32 -> vector<32x256xf32>
    %c7_52 = arith.constant 7 : index
    %c0_53 = arith.constant 0 : index
    %172 = vector.load %arg6[%c7_52, %c0_53] : memref<22x256xf32, #tpu.memory_space<vmem>>, vector<1x256xf32>
    %173 = vector.extract_strided_slice %119 {offsets = [0, 7], sizes = [32, 1], strides = [1, 1]} : vector<32x22xf32> to vector<32x1xf32>
    %174 = vector.broadcast %172 : vector<1x256xf32> to vector<32x256xf32>
    %175 = vector.broadcast %173 : vector<32x1xf32> to vector<32x256xf32>
    %176 = arith.mulf %174, %175 : vector<32x256xf32>
    %177 = arith.mulf %171, %176 : vector<32x256xf32>
    %178 = arith.addf %170, %177 : vector<32x256xf32>
    %c253_i32_54 = arith.constant 253 : i32
    %179 = tpu.dynamic_rotate %117 by %c253_i32_54 dim 1 : vector<32x256xf32>, i32 -> vector<32x256xf32>
    %c8_55 = arith.constant 8 : index
    %c0_56 = arith.constant 0 : index
    %180 = vector.load %arg6[%c8_55, %c0_56] : memref<22x256xf32, #tpu.memory_space<vmem>>, vector<1x256xf32>
    %181 = vector.extract_strided_slice %119 {offsets = [0, 8], sizes = [32, 1], strides = [1, 1]} : vector<32x22xf32> to vector<32x1xf32>
    %182 = vector.broadcast %180 : vector<1x256xf32> to vector<32x256xf32>
    %183 = vector.broadcast %181 : vector<32x1xf32> to vector<32x256xf32>
    %184 = arith.mulf %182, %183 : vector<32x256xf32>
    %185 = arith.mulf %179, %184 : vector<32x256xf32>
    %186 = arith.addf %178, %185 : vector<32x256xf32>
    %c252_i32_57 = arith.constant 252 : i32
    %187 = tpu.dynamic_rotate %117 by %c252_i32_57 dim 1 : vector<32x256xf32>, i32 -> vector<32x256xf32>
    %c9_58 = arith.constant 9 : index
    %c0_59 = arith.constant 0 : index
    %188 = vector.load %arg6[%c9_58, %c0_59] : memref<22x256xf32, #tpu.memory_space<vmem>>, vector<1x256xf32>
    %189 = vector.extract_strided_slice %119 {offsets = [0, 9], sizes = [32, 1], strides = [1, 1]} : vector<32x22xf32> to vector<32x1xf32>
    %190 = vector.broadcast %188 : vector<1x256xf32> to vector<32x256xf32>
    %191 = vector.broadcast %189 : vector<32x1xf32> to vector<32x256xf32>
    %192 = arith.mulf %190, %191 : vector<32x256xf32>
    %193 = arith.mulf %187, %192 : vector<32x256xf32>
    %194 = arith.addf %186, %193 : vector<32x256xf32>
    %c251_i32_60 = arith.constant 251 : i32
    %195 = tpu.dynamic_rotate %117 by %c251_i32_60 dim 1 : vector<32x256xf32>, i32 -> vector<32x256xf32>
    %c10_61 = arith.constant 10 : index
    %c0_62 = arith.constant 0 : index
    %196 = vector.load %arg6[%c10_61, %c0_62] : memref<22x256xf32, #tpu.memory_space<vmem>>, vector<1x256xf32>
    %197 = vector.extract_strided_slice %119 {offsets = [0, 10], sizes = [32, 1], strides = [1, 1]} : vector<32x22xf32> to vector<32x1xf32>
    %198 = vector.broadcast %196 : vector<1x256xf32> to vector<32x256xf32>
    %199 = vector.broadcast %197 : vector<32x1xf32> to vector<32x256xf32>
    %200 = arith.mulf %198, %199 : vector<32x256xf32>
    %201 = arith.mulf %195, %200 : vector<32x256xf32>
    %202 = arith.addf %194, %201 : vector<32x256xf32>
    %203 = arith.index_cast %115 : i32 to index
    %c1_63 = arith.constant 1 : index
    %204 = vector.load %arg7[%203, %c1_63] : memref<64x4xf32, #tpu.memory_space<vmem>>, vector<32x1xf32>
    %205 = vector.broadcast %204 : vector<32x1xf32> to vector<32x256xf32>
    %206 = arith.addf %202, %205 : vector<32x256xf32>
    %207 = arith.index_cast %115 : i32 to index
    %c0_64 = arith.constant 0 : index
    %208 = vector.load %arg10[%207, %c0_64] : memref<64x256xf32, #tpu.memory_space<vmem>>, vector<32x256xf32>
    tpu.vector_store %arg10[%207, %c0_64], %206 {strides = array<i32>} : memref<64x256xf32, #tpu.memory_space<vmem>>, vector<32x256xf32>,
    %c2_i32_65 = arith.constant 2 : i32
    %c0_i32_66 = arith.constant 0 : i32
    %c32_i32_67 = arith.constant 32 : i32
    %209 = arith.muli %c0_i32_66, %c32_i32_67 : i32
    %210 = tpu.assume_multiple %209, 32 : i32
    %211 = arith.index_cast %210 : i32 to index
    %c0_68 = arith.constant 0 : index
    %212 = vector.load %arg10[%211, %c0_68] : memref<64x256xf32, #tpu.memory_space<vmem>>, vector<32x256xf32>
    %213 = arith.index_cast %210 : i32 to index
    %c0_69 = arith.constant 0 : index
    %214 = vector.load %arg5[%213, %c0_69] : memref<64x22xf32, #tpu.memory_space<vmem>>, vector<32x22xf32>
    %215 = vector.extract_strided_slice %214 {offsets = [0, 16], sizes = [32, 1], strides = [1, 1]} : vector<32x22xf32> to vector<32x1xf32>
    %216 = vector.broadcast %215 : vector<32x1xf32> to vector<32x256xf32>
    %217 = arith.mulf %212, %216 : vector<32x256xf32>
    %c80_i32 = arith.constant 80 : i32
    %218 = tpu.dynamic_rotate %212 by %c80_i32 dim 1 : vector<32x256xf32>, i32 -> vector<32x256xf32>
    %c11 = arith.constant 11 : index
    %c0_70 = arith.constant 0 : index
    %219 = vector.load %arg6[%c11, %c0_70] : memref<22x256xf32, #tpu.memory_space<vmem>>, vector<1x256xf32>
    %220 = vector.extract_strided_slice %214 {offsets = [0, 11], sizes = [32, 1], strides = [1, 1]} : vector<32x22xf32> to vector<32x1xf32>
    %221 = vector.broadcast %219 : vector<1x256xf32> to vector<32x256xf32>
    %222 = vector.broadcast %220 : vector<32x1xf32> to vector<32x256xf32>
    %223 = arith.mulf %221, %222 : vector<32x256xf32>
    %224 = arith.mulf %218, %223 : vector<32x256xf32>
    %225 = arith.addf %217, %224 : vector<32x256xf32>
    %c64_i32 = arith.constant 64 : i32
    %226 = tpu.dynamic_rotate %212 by %c64_i32 dim 1 : vector<32x256xf32>, i32 -> vector<32x256xf32>
    %c12 = arith.constant 12 : index
    %c0_71 = arith.constant 0 : index
    %227 = vector.load %arg6[%c12, %c0_71] : memref<22x256xf32, #tpu.memory_space<vmem>>, vector<1x256xf32>
    %228 = vector.extract_strided_slice %214 {offsets = [0, 12], sizes = [32, 1], strides = [1, 1]} : vector<32x22xf32> to vector<32x1xf32>
    %229 = vector.broadcast %227 : vector<1x256xf32> to vector<32x256xf32>
    %230 = vector.broadcast %228 : vector<32x1xf32> to vector<32x256xf32>
    %231 = arith.mulf %229, %230 : vector<32x256xf32>
    %232 = arith.mulf %226, %231 : vector<32x256xf32>
    %233 = arith.addf %225, %232 : vector<32x256xf32>
    %c48_i32 = arith.constant 48 : i32
    %234 = tpu.dynamic_rotate %212 by %c48_i32 dim 1 : vector<32x256xf32>, i32 -> vector<32x256xf32>
    %c13 = arith.constant 13 : index
    %c0_72 = arith.constant 0 : index
    %235 = vector.load %arg6[%c13, %c0_72] : memref<22x256xf32, #tpu.memory_space<vmem>>, vector<1x256xf32>
    %236 = vector.extract_strided_slice %214 {offsets = [0, 13], sizes = [32, 1], strides = [1, 1]} : vector<32x22xf32> to vector<32x1xf32>
    %237 = vector.broadcast %235 : vector<1x256xf32> to vector<32x256xf32>
    %238 = vector.broadcast %236 : vector<32x1xf32> to vector<32x256xf32>
    %239 = arith.mulf %237, %238 : vector<32x256xf32>
    %240 = arith.mulf %234, %239 : vector<32x256xf32>
    %241 = arith.addf %233, %240 : vector<32x256xf32>
    %c32_i32_73 = arith.constant 32 : i32
    %242 = tpu.dynamic_rotate %212 by %c32_i32_73 dim 1 : vector<32x256xf32>, i32 -> vector<32x256xf32>
    %c14 = arith.constant 14 : index
    %c0_74 = arith.constant 0 : index
    %243 = vector.load %arg6[%c14, %c0_74] : memref<22x256xf32, #tpu.memory_space<vmem>>, vector<1x256xf32>
    %244 = vector.extract_strided_slice %214 {offsets = [0, 14], sizes = [32, 1], strides = [1, 1]} : vector<32x22xf32> to vector<32x1xf32>
    %245 = vector.broadcast %243 : vector<1x256xf32> to vector<32x256xf32>
    %246 = vector.broadcast %244 : vector<32x1xf32> to vector<32x256xf32>
    %247 = arith.mulf %245, %246 : vector<32x256xf32>
    %248 = arith.mulf %242, %247 : vector<32x256xf32>
    %249 = arith.addf %241, %248 : vector<32x256xf32>
    %c16_i32 = arith.constant 16 : i32
    %250 = tpu.dynamic_rotate %212 by %c16_i32 dim 1 : vector<32x256xf32>, i32 -> vector<32x256xf32>
    %c15 = arith.constant 15 : index
    %c0_75 = arith.constant 0 : index
    %251 = vector.load %arg6[%c15, %c0_75] : memref<22x256xf32, #tpu.memory_space<vmem>>, vector<1x256xf32>
    %252 = vector.extract_strided_slice %214 {offsets = [0, 15], sizes = [32, 1], strides = [1, 1]} : vector<32x22xf32> to vector<32x1xf32>
    %253 = vector.broadcast %251 : vector<1x256xf32> to vector<32x256xf32>
    %254 = vector.broadcast %252 : vector<32x1xf32> to vector<32x256xf32>
    %255 = arith.mulf %253, %254 : vector<32x256xf32>
    %256 = arith.mulf %250, %255 : vector<32x256xf32>
    %257 = arith.addf %249, %256 : vector<32x256xf32>
    %c240_i32 = arith.constant 240 : i32
    %258 = tpu.dynamic_rotate %212 by %c240_i32 dim 1 : vector<32x256xf32>, i32 -> vector<32x256xf32>
    %c17 = arith.constant 17 : index
    %c0_76 = arith.constant 0 : index
    %259 = vector.load %arg6[%c17, %c0_76] : memref<22x256xf32, #tpu.memory_space<vmem>>, vector<1x256xf32>
    %260 = vector.extract_strided_slice %214 {offsets = [0, 17], sizes = [32, 1], strides = [1, 1]} : vector<32x22xf32> to vector<32x1xf32>
    %261 = vector.broadcast %259 : vector<1x256xf32> to vector<32x256xf32>
    %262 = vector.broadcast %260 : vector<32x1xf32> to vector<32x256xf32>
    %263 = arith.mulf %261, %262 : vector<32x256xf32>
    %264 = arith.mulf %258, %263 : vector<32x256xf32>
    %265 = arith.addf %257, %264 : vector<32x256xf32>
    %c224_i32 = arith.constant 224 : i32
    %266 = tpu.dynamic_rotate %212 by %c224_i32 dim 1 : vector<32x256xf32>, i32 -> vector<32x256xf32>
    %c18 = arith.constant 18 : index
    %c0_77 = arith.constant 0 : index
    %267 = vector.load %arg6[%c18, %c0_77] : memref<22x256xf32, #tpu.memory_space<vmem>>, vector<1x256xf32>
    %268 = vector.extract_strided_slice %214 {offsets = [0, 18], sizes = [32, 1], strides = [1, 1]} : vector<32x22xf32> to vector<32x1xf32>
    %269 = vector.broadcast %267 : vector<1x256xf32> to vector<32x256xf32>
    %270 = vector.broadcast %268 : vector<32x1xf32> to vector<32x256xf32>
    %271 = arith.mulf %269, %270 : vector<32x256xf32>
    %272 = arith.mulf %266, %271 : vector<32x256xf32>
    %273 = arith.addf %265, %272 : vector<32x256xf32>
    %c208_i32 = arith.constant 208 : i32
    %274 = tpu.dynamic_rotate %212 by %c208_i32 dim 1 : vector<32x256xf32>, i32 -> vector<32x256xf32>
    %c19 = arith.constant 19 : index
    %c0_78 = arith.constant 0 : index
    %275 = vector.load %arg6[%c19, %c0_78] : memref<22x256xf32, #tpu.memory_space<vmem>>, vector<1x256xf32>
    %276 = vector.extract_strided_slice %214 {offsets = [0, 19], sizes = [32, 1], strides = [1, 1]} : vector<32x22xf32> to vector<32x1xf32>
    %277 = vector.broadcast %275 : vector<1x256xf32> to vector<32x256xf32>
    %278 = vector.broadcast %276 : vector<32x1xf32> to vector<32x256xf32>
    %279 = arith.mulf %277, %278 : vector<32x256xf32>
    %280 = arith.mulf %274, %279 : vector<32x256xf32>
    %281 = arith.addf %273, %280 : vector<32x256xf32>
    %c192_i32 = arith.constant 192 : i32
    %282 = tpu.dynamic_rotate %212 by %c192_i32 dim 1 : vector<32x256xf32>, i32 -> vector<32x256xf32>
    %c20 = arith.constant 20 : index
    %c0_79 = arith.constant 0 : index
    %283 = vector.load %arg6[%c20, %c0_79] : memref<22x256xf32, #tpu.memory_space<vmem>>, vector<1x256xf32>
    %284 = vector.extract_strided_slice %214 {offsets = [0, 20], sizes = [32, 1], strides = [1, 1]} : vector<32x22xf32> to vector<32x1xf32>
    %285 = vector.broadcast %283 : vector<1x256xf32> to vector<32x256xf32>
    %286 = vector.broadcast %284 : vector<32x1xf32> to vector<32x256xf32>
    %287 = arith.mulf %285, %286 : vector<32x256xf32>
    %288 = arith.mulf %282, %287 : vector<32x256xf32>
    %289 = arith.addf %281, %288 : vector<32x256xf32>
    %c176_i32 = arith.constant 176 : i32
    %290 = tpu.dynamic_rotate %212 by %c176_i32 dim 1 : vector<32x256xf32>, i32 -> vector<32x256xf32>
    %c21 = arith.constant 21 : index
    %c0_80 = arith.constant 0 : index
    %291 = vector.load %arg6[%c21, %c0_80] : memref<22x256xf32, #tpu.memory_space<vmem>>, vector<1x256xf32>
    %292 = vector.extract_strided_slice %214 {offsets = [0, 21], sizes = [32, 1], strides = [1, 1]} : vector<32x22xf32> to vector<32x1xf32>
    %293 = vector.broadcast %291 : vector<1x256xf32> to vector<32x256xf32>
    %294 = vector.broadcast %292 : vector<32x1xf32> to vector<32x256xf32>
    %295 = arith.mulf %293, %294 : vector<32x256xf32>
    %296 = arith.mulf %290, %295 : vector<32x256xf32>
    %297 = arith.addf %289, %296 : vector<32x256xf32>
    %298 = arith.index_cast %210 : i32 to index
    %c2_81 = arith.constant 2 : index
    %299 = vector.load %arg7[%298, %c2_81] : memref<64x4xf32, #tpu.memory_space<vmem>>, vector<32x1xf32>
    %300 = vector.broadcast %299 : vector<32x1xf32> to vector<32x256xf32>
    %301 = arith.addf %297, %300 : vector<32x256xf32>
    %302 = arith.index_cast %210 : i32 to index
    %c0_82 = arith.constant 0 : index
    %303 = vector.load %arg9[%302, %c0_82] : memref<64x256xf32, #tpu.memory_space<vmem>>, vector<32x256xf32>
    tpu.vector_store %arg9[%302, %c0_82], %301 {strides = array<i32>} : memref<64x256xf32, #tpu.memory_space<vmem>>, vector<32x256xf32>,
    %c1_i32_83 = arith.constant 1 : i32
    %c32_i32_84 = arith.constant 32 : i32
    %304 = arith.muli %c1_i32_83, %c32_i32_84 : i32
    %305 = tpu.assume_multiple %304, 32 : i32
    %306 = arith.index_cast %305 : i32 to index
    %c0_85 = arith.constant 0 : index
    %307 = vector.load %arg10[%306, %c0_85] : memref<64x256xf32, #tpu.memory_space<vmem>>, vector<32x256xf32>
    %308 = arith.index_cast %305 : i32 to index
    %c0_86 = arith.constant 0 : index
    %309 = vector.load %arg5[%308, %c0_86] : memref<64x22xf32, #tpu.memory_space<vmem>>, vector<32x22xf32>
    %310 = vector.extract_strided_slice %309 {offsets = [0, 16], sizes = [32, 1], strides = [1, 1]} : vector<32x22xf32> to vector<32x1xf32>
    %311 = vector.broadcast %310 : vector<32x1xf32> to vector<32x256xf32>
    %312 = arith.mulf %307, %311 : vector<32x256xf32>
    %c80_i32_87 = arith.constant 80 : i32
    %313 = tpu.dynamic_rotate %307 by %c80_i32_87 dim 1 : vector<32x256xf32>, i32 -> vector<32x256xf32>
    %c11_88 = arith.constant 11 : index
    %c0_89 = arith.constant 0 : index
    %314 = vector.load %arg6[%c11_88, %c0_89] : memref<22x256xf32, #tpu.memory_space<vmem>>, vector<1x256xf32>
    %315 = vector.extract_strided_slice %309 {offsets = [0, 11], sizes = [32, 1], strides = [1, 1]} : vector<32x22xf32> to vector<32x1xf32>
    %316 = vector.broadcast %314 : vector<1x256xf32> to vector<32x256xf32>
    %317 = vector.broadcast %315 : vector<32x1xf32> to vector<32x256xf32>
    %318 = arith.mulf %316, %317 : vector<32x256xf32>
    %319 = arith.mulf %313, %318 : vector<32x256xf32>
    %320 = arith.addf %312, %319 : vector<32x256xf32>
    %c64_i32_90 = arith.constant 64 : i32
    %321 = tpu.dynamic_rotate %307 by %c64_i32_90 dim 1 : vector<32x256xf32>, i32 -> vector<32x256xf32>
    %c12_91 = arith.constant 12 : index
    %c0_92 = arith.constant 0 : index
    %322 = vector.load %arg6[%c12_91, %c0_92] : memref<22x256xf32, #tpu.memory_space<vmem>>, vector<1x256xf32>
    %323 = vector.extract_strided_slice %309 {offsets = [0, 12], sizes = [32, 1], strides = [1, 1]} : vector<32x22xf32> to vector<32x1xf32>
    %324 = vector.broadcast %322 : vector<1x256xf32> to vector<32x256xf32>
    %325 = vector.broadcast %323 : vector<32x1xf32> to vector<32x256xf32>
    %326 = arith.mulf %324, %325 : vector<32x256xf32>
    %327 = arith.mulf %321, %326 : vector<32x256xf32>
    %328 = arith.addf %320, %327 : vector<32x256xf32>
    %c48_i32_93 = arith.constant 48 : i32
    %329 = tpu.dynamic_rotate %307 by %c48_i32_93 dim 1 : vector<32x256xf32>, i32 -> vector<32x256xf32>
    %c13_94 = arith.constant 13 : index
    %c0_95 = arith.constant 0 : index
    %330 = vector.load %arg6[%c13_94, %c0_95] : memref<22x256xf32, #tpu.memory_space<vmem>>, vector<1x256xf32>
    %331 = vector.extract_strided_slice %309 {offsets = [0, 13], sizes = [32, 1], strides = [1, 1]} : vector<32x22xf32> to vector<32x1xf32>
    %332 = vector.broadcast %330 : vector<1x256xf32> to vector<32x256xf32>
    %333 = vector.broadcast %331 : vector<32x1xf32> to vector<32x256xf32>
    %334 = arith.mulf %332, %333 : vector<32x256xf32>
    %335 = arith.mulf %329, %334 : vector<32x256xf32>
    %336 = arith.addf %328, %335 : vector<32x256xf32>
    %c32_i32_96 = arith.constant 32 : i32
    %337 = tpu.dynamic_rotate %307 by %c32_i32_96 dim 1 : vector<32x256xf32>, i32 -> vector<32x256xf32>
    %c14_97 = arith.constant 14 : index
    %c0_98 = arith.constant 0 : index
    %338 = vector.load %arg6[%c14_97, %c0_98] : memref<22x256xf32, #tpu.memory_space<vmem>>, vector<1x256xf32>
    %339 = vector.extract_strided_slice %309 {offsets = [0, 14], sizes = [32, 1], strides = [1, 1]} : vector<32x22xf32> to vector<32x1xf32>
    %340 = vector.broadcast %338 : vector<1x256xf32> to vector<32x256xf32>
    %341 = vector.broadcast %339 : vector<32x1xf32> to vector<32x256xf32>
    %342 = arith.mulf %340, %341 : vector<32x256xf32>
    %343 = arith.mulf %337, %342 : vector<32x256xf32>
    %344 = arith.addf %336, %343 : vector<32x256xf32>
    %c16_i32_99 = arith.constant 16 : i32
    %345 = tpu.dynamic_rotate %307 by %c16_i32_99 dim 1 : vector<32x256xf32>, i32 -> vector<32x256xf32>
    %c15_100 = arith.constant 15 : index
    %c0_101 = arith.constant 0 : index
    %346 = vector.load %arg6[%c15_100, %c0_101] : memref<22x256xf32, #tpu.memory_space<vmem>>, vector<1x256xf32>
    %347 = vector.extract_strided_slice %309 {offsets = [0, 15], sizes = [32, 1], strides = [1, 1]} : vector<32x22xf32> to vector<32x1xf32>
    %348 = vector.broadcast %346 : vector<1x256xf32> to vector<32x256xf32>
    %349 = vector.broadcast %347 : vector<32x1xf32> to vector<32x256xf32>
    %350 = arith.mulf %348, %349 : vector<32x256xf32>
    %351 = arith.mulf %345, %350 : vector<32x256xf32>
    %352 = arith.addf %344, %351 : vector<32x256xf32>
    %c240_i32_102 = arith.constant 240 : i32
    %353 = tpu.dynamic_rotate %307 by %c240_i32_102 dim 1 : vector<32x256xf32>, i32 -> vector<32x256xf32>
    %c17_103 = arith.constant 17 : index
    %c0_104 = arith.constant 0 : index
    %354 = vector.load %arg6[%c17_103, %c0_104] : memref<22x256xf32, #tpu.memory_space<vmem>>, vector<1x256xf32>
    %355 = vector.extract_strided_slice %309 {offsets = [0, 17], sizes = [32, 1], strides = [1, 1]} : vector<32x22xf32> to vector<32x1xf32>
    %356 = vector.broadcast %354 : vector<1x256xf32> to vector<32x256xf32>
    %357 = vector.broadcast %355 : vector<32x1xf32> to vector<32x256xf32>
    %358 = arith.mulf %356, %357 : vector<32x256xf32>
    %359 = arith.mulf %353, %358 : vector<32x256xf32>
    %360 = arith.addf %352, %359 : vector<32x256xf32>
    %c224_i32_105 = arith.constant 224 : i32
    %361 = tpu.dynamic_rotate %307 by %c224_i32_105 dim 1 : vector<32x256xf32>, i32 -> vector<32x256xf32>
    %c18_106 = arith.constant 18 : index
    %c0_107 = arith.constant 0 : index
    %362 = vector.load %arg6[%c18_106, %c0_107] : memref<22x256xf32, #tpu.memory_space<vmem>>, vector<1x256xf32>
    %363 = vector.extract_strided_slice %309 {offsets = [0, 18], sizes = [32, 1], strides = [1, 1]} : vector<32x22xf32> to vector<32x1xf32>
    %364 = vector.broadcast %362 : vector<1x256xf32> to vector<32x256xf32>
    %365 = vector.broadcast %363 : vector<32x1xf32> to vector<32x256xf32>
    %366 = arith.mulf %364, %365 : vector<32x256xf32>
    %367 = arith.mulf %361, %366 : vector<32x256xf32>
    %368 = arith.addf %360, %367 : vector<32x256xf32>
    %c208_i32_108 = arith.constant 208 : i32
    %369 = tpu.dynamic_rotate %307 by %c208_i32_108 dim 1 : vector<32x256xf32>, i32 -> vector<32x256xf32>
    %c19_109 = arith.constant 19 : index
    %c0_110 = arith.constant 0 : index
    %370 = vector.load %arg6[%c19_109, %c0_110] : memref<22x256xf32, #tpu.memory_space<vmem>>, vector<1x256xf32>
    %371 = vector.extract_strided_slice %309 {offsets = [0, 19], sizes = [32, 1], strides = [1, 1]} : vector<32x22xf32> to vector<32x1xf32>
    %372 = vector.broadcast %370 : vector<1x256xf32> to vector<32x256xf32>
    %373 = vector.broadcast %371 : vector<32x1xf32> to vector<32x256xf32>
    %374 = arith.mulf %372, %373 : vector<32x256xf32>
    %375 = arith.mulf %369, %374 : vector<32x256xf32>
    %376 = arith.addf %368, %375 : vector<32x256xf32>
    %c192_i32_111 = arith.constant 192 : i32
    %377 = tpu.dynamic_rotate %307 by %c192_i32_111 dim 1 : vector<32x256xf32>, i32 -> vector<32x256xf32>
    %c20_112 = arith.constant 20 : index
    %c0_113 = arith.constant 0 : index
    %378 = vector.load %arg6[%c20_112, %c0_113] : memref<22x256xf32, #tpu.memory_space<vmem>>, vector<1x256xf32>
    %379 = vector.extract_strided_slice %309 {offsets = [0, 20], sizes = [32, 1], strides = [1, 1]} : vector<32x22xf32> to vector<32x1xf32>
    %380 = vector.broadcast %378 : vector<1x256xf32> to vector<32x256xf32>
    %381 = vector.broadcast %379 : vector<32x1xf32> to vector<32x256xf32>
    %382 = arith.mulf %380, %381 : vector<32x256xf32>
    %383 = arith.mulf %377, %382 : vector<32x256xf32>
    %384 = arith.addf %376, %383 : vector<32x256xf32>
    %c176_i32_114 = arith.constant 176 : i32
    %385 = tpu.dynamic_rotate %307 by %c176_i32_114 dim 1 : vector<32x256xf32>, i32 -> vector<32x256xf32>
    %c21_115 = arith.constant 21 : index
    %c0_116 = arith.constant 0 : index
    %386 = vector.load %arg6[%c21_115, %c0_116] : memref<22x256xf32, #tpu.memory_space<vmem>>, vector<1x256xf32>
    %387 = vector.extract_strided_slice %309 {offsets = [0, 21], sizes = [32, 1], strides = [1, 1]} : vector<32x22xf32> to vector<32x1xf32>
    %388 = vector.broadcast %386 : vector<1x256xf32> to vector<32x256xf32>
    %389 = vector.broadcast %387 : vector<32x1xf32> to vector<32x256xf32>
    %390 = arith.mulf %388, %389 : vector<32x256xf32>
    %391 = arith.mulf %385, %390 : vector<32x256xf32>
    %392 = arith.addf %384, %391 : vector<32x256xf32>
    %393 = arith.index_cast %305 : i32 to index
    %c2_117 = arith.constant 2 : index
    %394 = vector.load %arg7[%393, %c2_117] : memref<64x4xf32, #tpu.memory_space<vmem>>, vector<32x1xf32>
    %395 = vector.broadcast %394 : vector<32x1xf32> to vector<32x256xf32>
    %396 = arith.addf %392, %395 : vector<32x256xf32>
    %397 = arith.index_cast %305 : i32 to index
    %c0_118 = arith.constant 0 : index
    %398 = vector.load %arg9[%397, %c0_118] : memref<64x256xf32, #tpu.memory_space<vmem>>, vector<32x256xf32>
    tpu.vector_store %arg9[%397, %c0_118], %396 {strides = array<i32>} : memref<64x256xf32, #tpu.memory_space<vmem>>, vector<32x256xf32>,
    %c2_i32_119 = arith.constant 2 : i32
    %c0_120 = arith.constant 0 : index
    %c0_121 = arith.constant 0 : index
    %399 = vector.load %arg4[%c0_120, %c0_121] : memref<64x64xbf16, #tpu.memory_space<vmem>>, vector<64x64xbf16>
    %c0_122 = arith.constant 0 : index
    %c0_123 = arith.constant 0 : index
    %400 = vector.load %arg9[%c0_122, %c0_123] : memref<64x256xf32, #tpu.memory_space<vmem>>, vector<64x256xf32>
    %401 = arith.truncf %400 : vector<64x256xf32> to vector<64x256xbf16>
    %cst_124 = arith.constant dense<0.000000e+00> : vector<64x256xf32>
    %402 = tpu.matmul %399, %401, %cst_124 {dimension_numbers = #tpu.dot_dimension_numbers<[1], [0], [0], [1], [0, 0, 1, 1], [], []>} : vector<64x64xbf16>, vector<64x256xbf16>, vector<64x256xf32> -> vector<64x256xf32>
    %c0_125 = arith.constant 0 : index
    %c3_126 = arith.constant 3 : index
    %403 = vector.load %arg7[%c0_125, %c3_126] : memref<64x4xf32, #tpu.memory_space<vmem>>, vector<64x1xf32>
    %404 = vector.broadcast %403 : vector<64x1xf32> to vector<64x256xf32>
    %405 = arith.addf %402, %404 : vector<64x256xf32>
    %cst_127 = arith.constant 5.000000e-01 : f32
    %406 = vector.broadcast %cst_127 : f32 to vector<64x256xf32>
    %407 = arith.mulf %406, %405 : vector<64x256xf32>
    %408 = math.tanh %407 : vector<64x256xf32>
    %cst_128 = arith.constant 1.000000e+00 : f32
    %409 = vector.broadcast %cst_128 : f32 to vector<64x256xf32>
    %410 = arith.addf %408, %409 : vector<64x256xf32>
    %cst_129 = arith.constant 5.000000e-01 : f32
    %411 = vector.broadcast %cst_129 : f32 to vector<64x256xf32>
    %412 = arith.mulf %411, %410 : vector<64x256xf32>
    %413 = arith.mulf %405, %412 : vector<64x256xf32>
    %cst_130 = arith.constant 5.000000e-01 : f32
    %414 = vector.broadcast %cst_130 : f32 to vector<64x256xf32>
    %415 = arith.mulf %414, %413 : vector<64x256xf32>
    %416 = math.tanh %415 : vector<64x256xf32>
    %cst_131 = arith.constant 1.000000e+00 : f32
    %417 = vector.broadcast %cst_131 : f32 to vector<64x256xf32>
    %418 = arith.addf %416, %417 : vector<64x256xf32>
    %cst_132 = arith.constant 5.000000e-01 : f32
    %419 = vector.broadcast %cst_132 : f32 to vector<64x256xf32>
    %420 = arith.mulf %419, %418 : vector<64x256xf32>
    %c0_133 = arith.constant 0 : index
    %c0_134 = arith.constant 0 : index
    %c0_135 = arith.constant 0 : index
    %421 = vector.load %arg8[%c0_133, %c0_134, %c0_135] : memref<1x64x256xf32, #tpu.memory_space<vmem>>, vector<1x64x256xf32>
    %422 = vector.shape_cast %421 : vector<1x64x256xf32> to vector<64x256xf32>
    %423 = vector.shape_cast %420 : vector<64x256xf32> to vector<1x64x256xf32>
    tpu.vector_store %arg8[%c0_133, %c0_134, %c0_135], %423 {strides = array<i32>} : memref<1x64x256xf32, #tpu.memory_space<vmem>>, vector<1x64x256xf32>,
    return
  }
  func.func @transform_0(%arg0: i32) -> (i32, i32, i32) {
    %c0_i32 = arith.constant 0 : i32
    %c0_i32_0 = arith.constant 0 : i32
    %c0_i32_1 = arith.constant 0 : i32
    return %arg0, %c0_i32, %c0_i32_0 : i32, i32, i32
  }
  func.func @transform_1(%arg0: i32) -> (i32, i32) {
    %c0_i32 = arith.constant 0 : i32
    %c0_i32_0 = arith.constant 0 : i32
    %c0_i32_1 = arith.constant 0 : i32
    return %c0_i32, %c0_i32_0 : i32, i32
  }
  func.func @transform_2(%arg0: i32) -> (i32, i32) {
    %c0_i32 = arith.constant 0 : i32
    %c0_i32_0 = arith.constant 0 : i32
    %c0_i32_1 = arith.constant 0 : i32
    return %c0_i32, %c0_i32_0 : i32, i32
  }
  func.func @transform_3(%arg0: i32) -> (i32, i32) {
    %c0_i32 = arith.constant 0 : i32
    %c0_i32_0 = arith.constant 0 : i32
    %c0_i32_1 = arith.constant 0 : i32
    return %c0_i32, %c0_i32_0 : i32, i32
  }
  func.func @transform_4(%arg0: i32) -> (i32, i32) {
    %c0_i32 = arith.constant 0 : i32
    %c0_i32_0 = arith.constant 0 : i32
    %c0_i32_1 = arith.constant 0 : i32
    return %c0_i32, %c0_i32_0 : i32, i32
  }
  func.func @transform_5(%arg0: i32) -> (i32, i32) {
    %c0_i32 = arith.constant 0 : i32
    %c0_i32_0 = arith.constant 0 : i32
    %c0_i32_1 = arith.constant 0 : i32
    return %c0_i32, %c0_i32_0 : i32, i32
  }
  func.func @transform_6(%arg0: i32) -> (i32, i32) {
    %c0_i32 = arith.constant 0 : i32
    %c0_i32_0 = arith.constant 0 : i32
    %c0_i32_1 = arith.constant 0 : i32
    return %c0_i32, %c0_i32_0 : i32, i32
  }
  func.func @transform_7(%arg0: i32) -> (i32, i32, i32) {
    %c0_i32 = arith.constant 0 : i32
    %c0_i32_0 = arith.constant 0 : i32
    %c0_i32_1 = arith.constant 0 : i32
    return %arg0, %c0_i32, %c0_i32_0 : i32, i32, i32
  }
}

</mosaic_0001>

<llo_original>
// kernel: tpu_custom_call.1
$region0: #{tpu_custom_call.1}
  #allocation0 [shape = 'u32[]', space=smem, size = 0x4, offset = 0x4, fixed_abs, tag = 'smem constant byte address 0x4 - core index']
  #allocation1 [shape = 'u32[72,128]{1,0:T(1,128)}', space=vmem, size = 0x9000, scoped, tag = 'internal scratch']
  #allocation2 [shape = 'f32[64,256]{1,0:T(8,128)}', space=vmem, size = 0x10000, scoped, tag = 'scratch operand']
  #allocation3 [shape = 'f32[64,256]{1,0:T(8,128)}', space=vmem, size = 0x10000, scoped, tag = 'scratch operand']
  %s0 = inlined_call_operand.vmem [shape: bf16[2,64,256], index: 0, kind: input, shape index: {}]
  %s1 = inlined_call_operand.hbm [shape: bf16[256,256], index: 1, kind: input, shape index: {}]
  %s2 = inlined_call_operand.hbm [shape: bf16[64,64], index: 2, kind: input, shape index: {}]
  %s3 = inlined_call_operand.hbm [shape: bf16[64,64], index: 3, kind: input, shape index: {}]
  %s4 = inlined_call_operand.vmem [shape: f32[64,22], index: 4, kind: input, shape index: {}]
  %s5 = inlined_call_operand.hbm [shape: f32[22,256], index: 5, kind: input, shape index: {}]
  %s6 = inlined_call_operand.vmem [shape: f32[64,4], index: 6, kind: input, shape index: {}]
  %s7 = inlined_call_operand.hbm [shape: f32[2,64,256], index: 7, kind: output, shape index: {}]
  %s8 = sld [smem:[#allocation0]]
  $region77: #{tpu_custom_call.1} parent=0
    _
  %s10 = ssub.s32 1, %s8
  %s11 = scalar_select 0, %s10, %s8
  $region1: #{tpu_custom_call.1} parent=0
    #allocation4 [shape = 'u8[131072]{0}', space=vmem, size = 0x20000, scoped, tag = 'input window, operand 1, single buffered']
    #allocation5 [shape = 's32[2]{0}', space=sflag, size = 0x8, scoped, tag = 'scoped memory for tpu_custom_call.1']
    #allocation6 [shape = 's32[2]{0}', space=sflag, size = 0x8, scoped, tag = 'scoped memory for tpu_custom_call.1']
    #allocation7 [shape = 'u8[16384]{0}', space=vmem, size = 0x4000, scoped, tag = 'input window, operand 2, single buffered']
    #allocation8 [shape = 's32[1]{0}', space=sflag, size = 0x4, scoped, tag = 'scoped memory for tpu_custom_call.1']
    #allocation9 [shape = 'u8[16384]{0}', space=vmem, size = 0x4000, scoped, tag = 'input window, operand 3, single buffered']
    #allocation10 [shape = 'u8[24576]{0}', space=vmem, size = 0x6000, scoped, tag = 'input window, operand 5, single buffered']
    #allocation11 [shape = 's32[1]{0}', space=sflag, size = 0x4, scoped, tag = 'scoped memory for tpu_custom_call.1']
    #allocation12 [shape = 'u8[131072]{0}', space=vmem, size = 0x20000, scoped, tag = 'output window, operand 0']
    %12 = vsyncpa [#allocation5], 0
    %13 = vsyncpa [#allocation8], 0
    %14 = vsyncpa [#allocation11], 0
    %15 = vsyncpa [#allocation6], 0
    %s16 = scalar_lea.sflag [#allocation6], 1
    %17 = vsyncpa %s16, 0
    loop: start=0, step=1, limit=4
    $region2: #{tpu_custom_call.1} parent=1 // loop_pre_header
      _
    $region3: #{tpu_custom_call.1} parent=1 // loop_header
      %s19 = sphi 0, %s23
      %p20 = scmp.ge.s32.totalorder %s19, 4
      %s29 = sphi 0, %s31
      %s32 = sphi 0, %s29
      %s33 = sphi 0, %s32
      %s49 = sphi 0, %s33
      %s53 = sphi 0, %s53
      %s55 = sphi 0, %s53
      %s56 = sphi 0, %s55
      %s70 = sphi 0, %s56
      %s74 = sphi 0, %s74
      %s76 = sphi 0, %s74
      %s77 = sphi 0, %s76
      %s91 = sphi 0, %s77
      %s95 = sphi 0, %s95
      %s97 = sphi 0, %s95
      %s98 = sphi 0, %s97
      %s112 = sphi 0, %s98
      %s116 = sphi 0, %s116
      %s118 = sphi 0, %s116
      %s119 = sphi 0, %s118
      %s133 = sphi 0, %s119
      %s137 = sphi 0, %s137
      %s139 = sphi 0, %s137
      %s140 = sphi 0, %s139
      %s154 = sphi 0, %s140
      %s158 = sphi 0, %s158
      %s160 = sphi 0, %s158
      %s161 = sphi 0, %s160
      %s175 = sphi 0, %s161
      %s181 = sphi 0, %s183
      %s184 = sphi 0, %s181
      %s185 = sphi 0, %s184
      %s201 = sphi 0, %s185
    $region4: #{tpu_custom_call.1} parent=1 // loop_header_branch
      %22 = sbr.rel (%p20) target = $region8
    $region5: #{tpu_custom_call.1} parent=1 // loop_body
      %s24 = ssub.s32 %s19, 1
      %s25 = ssub.s32 %s19, 2
      %s26 = sadd.s32 %s19, 1
      %s27 = ssub.s32 %s19, %s26
      %p28 = scmp.eq.s32.totalorder %s27, 0
      %s30 = sadd.s32 %s29, 1
      %s31 = scalar_select %p28, %s29, %s30
      %p34 = pneg %p28
      %p35 = scmp.eq.s32.totalorder %s19, 1
      %p36 = por %p34, %p35
      %p37 = scmp.ne.s32.totalorder %s29, %s32
      %p38 = scmp.eq.s32.totalorder %s19, 0
      %p39 = por %p37, %p38
      %p40 = scmp.ne.s32.totalorder %s29, %s32
      %p41 = scmp.eq.s32.totalorder %s24, 1
      %p42 = por %p40, %p41
      %p43 = scmp.ne.s32.totalorder %s32, %s33
      %p44 = scmp.eq.s32.totalorder %s24, 0
      %p45 = por %p43, %p44
      %p46 = scmp.ne.s32.totalorder %s32, %s33
      %p47 = scmp.eq.s32.totalorder %s25, 1
      %p48 = por %p46, %p47
      %p50 = scmp.ne.s32.totalorder %s33, %s49
      %p51 = scmp.eq.s32.totalorder %s25, 0
      %p52 = por %p50, %p51
      %s54 = sadd.s32 %s53, 1
      %p57 = scmp.eq.s32.totalorder %s19, 1
      %p58 = scmp.ne.s32.totalorder %s53, %s55
      %p59 = scmp.eq.s32.totalorder %s19, 0
      %p60 = por %p58, %p59
      %p61 = scmp.ne.s32.totalorder %s53, %s55
      %p62 = scmp.eq.s32.totalorder %s24, 1
      %p63 = por %p61, %p62
      %p64 = scmp.ne.s32.totalorder %s55, %s56
      %p65 = scmp.eq.s32.totalorder %s24, 0
      %p66 = por %p64, %p65
      %p67 = scmp.ne.s32.totalorder %s55, %s56
      %p68 = scmp.eq.s32.totalorder %s25, 1
      %p69 = por %p67, %p68
      %p71 = scmp.ne.s32.totalorder %s56, %s70
      %p72 = scmp.eq.s32.totalorder %s25, 0
      %p73 = por %p71, %p72
      %s75 = sadd.s32 %s74, 1
      %p78 = scmp.eq.s32.totalorder %s19, 1
      %p79 = scmp.ne.s32.totalorder %s74, %s76
      %p80 = scmp.eq.s32.totalorder %s19, 0
      %p81 = por %p79, %p80
      %p82 = scmp.ne.s32.totalorder %s74, %s76
      %p83 = scmp.eq.s32.totalorder %s24, 1
      %p84 = por %p82, %p83
      %p85 = scmp.ne.s32.totalorder %s76, %s77
      %p86 = scmp.eq.s32.totalorder %s24, 0
      %p87 = por %p85, %p86
      %p88 = scmp.ne.s32.totalorder %s76, %s77
      %p89 = scmp.eq.s32.totalorder %s25, 1
      %p90 = por %p88, %p89
      %p92 = scmp.ne.s32.totalorder %s77, %s91
      %p93 = scmp.eq.s32.totalorder %s25, 0
      %p94 = por %p92, %p93
      %s96 = sadd.s32 %s95, 1
      %p99 = scmp.eq.s32.totalorder %s19, 1
      %p100 = scmp.ne.s32.totalorder %s95, %s97
      %p101 = scmp.eq.s32.totalorder %s19, 0
      %p102 = por %p100, %p101
      %p103 = scmp.ne.s32.totalorder %s95, %s97
      %p104 = scmp.eq.s32.totalorder %s24, 1
      %p105 = por %p103, %p104
      %p106 = scmp.ne.s32.totalorder %s97, %s98
      %p107 = scmp.eq.s32.totalorder %s24, 0
      %p108 = por %p106, %p107
      %p109 = scmp.ne.s32.totalorder %s97, %s98
      %p110 = scmp.eq.s32.totalorder %s25, 1
      %p111 = por %p109, %p110
      %p113 = scmp.ne.s32.totalorder %s98, %s112
      %p114 = scmp.eq.s32.totalorder %s25, 0
      %p115 = por %p113, %p114
      %s117 = sadd.s32 %s116, 1
      %p120 = scmp.eq.s32.totalorder %s19, 1
      %p121 = scmp.ne.s32.totalorder %s116, %s118
      %p122 = scmp.eq.s32.totalorder %s19, 0
      %p123 = por %p121, %p122
      %p124 = scmp.ne.s32.totalorder %s116, %s118
      %p125 = scmp.eq.s32.totalorder %s24, 1
      %p126 = por %p124, %p125
      %p127 = scmp.ne.s32.totalorder %s118, %s119
      %p128 = scmp.eq.s32.totalorder %s24, 0
      %p129 = por %p127, %p128
      %p130 = scmp.ne.s32.totalorder %s118, %s119
      %p131 = scmp.eq.s32.totalorder %s25, 1
      %p132 = por %p130, %p131
      %p134 = scmp.ne.s32.totalorder %s119, %s133
      %p135 = scmp.eq.s32.totalorder %s25, 0
      %p136 = por %p134, %p135
      %s138 = sadd.s32 %s137, 1
      %p141 = scmp.eq.s32.totalorder %s19, 1
      %p142 = scmp.ne.s32.totalorder %s137, %s139
      %p143 = scmp.eq.s32.totalorder %s19, 0
      %p144 = por %p142, %p143
      %p145 = scmp.ne.s32.totalorder %s137, %s139
      %p146 = scmp.eq.s32.totalorder %s24, 1
      %p147 = por %p145, %p146
      %p148 = scmp.ne.s32.totalorder %s139, %s140
      %p149 = scmp.eq.s32.totalorder %s24, 0
      %p150 = por %p148, %p149
      %p151 = scmp.ne.s32.totalorder %s139, %s140
      %p152 = scmp.eq.s32.totalorder %s25, 1
      %p153 = por %p151, %p152
      %p155 = scmp.ne.s32.totalorder %s140, %s154
      %p156 = scmp.eq.s32.totalorder %s25, 0
      %p157 = por %p155, %p156
      %s159 = sadd.s32 %s158, 1
      %p162 = scmp.eq.s32.totalorder %s19, 1
      %p163 = scmp.ne.s32.totalorder %s158, %s160
      %p164 = scmp.eq.s32.totalorder %s19, 0
      %p165 = por %p163, %p164
      %p166 = scmp.ne.s32.totalorder %s158, %s160
      %p167 = scmp.eq.s32.totalorder %s24, 1
      %p168 = por %p166, %p167
      %p169 = scmp.ne.s32.totalorder %s160, %s161
      %p170 = scmp.eq.s32.totalorder %s24, 0
      %p171 = por %p169, %p170
      %p172 = scmp.ne.s32.totalorder %s160, %s161
      %p173 = scmp.eq.s32.totalorder %s25, 1
      %p174 = por %p172, %p173
      %p176 = scmp.ne.s32.totalorder %s161, %s175
      %p177 = scmp.eq.s32.totalorder %s25, 0
      %p178 = por %p176, %p177
      %s179 = ssub.s32 %s19, %s26
      %p180 = scmp.eq.s32.totalorder %s179, 0
      %s182 = sadd.s32 %s181, 1
      %s183 = scalar_select %p180, %s181, %s182
      %p186 = pneg %p180
      %p187 = scmp.eq.s32.totalorder %s19, 1
      %p188 = por %p186, %p187
      %p189 = scmp.ne.s32.totalorder %s181, %s184
      %p190 = scmp.eq.s32.totalorder %s19, 0
      %p191 = por %p189, %p190
      %p192 = scmp.ne.s32.totalorder %s181, %s184
      %p193 = scmp.eq.s32.totalorder %s24, 1
      %p194 = por %p192, %p193
      %p195 = scmp.ne.s32.totalorder %s184, %s185
      %p196 = scmp.eq.s32.totalorder %s24, 0
      %p197 = por %p195, %p196
      %p198 = scmp.ne.s32.totalorder %s184, %s185
      %p199 = scmp.eq.s32.totalorder %s25, 1
      %p200 = por %p198, %p199
      %p202 = scmp.ne.s32.totalorder %s185, %s201
      %p203 = scmp.eq.s32.totalorder %s25, 0
      %p204 = por %p202, %p203
      %p205 = scmp.le.s32.totalorder 1, %s19
      %p206 = scmp.lt.s32.totalorder %s19, 3
      %p207 = pnand %p205, %p206
      %p208 = pneg %p207
      // Predicated region
      $region9: #{tpu_custom_call.1} parent=5 // pred_check
        _
      $region10: #{tpu_custom_call.1} parent=5 // pred_check_branch
        %210 = sbr.rel (%p207) target = $region12
      $region11: #{tpu_custom_call.1} parent=5 // pred_region
        %s211 = ssub.s32 %s19, 1
        // Predicated region
        $region13: #{tpu_custom_call.1} parent=11 // pred_check
          %p212 = pneg %p66
        $region14: #{tpu_custom_call.1} parent=11 // pred_check_branch
          %214 = sbr.rel (%p212) target = $region16
        $region15: #{tpu_custom_call.1} parent=11 // pred_region
          %216 = vsyncadd [#allocation5], 0
          %s217 = sshll.u32 %s1, 4
          %s218 = int_to_ptr.hbm [resolvable:$true] %s217
          %s219 = sshll.u32 [#allocation4], 4
          %s220 = int_to_ptr.vmem [resolvable:$true] %s219
          %225 = dma.hbm_to_vmem [thread:$0]  %s218, 4096, %s220, [#allocation5], 128, 128, 8
        $region16: #{tpu_custom_call.1} parent=11 // pred_fallthru
          _
        // Predicated region
        $region17: #{tpu_custom_call.1} parent=11 // pred_check
          %p226 = pneg %p87
        $region18: #{tpu_custom_call.1} parent=11 // pred_check_branch
          %228 = sbr.rel (%p226) target = $region20
        $region19: #{tpu_custom_call.1} parent=11 // pred_region
          %230 = vsyncadd [#allocation8], 0
          %s231 = sshll.u32 %s2, 4
          %s232 = int_to_ptr.hbm [resolvable:$true] %s231
          %s233 = sshll.u32 [#allocation7], 4
          %s234 = int_to_ptr.vmem [resolvable:$true] %s233
          %239 = dma.hbm_to_vmem [thread:$0]  %s232, 512, %s234, [#allocation8], 64, 64, 4
        $region20: #{tpu_custom_call.1} parent=11 // pred_fallthru
          _
        // Predicated region
        $region21: #{tpu_custom_call.1} parent=11 // pred_check
          %p240 = pneg %p108
        $region22: #{tpu_custom_call.1} parent=11 // pred_check_branch
          %242 = sbr.rel (%p240) target = $region24
        $region23: #{tpu_custom_call.1} parent=11 // pred_region
          %244 = vsyncadd [#allocation8], 0
          %s245 = sshll.u32 %s3, 4
          %s246 = int_to_ptr.hbm [resolvable:$true] %s245
          %s247 = sshll.u32 [#allocation9], 4
          %s248 = int_to_ptr.vmem [resolvable:$true] %s247
          %253 = dma.hbm_to_vmem [thread:$0]  %s246, 512, %s248, [#allocation8], 64, 64, 4
        $region24: #{tpu_custom_call.1} parent=11 // pred_fallthru
          _
        // Predicated region
        $region25: #{tpu_custom_call.1} parent=11 // pred_check
          %p254 = pneg %p129
        $region26: #{tpu_custom_call.1} parent=11 // pred_check_branch
          %256 = sbr.rel (%p254) target = $region28
        $region27: #{tpu_custom_call.1} parent=11 // pred_region
          _
        $region28: #{tpu_custom_call.1} parent=11 // pred_fallthru
          _
        // Predicated region
        $region29: #{tpu_custom_call.1} parent=11 // pred_check
          %p257 = pneg %p150
        $region30: #{tpu_custom_call.1} parent=11 // pred_check_branch
          %259 = sbr.rel (%p257) target = $region32
        $region31: #{tpu_custom_call.1} parent=11 // pred_region
          %261 = vsyncadd [#allocation11], 0
          %s262 = sshll.u32 %s5, 4
          %s263 = int_to_ptr.hbm [resolvable:$true] %s262
          %s264 = sshll.u32 [#allocation10], 4
          %s265 = int_to_ptr.vmem [resolvable:$true] %s264
          %270 = dma.hbm_to_vmem [thread:$0]  %s263, 768, %s265, [#allocation11], 256, 256, 16
        $region32: #{tpu_custom_call.1} parent=11 // pred_fallthru
          _
        // Predicated region
        $region33: #{tpu_custom_call.1} parent=11 // pred_check
          %p271 = pneg %p171
        $region34: #{tpu_custom_call.1} parent=11 // pred_check_branch
          %273 = sbr.rel (%p271) target = $region36
        $region35: #{tpu_custom_call.1} parent=11 // pred_region
          _
        $region36: #{tpu_custom_call.1} parent=11 // pred_fallthru
          _
      $region12: #{tpu_custom_call.1} parent=5 // pred_fallthru
        _
      %p274 = scmp.lt.s32.totalorder %s19, 2
      // Predicated region
      $region37: #{tpu_custom_call.1} parent=5 // pred_check
        %p275 = pneg %p274
      $region38: #{tpu_custom_call.1} parent=5 // pred_check_branch
        %277 = sbr.rel (%p275) target = $region40
      $region39: #{tpu_custom_call.1} parent=5 // pred_region
        // Predicated region
        $region41: #{tpu_custom_call.1} parent=39 // pred_check
          %p278 = pneg %p39
        $region42: #{tpu_custom_call.1} parent=39 // pred_check_branch
          %280 = sbr.rel (%p278) target = $region44
        $region43: #{tpu_custom_call.1} parent=39 // pred_region
          %p281 = scmp.lt.s32.totalorder %s19, 1
          %s282 = scalar_select %p281, %s19, 1
          %s283 = smul.addr %s282, 16
          %s284 = smul.addr %s283, 4
          %s285 = scalar_lea.vmem %s0, %s284
        $region44: #{tpu_custom_call.1} parent=39 // pred_fallthru
          _
      $region40: #{tpu_custom_call.1} parent=5 // pred_fallthru
        _
      %p286 = scmp.le.s32.totalorder 1, %s19
      %p287 = scmp.lt.s32.totalorder %s19, 3
      %p288 = pnand %p286, %p287
      %p289 = pneg %p288
      // Predicated region
      $region45: #{tpu_custom_call.1} parent=5 // pred_check
        _
      $region46: #{tpu_custom_call.1} parent=5 // pred_check_branch
        %291 = sbr.rel (%p288) target = $region48
      $region47: #{tpu_custom_call.1} parent=5 // pred_region
        %s292 = ssub.s32 %s19, 1
        // Predicated region
        $region49: #{tpu_custom_call.1} parent=47 // pred_check
          %p293 = pneg %p66
        $region50: #{tpu_custom_call.1} parent=47 // pred_check_branch
          %295 = sbr.rel (%p293) target = $region52
        $region51: #{tpu_custom_call.1} parent=47 // pred_region
          %297 = dma.done [#allocation5], 4096
        $region52: #{tpu_custom_call.1} parent=47 // pred_fallthru
          _
        // Predicated region
        $region53: #{tpu_custom_call.1} parent=47 // pred_check
          %p298 = pneg %p87
        $region54: #{tpu_custom_call.1} parent=47 // pred_check_branch
          %300 = sbr.rel (%p298) target = $region56
        $region55: #{tpu_custom_call.1} parent=47 // pred_region
          %302 = dma.done [#allocation8], 512
        $region56: #{tpu_custom_call.1} parent=47 // pred_fallthru
          _
        // Predicated region
        $region57: #{tpu_custom_call.1} parent=47 // pred_check
          %p303 = pneg %p108
        $region58: #{tpu_custom_call.1} parent=47 // pred_check_branch
          %305 = sbr.rel (%p303) target = $region60
        $region59: #{tpu_custom_call.1} parent=47 // pred_region
          %307 = dma.done [#allocation8], 512
        $region60: #{tpu_custom_call.1} parent=47 // pred_fallthru
          _
        // Predicated region
        $region61: #{tpu_custom_call.1} parent=47 // pred_check
          %p308 = pneg %p150
        $region62: #{tpu_custom_call.1} parent=47 // pred_check_branch
          %310 = sbr.rel (%p308) target = $region64
        $region63: #{tpu_custom_call.1} parent=47 // pred_region
          %312 = dma.done [#allocation11], 768
        $region64: #{tpu_custom_call.1} parent=47 // pred_fallthru
          _
        %p313 = scmp.lt.s32.totalorder %s24, 1
        %s314 = scalar_select %p313, %s24, 1
        %s315 = smul.addr %s314, 16
        %s316 = smul.addr %s315, 4
        %s317 = scalar_lea.vmem %s0, %s316
        %p318 = pneg %p45
        %p319 = pneg %p42
        %p320 = pneg %p66
        %p321 = pneg %p63
        %p322 = pneg %p87
        %p323 = pneg %p84
        %p324 = pneg %p108
        %p325 = pneg %p105
        %p326 = pneg %p129
        %p327 = pneg %p126
        %p328 = pneg %p150
        %p329 = pneg %p147
        %p330 = pneg %p171
        %p331 = pneg %p168
        %p332 = pneg %p197
        %p333 = pneg %p194
        %s334 = sand.u32 %s184, 1
        %s335 = scalar_lea.sflag [#allocation6], %s334
        %s336 = sand.u32 %s184, 1
        %s337 = smul.addr %s336, 128
        %s338 = scalar_lea.vmem [#allocation12], %s337
        %p339 = scmp.lt.s32.totalorder %s24, 1
        %s340 = scalar_select %p339, %s24, 1
        %s341 = smul.addr %s340, 16
        %s342 = smul.addr %s341, 4
        %s343 = scalar_lea.vmem %s0, %s342
        %v345 = vld [vmem:[%s343] sm:$0xff]
        %v346 = vld [vmem:[%s343 + $0x8] sm:$0xff]
        %v347 = vld [vmem:[%s343 + $0x10] sm:$0xff]
        %v348 = vld [vmem:[%s343 + $0x18] sm:$0xff]
        %v349 = vld [vmem:[%s343 + $0x20] sm:$0xff]
        %v350 = vld [vmem:[%s343 + $0x28] sm:$0xff]
        %v351 = vld [vmem:[%s343 + $0x30] sm:$0xff]
        %v352 = vld [vmem:[%s343 + $0x38] sm:$0xff]
        %v353 = vld [vmem:[#allocation4] sm:$0xff]
        %v354 = vld [vmem:[#allocation4 + $0x8] sm:$0xff]
        %v355 = vld [vmem:[#allocation4 + $0x10] sm:$0xff]
        %v356 = vld [vmem:[#allocation4 + $0x18] sm:$0xff]
        %v357 = vld [vmem:[#allocation4 + $0x20] sm:$0xff]
        %v358 = vld [vmem:[#allocation4 + $0x28] sm:$0xff]
        %v359 = vld [vmem:[#allocation4 + $0x30] sm:$0xff]
        %v360 = vld [vmem:[#allocation4 + $0x38] sm:$0xff]
        %v361 = vld [vmem:[#allocation4 + $0x40] sm:$0xff]
        %v362 = vld [vmem:[#allocation4 + $0x48] sm:$0xff]
        %v363 = vld [vmem:[#allocation4 + $0x50] sm:$0xff]
        %v364 = vld [vmem:[#allocation4 + $0x58] sm:$0xff]
        %v365 = vld [vmem:[#allocation4 + $0x60] sm:$0xff]
        %v366 = vld [vmem:[#allocation4 + $0x68] sm:$0xff]
        %v367 = vld [vmem:[#allocation4 + $0x70] sm:$0xff]
        %v368 = vld [vmem:[#allocation4 + $0x78] sm:$0xff]
        %v369 = vld [vmem:[#allocation4 + $0x80] sm:$0xff]
        %v370 = vld [vmem:[#allocation4 + $0x88] sm:$0xff]
        %v371 = vld [vmem:[#allocation4 + $0x90] sm:$0xff]
        %v372 = vld [vmem:[#allocation4 + $0x98] sm:$0xff]
        %v373 = vld [vmem:[#allocation4 + $0xa0] sm:$0xff]
        %v374 = vld [vmem:[#allocation4 + $0xa8] sm:$0xff]
        %v375 = vld [vmem:[#allocation4 + $0xb0] sm:$0xff]
        %v376 = vld [vmem:[#allocation4 + $0xb8] sm:$0xff]
        %v377 = vld [vmem:[#allocation4 + $0xc0] sm:$0xff]
        %v378 = vld [vmem:[#allocation4 + $0xc8] sm:$0xff]
        %v379 = vld [vmem:[#allocation4 + $0xd0] sm:$0xff]
        %v380 = vld [vmem:[#allocation4 + $0xd8] sm:$0xff]
        %v381 = vld [vmem:[#allocation4 + $0xe0] sm:$0xff]
        %v382 = vld [vmem:[#allocation4 + $0xe8] sm:$0xff]
        %v383 = vld [vmem:[#allocation4 + $0xf0] sm:$0xff]
        %v384 = vld [vmem:[#allocation4 + $0xf8] sm:$0xff]
        %v393 = vunpack.c.l.b16 %v345
        %v394 = vunpack.c.h.b16 %v345
        %v395 = vunpack.c.l.b16 %v346
        %v396 = vunpack.c.h.b16 %v346
        %v397 = vunpack.c.l.b16 %v347
        %v398 = vunpack.c.h.b16 %v347
        %v399 = vunpack.c.l.b16 %v348
        %v400 = vunpack.c.h.b16 %v348
        %v401 = vunpack.c.l.b16 %v349
        %v402 = vunpack.c.h.b16 %v349
        %v403 = vunpack.c.l.b16 %v350
        %v404 = vunpack.c.h.b16 %v350
        %v405 = vunpack.c.l.b16 %v351
        %v406 = vunpack.c.h.b16 %v351
        %v407 = vunpack.c.l.b16 %v352
        %v408 = vunpack.c.h.b16 %v352
        %v409 = vpack.c.b16 %v395, %v393
        %v410 = vpack.c.b16 %v396, %v394
        %v411 = vpack.c.b16 %v399, %v397
        %v412 = vpack.c.b16 %v400, %v398
        %v413 = vpack.c.b16 %v403, %v401
        %v414 = vpack.c.b16 %v404, %v402
        %v415 = vpack.c.b16 %v407, %v405
        %v416 = vpack.c.b16 %v408, %v406
        %v457 = vunpack.c.l.b16 %v353
        %v458 = vunpack.c.h.b16 %v353
        %v459 = vunpack.c.l.b16 %v354
        %v460 = vunpack.c.h.b16 %v354
        %v461 = vunpack.c.l.b16 %v355
        %v462 = vunpack.c.h.b16 %v355
        %v463 = vunpack.c.l.b16 %v356
        %v464 = vunpack.c.h.b16 %v356
        %v465 = vunpack.c.l.b16 %v357
        %v466 = vunpack.c.h.b16 %v357
        %v467 = vunpack.c.l.b16 %v358
        %v468 = vunpack.c.h.b16 %v358
        %v469 = vunpack.c.l.b16 %v359
        %v470 = vunpack.c.h.b16 %v359
        %v471 = vunpack.c.l.b16 %v360
        %v472 = vunpack.c.h.b16 %v360
        %v473 = vunpack.c.l.b16 %v361
        %v474 = vunpack.c.h.b16 %v361
        %v475 = vunpack.c.l.b16 %v362
        %v476 = vunpack.c.h.b16 %v362
        %v477 = vunpack.c.l.b16 %v363
        %v478 = vunpack.c.h.b16 %v363
        %v479 = vunpack.c.l.b16 %v364
        %v480 = vunpack.c.h.b16 %v364
        %v481 = vunpack.c.l.b16 %v365
        %v482 = vunpack.c.h.b16 %v365
        %v483 = vunpack.c.l.b16 %v366
        %v484 = vunpack.c.h.b16 %v366
        %v485 = vunpack.c.l.b16 %v367
        %v486 = vunpack.c.h.b16 %v367
        %v487 = vunpack.c.l.b16 %v368
        %v488 = vunpack.c.h.b16 %v368
        %v489 = vunpack.c.l.b16 %v369
        %v490 = vunpack.c.h.b16 %v369
        %v491 = vunpack.c.l.b16 %v370
        %v492 = vunpack.c.h.b16 %v370
        %v493 = vunpack.c.l.b16 %v371
        %v494 = vunpack.c.h.b16 %v371
        %v495 = vunpack.c.l.b16 %v372
        %v496 = vunpack.c.h.b16 %v372
        %v497 = vunpack.c.l.b16 %v373
        %v498 = vunpack.c.h.b16 %v373
        %v499 = vunpack.c.l.b16 %v374
        %v500 = vunpack.c.h.b16 %v374
        %v501 = vunpack.c.l.b16 %v375
        %v502 = vunpack.c.h.b16 %v375
        %v503 = vunpack.c.l.b16 %v376
        %v504 = vunpack.c.h.b16 %v376
        %v505 = vunpack.c.l.b16 %v377
        %v506 = vunpack.c.h.b16 %v377
        %v507 = vunpack.c.l.b16 %v378
        %v508 = vunpack.c.h.b16 %v378
        %v509 = vunpack.c.l.b16 %v379
        %v510 = vunpack.c.h.b16 %v379
        %v511 = vunpack.c.l.b16 %v380
        %v512 = vunpack.c.h.b16 %v380
        %v513 = vunpack.c.l.b16 %v381
        %v514 = vunpack.c.h.b16 %v381
        %v515 = vunpack.c.l.b16 %v382
        %v516 = vunpack.c.h.b16 %v382
        %v517 = vunpack.c.l.b16 %v383
        %v518 = vunpack.c.h.b16 %v383
        %v519 = vunpack.c.l.b16 %v384
        %v520 = vunpack.c.h.b16 %v384
        %v521 = vpack.c.b16 %v459, %v457
        %v522 = vpack.c.b16 %v460, %v458
        %v523 = vpack.c.b16 %v463, %v461
        %v524 = vpack.c.b16 %v464, %v462
        %v525 = vpack.c.b16 %v467, %v465
        %v526 = vpack.c.b16 %v468, %v466
        %v527 = vpack.c.b16 %v471, %v469
        %v528 = vpack.c.b16 %v472, %v470
        %v529 = vpack.c.b16 %v475, %v473
        %v530 = vpack.c.b16 %v476, %v474
        %v531 = vpack.c.b16 %v479, %v477
        %v532 = vpack.c.b16 %v480, %v478
        %v533 = vpack.c.b16 %v483, %v481
        %v534 = vpack.c.b16 %v484, %v482
        %v535 = vpack.c.b16 %v487, %v485
        %v536 = vpack.c.b16 %v488, %v486
        %v537 = vpack.c.b16 %v491, %v489
        %v538 = vpack.c.b16 %v492, %v490
        %v539 = vpack.c.b16 %v495, %v493
        %v540 = vpack.c.b16 %v496, %v494
        %v541 = vpack.c.b16 %v499, %v497
        %v542 = vpack.c.b16 %v500, %v498
        %v543 = vpack.c.b16 %v503, %v501
        %v544 = vpack.c.b16 %v504, %v502
        %v545 = vpack.c.b16 %v507, %v505
        %v546 = vpack.c.b16 %v508, %v506
        %v547 = vpack.c.b16 %v511, %v509
        %v548 = vpack.c.b16 %v512, %v510
        %v549 = vpack.c.b16 %v515, %v513
        %v550 = vpack.c.b16 %v516, %v514
        %v551 = vpack.c.b16 %v519, %v517
        %v552 = vpack.c.b16 %v520, %v518
        %585 = vmatpush.bf16.msra.mxu0 %v535
        %586 = vmatpush.bf16.msra.mxu0 %v533
        %587 = vmatpush.bf16.msra.mxu0 %v531
        %588 = vmatpush.bf16.msra.mxu0 %v529
        %589 = vmatpush.bf16.msra.mxu0 %v527
        %590 = vmatpush.bf16.msra.mxu0 %v525
        %591 = vmatpush.bf16.msra.mxu0 %v523
        %592 = vmatpush.bf16.msra.mxu0 %v521
        %593 = vmatmul.bf16.gmra.mxu0 %v409
        %v594 = vpop.f32.mrf.mxu0
        %v595 = vadd.f32 0.0, %v594
        %v596 = vpop.f32.mrf.mxu0
        %v597 = vadd.f32 0.0, %v596
        %598 = vmatmul.bf16.gmra.mxu0 %v411
        %v599 = vpop.f32.mrf.mxu0
        %v600 = vadd.f32 0.0, %v599
        %v601 = vpop.f32.mrf.mxu0
        %v602 = vadd.f32 0.0, %v601
        %603 = vmatmul.bf16.gmra.mxu0 %v413
        %v604 = vpop.f32.mrf.mxu0
        %v605 = vadd.f32 0.0, %v604
        %v606 = vpop.f32.mrf.mxu0
        %v607 = vadd.f32 0.0, %v606
        %608 = vmatmul.bf16.gmra.mxu0 %v415
        %v609 = vpop.f32.mrf.mxu0
        %v610 = vadd.f32 0.0, %v609
        %v611 = vpop.f32.mrf.mxu0
        %v612 = vadd.f32 0.0, %v611
        %613 = vdwg.mxu0
        %614 = vmatpush.bf16.msra.mxu0 %v551
        %615 = vmatpush.bf16.msra.mxu0 %v549
        %616 = vmatpush.bf16.msra.mxu0 %v547
        %617 = vmatpush.bf16.msra.mxu0 %v545
        %618 = vmatpush.bf16.msra.mxu0 %v543
        %619 = vmatpush.bf16.msra.mxu0 %v541
        %620 = vmatpush.bf16.msra.mxu0 %v539
        %621 = vmatpush.bf16.msra.mxu0 %v537
        %622 = vmatmul.bf16.gmra.mxu0 %v410
        %v623 = vpop.f32.mrf.mxu0
        %v624 = vadd.f32 %v595, %v623
        %v625 = vpop.f32.mrf.mxu0
        %v626 = vadd.f32 %v597, %v625
        %627 = vmatmul.bf16.gmra.mxu0 %v412
        %v628 = vpop.f32.mrf.mxu0
        %v629 = vadd.f32 %v600, %v628
        %v630 = vpop.f32.mrf.mxu0
        %v631 = vadd.f32 %v602, %v630
        %632 = vmatmul.bf16.gmra.mxu0 %v414
        %v633 = vpop.f32.mrf.mxu0
        %v634 = vadd.f32 %v605, %v633
        %v635 = vpop.f32.mrf.mxu0
        %v636 = vadd.f32 %v607, %v635
        %637 = vmatmul.bf16.gmra.mxu0 %v416
        %v638 = vpop.f32.mrf.mxu0
        %v639 = vadd.f32 %v610, %v638
        %v640 = vpop.f32.mrf.mxu0
        %v641 = vadd.f32 %v612, %v640
        %642 = vdwg.mxu0
        %643 = vmatpush.bf16.msra.mxu0 %v536
        %644 = vmatpush.bf16.msra.mxu0 %v534
        %645 = vmatpush.bf16.msra.mxu0 %v532
        %646 = vmatpush.bf16.msra.mxu0 %v530
        %647 = vmatpush.bf16.msra.mxu0 %v528
        %648 = vmatpush.bf16.msra.mxu0 %v526
        %649 = vmatpush.bf16.msra.mxu0 %v524
        %650 = vmatpush.bf16.msra.mxu0 %v522
        %651 = vmatmul.bf16.gmra.mxu0 %v409
        %v652 = vpop.f32.mrf.mxu0
        %v653 = vadd.f32 0.0, %v652
        %v654 = vpop.f32.mrf.mxu0
        %v655 = vadd.f32 0.0, %v654
        %656 = vmatmul.bf16.gmra.mxu0 %v411
        %v657 = vpop.f32.mrf.mxu0
        %v658 = vadd.f32 0.0, %v657
        %v659 = vpop.f32.mrf.mxu0
        %v660 = vadd.f32 0.0, %v659
        %661 = vmatmul.bf16.gmra.mxu0 %v413
        %v662 = vpop.f32.mrf.mxu0
        %v663 = vadd.f32 0.0, %v662
        %v664 = vpop.f32.mrf.mxu0
        %v665 = vadd.f32 0.0, %v664
        %666 = vmatmul.bf16.gmra.mxu0 %v415
        %v667 = vpop.f32.mrf.mxu0
        %v668 = vadd.f32 0.0, %v667
        %v669 = vpop.f32.mrf.mxu0
        %v670 = vadd.f32 0.0, %v669
        %671 = vdwg.mxu0
        %672 = vmatpush.bf16.msra.mxu0 %v552
        %673 = vmatpush.bf16.msra.mxu0 %v550
        %674 = vmatpush.bf16.msra.mxu0 %v548
        %675 = vmatpush.bf16.msra.mxu0 %v546
        %676 = vmatpush.bf16.msra.mxu0 %v544
        %677 = vmatpush.bf16.msra.mxu0 %v542
        %678 = vmatpush.bf16.msra.mxu0 %v540
        %679 = vmatpush.bf16.msra.mxu0 %v538
        %680 = vmatmul.bf16.gmra.mxu0 %v410
        %v681 = vpop.f32.mrf.mxu0
        %v682 = vadd.f32 %v653, %v681
        %v683 = vpop.f32.mrf.mxu0
        %v684 = vadd.f32 %v655, %v683
        %685 = vmatmul.bf16.gmra.mxu0 %v412
        %v686 = vpop.f32.mrf.mxu0
        %v687 = vadd.f32 %v658, %v686
        %v688 = vpop.f32.mrf.mxu0
        %v689 = vadd.f32 %v660, %v688
        %690 = vmatmul.bf16.gmra.mxu0 %v414
        %v691 = vpop.f32.mrf.mxu0
        %v692 = vadd.f32 %v663, %v691
        %v693 = vpop.f32.mrf.mxu0
        %v694 = vadd.f32 %v665, %v693
        %695 = vmatmul.bf16.gmra.mxu0 %v416
        %v696 = vpop.f32.mrf.mxu0
        %v697 = vadd.f32 %v668, %v696
        %v698 = vpop.f32.mrf.mxu0
        %v699 = vadd.f32 %v670, %v698
        %700 = vdwg.mxu0
        %v701 = vld [vmem:[#allocation7] sm:$0xf]
        %v702 = vld [vmem:[#allocation7 + $0x4] sm:$0xf]
        %v703 = vld [vmem:[#allocation7 + $0x8] sm:$0xf]
        %v704 = vld [vmem:[#allocation7 + $0xc] sm:$0xf]
        %v705 = vld [vmem:[#allocation7 + $0x10] sm:$0xf]
        %v706 = vld [vmem:[#allocation7 + $0x14] sm:$0xf]
        %v707 = vld [vmem:[#allocation7 + $0x18] sm:$0xf]
        %v708 = vld [vmem:[#allocation7 + $0x1c] sm:$0xf]
        %v709 = vpack.c.bf16 %v626, %v624
        %v710 = vpack.c.bf16 %v684, %v682
        %v711 = vpack.c.bf16 %v631, %v629
        %v712 = vpack.c.bf16 %v689, %v687
        %v713 = vpack.c.bf16 %v636, %v634
        %v714 = vpack.c.bf16 %v694, %v692
        %v715 = vpack.c.bf16 %v641, %v639
        %v716 = vpack.c.bf16 %v699, %v697
        %v717 = vld [vmem:[%s6] sm:$0xff]
        %v718 = vld [vmem:[%s6 + $0x8] sm:$0xff]
        %v719 = vld [vmem:[%s6 + $0x10] sm:$0xff]
        %v720 = vld [vmem:[%s6 + $0x18] sm:$0xff]
        %v721 = vld [vmem:[%s6 + $0x20] sm:$0xff]
        %v722 = vld [vmem:[%s6 + $0x28] sm:$0xff]
        %v723 = vld [vmem:[%s6 + $0x30] sm:$0xff]
        %v724 = vld [vmem:[%s6 + $0x38] sm:$0xff]
        %726 = vset.pattern.permute.xlu0 0
        %727 = vperm.xlu0 %726, %v717
        %v728 = vpop.permute.xlu0 %727
        %731 = vset.pattern.permute.xlu0 0
        %732 = vperm.xlu0 %731, %v718
        %v733 = vpop.permute.xlu0 %732
        %736 = vset.pattern.permute.xlu0 0
        %737 = vperm.xlu0 %736, %v719
        %v738 = vpop.permute.xlu0 %737
        %741 = vset.pattern.permute.xlu0 0
        %742 = vperm.xlu0 %741, %v720
        %v743 = vpop.permute.xlu0 %742
        %746 = vset.pattern.permute.xlu0 0
        %747 = vperm.xlu0 %746, %v721
        %v748 = vpop.permute.xlu0 %747
        %751 = vset.pattern.permute.xlu0 0
        %752 = vperm.xlu0 %751, %v722
        %v753 = vpop.permute.xlu0 %752
        %756 = vset.pattern.permute.xlu0 0
        %757 = vperm.xlu0 %756, %v723
        %v758 = vpop.permute.xlu0 %757
        %761 = vset.pattern.permute.xlu0 0
        %762 = vperm.xlu0 %761, %v724
        %v763 = vpop.permute.xlu0 %762
        %v773 = vunpack.c.l.b16 %v701
        %v774 = vunpack.c.l.b16 %v702
        %v775 = vunpack.c.l.b16 %v703
        %v776 = vunpack.c.l.b16 %v704
        %v777 = vunpack.c.l.b16 %v705
        %v778 = vunpack.c.l.b16 %v706
        %v779 = vunpack.c.l.b16 %v707
        %v780 = vunpack.c.l.b16 %v708
        %v781 = vpack.c.b16 %v774, %v773
        %v782 = vpack.c.b16 %v776, %v775
        %v783 = vpack.c.b16 %v778, %v777
        %v784 = vpack.c.b16 %v780, %v779
        %vm785 = vcmask 523264
        %v787 = vsel %vm785, %v781, 0
        %v790 = vsel %vm785, %v782, 0
        %v793 = vsel %vm785, %v783, 0
        %v796 = vsel %vm785, %v784, 0
        %798 = vmatpush.bf16.msra.mxu0 0
        %799 = vmatpush.bf16.msra.mxu0 0
        %800 = vmatpush.bf16.msra.mxu0 0
        %801 = vmatpush.bf16.msra.mxu0 0
        %802 = vmatpush.bf16.msra.mxu0 %v715
        %803 = vmatpush.bf16.msra.mxu0 %v713
        %804 = vmatpush.bf16.msra.mxu0 %v711
        %805 = vmatpush.bf16.msra.mxu0 %v709
        %806 = vmatmul.bf16.gmra.mxu0 %v787
        %v807 = vpop.f32.mrf.mxu0
        %v808 = vadd.f32 %v728, %v807
        %v809 = vpop.f32.mrf.mxu0
        %v810 = vadd.f32 %v733, %v809
        %811 = vmatmul.bf16.gmra.mxu0 %v790
        %v812 = vpop.f32.mrf.mxu0
        %v813 = vadd.f32 %v738, %v812
        %v814 = vpop.f32.mrf.mxu0
        %v815 = vadd.f32 %v743, %v814
        %816 = vmatmul.bf16.gmra.mxu0 %v793
        %v817 = vpop.f32.mrf.mxu0
        %v818 = vadd.f32 %v748, %v817
        %v819 = vpop.f32.mrf.mxu0
        %v820 = vadd.f32 %v753, %v819
        %821 = vmatmul.bf16.gmra.mxu0 %v796
        %v822 = vpop.f32.mrf.mxu0
        %v823 = vadd.f32 %v758, %v822
        %v824 = vpop.f32.mrf.mxu0
        %v825 = vadd.f32 %v763, %v824
        %826 = vdwg.mxu0
        %827 = vmatpush.bf16.msra.mxu0 0
        %828 = vmatpush.bf16.msra.mxu0 0
        %829 = vmatpush.bf16.msra.mxu0 0
        %830 = vmatpush.bf16.msra.mxu0 0
        %831 = vmatpush.bf16.msra.mxu0 %v716
        %832 = vmatpush.bf16.msra.mxu0 %v714
        %833 = vmatpush.bf16.msra.mxu0 %v712
        %834 = vmatpush.bf16.msra.mxu0 %v710
        %835 = vmatmul.bf16.gmra.mxu0 %v787
        %v836 = vpop.f32.mrf.mxu0
        %v837 = vadd.f32 %v728, %v836
        %v838 = vpop.f32.mrf.mxu0
        %v839 = vadd.f32 %v733, %v838
        %840 = vmatmul.bf16.gmra.mxu0 %v790
        %v841 = vpop.f32.mrf.mxu0
        %v842 = vadd.f32 %v738, %v841
        %v843 = vpop.f32.mrf.mxu0
        %v844 = vadd.f32 %v743, %v843
        %845 = vmatmul.bf16.gmra.mxu0 %v793
        %v846 = vpop.f32.mrf.mxu0
        %v847 = vadd.f32 %v748, %v846
        %v848 = vpop.f32.mrf.mxu0
        %v849 = vadd.f32 %v753, %v848
        %850 = vmatmul.bf16.gmra.mxu0 %v796
        %v851 = vpop.f32.mrf.mxu0
        %v852 = vadd.f32 %v758, %v851
        %v853 = vpop.f32.mrf.mxu0
        %v854 = vadd.f32 %v763, %v853
        %855 = vdwg.mxu0
        %v856 = vmul.f32 %v808, 0.5
        %v857 = vmul.f32 %v837, 0.5
        %v858 = vmul.f32 %v810, 0.5
        %v859 = vmul.f32 %v839, 0.5
        %v860 = vmul.f32 %v813, 0.5
        %v861 = vmul.f32 %v842, 0.5
        %v862 = vmul.f32 %v815, 0.5
        %v863 = vmul.f32 %v844, 0.5
        %v864 = vmul.f32 %v818, 0.5
        %v865 = vmul.f32 %v847, 0.5
        %v866 = vmul.f32 %v820, 0.5
        %v867 = vmul.f32 %v849, 0.5
        %v868 = vmul.f32 %v823, 0.5
        %v869 = vmul.f32 %v852, 0.5
        %v870 = vmul.f32 %v825, 0.5
        %v871 = vmul.f32 %v854, 0.5
        %v872 = vtanh.pop %v856
        %v873 = vtanh.pop %v857
        %v874 = vtanh.pop %v858
        %v875 = vtanh.pop %v859
        %v876 = vtanh.pop %v860
        %v877 = vtanh.pop %v861
        %v878 = vtanh.pop %v862
        %v879 = vtanh.pop %v863
        %v880 = vtanh.pop %v864
        %v881 = vtanh.pop %v865
        %v882 = vtanh.pop %v866
        %v883 = vtanh.pop %v867
        %v884 = vtanh.pop %v868
        %v885 = vtanh.pop %v869
        %v886 = vtanh.pop %v870
        %v887 = vtanh.pop %v871
        %v888 = vadd.f32 %v872, 1.0
        %v889 = vadd.f32 %v873, 1.0
        %v890 = vadd.f32 %v874, 1.0
        %v891 = vadd.f32 %v875, 1.0
        %v892 = vadd.f32 %v876, 1.0
        %v893 = vadd.f32 %v877, 1.0
        %v894 = vadd.f32 %v878, 1.0
        %v895 = vadd.f32 %v879, 1.0
        %v896 = vadd.f32 %v880, 1.0
        %v897 = vadd.f32 %v881, 1.0
        %v898 = vadd.f32 %v882, 1.0
        %v899 = vadd.f32 %v883, 1.0
        %v900 = vadd.f32 %v884, 1.0
        %v901 = vadd.f32 %v885, 1.0
        %v902 = vadd.f32 %v886, 1.0
        %v903 = vadd.f32 %v887, 1.0
        %v904 = vmul.f32 %v888, 0.5
        %v905 = vmul.f32 %v889, 0.5
        %v906 = vmul.f32 %v890, 0.5
        %v907 = vmul.f32 %v891, 0.5
        %v908 = vmul.f32 %v892, 0.5
        %v909 = vmul.f32 %v893, 0.5
        %v910 = vmul.f32 %v894, 0.5
        %v911 = vmul.f32 %v895, 0.5
        %v912 = vmul.f32 %v896, 0.5
        %v913 = vmul.f32 %v897, 0.5
        %v914 = vmul.f32 %v898, 0.5
        %v915 = vmul.f32 %v899, 0.5
        %v916 = vmul.f32 %v900, 0.5
        %v917 = vmul.f32 %v901, 0.5
        %v918 = vmul.f32 %v902, 0.5
        %v919 = vmul.f32 %v903, 0.5
        %v920 = vmul.f32 %v808, %v904
        %v921 = vmul.f32 %v837, %v905
        %v922 = vmul.f32 %v810, %v906
        %v923 = vmul.f32 %v839, %v907
        %v924 = vmul.f32 %v813, %v908
        %v925 = vmul.f32 %v842, %v909
        %v926 = vmul.f32 %v815, %v910
        %v927 = vmul.f32 %v844, %v911
        %v928 = vmul.f32 %v818, %v912
        %v929 = vmul.f32 %v847, %v913
        %v930 = vmul.f32 %v820, %v914
        %v931 = vmul.f32 %v849, %v915
        %v932 = vmul.f32 %v823, %v916
        %v933 = vmul.f32 %v852, %v917
        %v934 = vmul.f32 %v825, %v918
        %v935 = vmul.f32 %v854, %v919
        %936 = vst [vmem:[#allocation2] sm:$0xff] %v920
        %937 = vst [vmem:[#allocation2 + $0x8] sm:$0xff] %v921
        %938 = vst [vmem:[#allocation2 + $0x10] sm:$0xff] %v922
        %939 = vst [vmem:[#allocation2 + $0x18] sm:$0xff] %v923
        %940 = vst [vmem:[#allocation2 + $0x20] sm:$0xff] %v924
        %941 = vst [vmem:[#allocation2 + $0x28] sm:$0xff] %v925
        %942 = vst [vmem:[#allocation2 + $0x30] sm:$0xff] %v926
        %943 = vst [vmem:[#allocation2 + $0x38] sm:$0xff] %v927
        %944 = vst [vmem:[#allocation2 + $0x40] sm:$0xff] %v928
        %945 = vst [vmem:[#allocation2 + $0x48] sm:$0xff] %v929
        %946 = vst [vmem:[#allocation2 + $0x50] sm:$0xff] %v930
        %947 = vst [vmem:[#allocation2 + $0x58] sm:$0xff] %v931
        %948 = vst [vmem:[#allocation2 + $0x60] sm:$0xff] %v932
        %949 = vst [vmem:[#allocation2 + $0x68] sm:$0xff] %v933
        %950 = vst [vmem:[#allocation2 + $0x70] sm:$0xff] %v934
        %951 = vst [vmem:[#allocation2 + $0x78] sm:$0xff] %v935
        %s952 = smul.u32 0, 2
        %s953 = smul.addr %s952, 8
        %s954 = scalar_lea.vmem [#allocation2], %s953
        %v955 = vld [vmem:[%s954] sm:$0xff]
        %v956 = vld [vmem:[%s954 + $0x8] sm:$0xff]
        %v957 = vld [vmem:[%s954 + $0x10] sm:$0xff]
        %v958 = vld [vmem:[%s954 + $0x18] sm:$0xff]
        %v959 = vld [vmem:[%s954 + $0x20] sm:$0xff]
        %v960 = vld [vmem:[%s954 + $0x28] sm:$0xff]
        %v961 = vld [vmem:[%s954 + $0x30] sm:$0xff]
        %v962 = vld [vmem:[%s954 + $0x38] sm:$0xff]
        %v963 = vld [vmem:[%s4] sm:$0xff]
        %v964 = vld [vmem:[%s4 + $0x8] sm:$0xff]
        %v965 = vld [vmem:[%s4 + $0x10] sm:$0xff]
        %v966 = vld [vmem:[%s4 + $0x18] sm:$0xff]
        %968 = vset.pattern.permute.xlu0 5
        %969 = vperm.xlu0 %968, %v963
        %v970 = vpop.permute.xlu0 %969
        %973 = vset.pattern.permute.xlu0 5
        %974 = vperm.xlu0 %973, %v964
        %v975 = vpop.permute.xlu0 %974
        %978 = vset.pattern.permute.xlu0 5
        %979 = vperm.xlu0 %978, %v965
        %v980 = vpop.permute.xlu0 %979
        %983 = vset.pattern.permute.xlu0 5
        %984 = vperm.xlu0 %983, %v966
        %v985 = vpop.permute.xlu0 %984
        %v987 = vmul.f32 %v955, %v970
        %v988 = vmul.f32 %v956, %v970
        %v989 = vmul.f32 %v957, %v975
        %v990 = vmul.f32 %v958, %v975
        %v991 = vmul.f32 %v959, %v980
        %v992 = vmul.f32 %v960, %v980
        %v993 = vmul.f32 %v961, %v985
        %v994 = vmul.f32 %v962, %v985
        %995 = vrot.lane.b32.xlu0 %v955, 5
        %v996 = vpop.permute.xlu0 %995
        %997 = vrot.lane.b32.xlu0 %v957, 5
        %v998 = vpop.permute.xlu0 %997
        %999 = vrot.lane.b32.xlu0 %v959, 5
        %v1000 = vpop.permute.xlu0 %999
        %1001 = vrot.lane.b32.xlu0 %v961, 5
        %v1002 = vpop.permute.xlu0 %1001
        %1003 = vrot.lane.b32.xlu0 %v956, 5
        %v1004 = vpop.permute.xlu0 %1003
        %1005 = vrot.lane.b32.xlu0 %v958, 5
        %v1006 = vpop.permute.xlu0 %1005
        %1007 = vrot.lane.b32.xlu0 %v960, 5
        %v1008 = vpop.permute.xlu0 %1007
        %1009 = vrot.lane.b32.xlu0 %v962, 5
        %v1010 = vpop.permute.xlu0 %1009
        %v1011 = vlaneseq
        %v1012 = vand.u32 %v1011, 127
        %vm1013 = vcmp.lt.s32.totalorder %v1012, 5
        %v1014 = vsel %vm1013, %v996, %v1004
        %v1015 = vsel %vm1013, %v998, %v1006
        %v1016 = vsel %vm1013, %v1000, %v1008
        %v1017 = vsel %vm1013, %v1002, %v1010
        %v1018 = vsel %vm1013, %v1004, %v996
        %v1019 = vsel %vm1013, %v1006, %v998
        %v1020 = vsel %vm1013, %v1008, %v1000
        %v1021 = vsel %vm1013, %v1010, %v1002
        %v1022 = vld [vmem:[#allocation10] ss:$8 sm:$0x3]
        %v1024 = vperm.slane %v1022, 0
        %v1025 = vperm.slane %v1022, 1
        %1028 = vset.pattern.permute.xlu0 0
        %1029 = vperm.xlu0 %1028, %v963
        %v1030 = vpop.permute.xlu0 %1029
        %1032 = vset.pattern.permute.xlu0 0
        %1033 = vperm.xlu0 %1032, %v964
        %v1034 = vpop.permute.xlu0 %1033
        %1036 = vset.pattern.permute.xlu0 0
        %1037 = vperm.xlu0 %1036, %v965
        %v1038 = vpop.permute.xlu0 %1037
        %1040 = vset.pattern.permute.xlu0 0
        %1041 = vperm.xlu0 %1040, %v966
        %v1042 = vpop.permute.xlu0 %1041
        %v1044 = vmul.f32 %v1024, %v1030
        %v1045 = vmul.f32 %v1025, %v1030
        %v1046 = vmul.f32 %v1024, %v1034
        %v1047 = vmul.f32 %v1025, %v1034
        %v1048 = vmul.f32 %v1024, %v1038
        %v1049 = vmul.f32 %v1025, %v1038
        %v1050 = vmul.f32 %v1024, %v1042
        %v1051 = vmul.f32 %v1025, %v1042
        %v1052 = vmul.f32 %v1018, %v1044
        %v1053 = vmul.f32 %v1014, %v1045
        %v1054 = vmul.f32 %v1019, %v1046
        %v1055 = vmul.f32 %v1015, %v1047
        %v1056 = vmul.f32 %v1020, %v1048
        %v1057 = vmul.f32 %v1016, %v1049
        %v1058 = vmul.f32 %v1021, %v1050
        %v1059 = vmul.f32 %v1017, %v1051
        %v1060 = vadd.f32 %v987, %v1052
        %v1061 = vadd.f32 %v988, %v1053
        %v1062 = vadd.f32 %v989, %v1054
        %v1063 = vadd.f32 %v990, %v1055
        %v1064 = vadd.f32 %v991, %v1056
        %v1065 = vadd.f32 %v992, %v1057
        %v1066 = vadd.f32 %v993, %v1058
        %v1067 = vadd.f32 %v994, %v1059
        %1068 = vrot.lane.b32.xlu0 %v955, 4
        %v1069 = vpop.permute.xlu0 %1068
        %1070 = vrot.lane.b32.xlu0 %v957, 4
        %v1071 = vpop.permute.xlu0 %1070
        %1072 = vrot.lane.b32.xlu0 %v959, 4
        %v1073 = vpop.permute.xlu0 %1072
        %1074 = vrot.lane.b32.xlu0 %v961, 4
        %v1075 = vpop.permute.xlu0 %1074
        %1076 = vrot.lane.b32.xlu0 %v956, 4
        %v1077 = vpop.permute.xlu0 %1076
        %1078 = vrot.lane.b32.xlu0 %v958, 4
        %v1079 = vpop.permute.xlu0 %1078
        %1080 = vrot.lane.b32.xlu0 %v960, 4
        %v1081 = vpop.permute.xlu0 %1080
        %1082 = vrot.lane.b32.xlu0 %v962, 4
        %v1083 = vpop.permute.xlu0 %1082
        %vm1084 = vcmp.lt.s32.totalorder %v1012, 4
        %v1085 = vsel %vm1084, %v1069, %v1077
        %v1086 = vsel %vm1084, %v1071, %v1079
        %v1087 = vsel %vm1084, %v1073, %v1081
        %v1088 = vsel %vm1084, %v1075, %v1083
        %v1089 = vsel %vm1084, %v1077, %v1069
        %v1090 = vsel %vm1084, %v1079, %v1071
        %v1091 = vsel %vm1084, %v1081, %v1073
        %v1092 = vsel %vm1084, %v1083, %v1075
        %s1093 = scalar_lea.vmem [#allocation10], 1
        %v1094 = vld [vmem:[%s1093] ss:$8 sm:$0x3]
        %v1096 = vperm.slane %v1094, 0
        %v1097 = vperm.slane %v1094, 1
        %1100 = vset.pattern.permute.xlu0 1
        %1101 = vperm.xlu0 %1100, %v963
        %v1102 = vpop.permute.xlu0 %1101
        %1104 = vset.pattern.permute.xlu0 1
        %1105 = vperm.xlu0 %1104, %v964
        %v1106 = vpop.permute.xlu0 %1105
        %1108 = vset.pattern.permute.xlu0 1
        %1109 = vperm.xlu0 %1108, %v965
        %v1110 = vpop.permute.xlu0 %1109
        %1112 = vset.pattern.permute.xlu0 1
        %1113 = vperm.xlu0 %1112, %v966
        %v1114 = vpop.permute.xlu0 %1113
        %v1116 = vmul.f32 %v1096, %v1102
        %v1117 = vmul.f32 %v1097, %v1102
        %v1118 = vmul.f32 %v1096, %v1106
        %v1119 = vmul.f32 %v1097, %v1106
        %v1120 = vmul.f32 %v1096, %v1110
        %v1121 = vmul.f32 %v1097, %v1110
        %v1122 = vmul.f32 %v1096, %v1114
        %v1123 = vmul.f32 %v1097, %v1114
        %v1124 = vmul.f32 %v1089, %v1116
        %v1125 = vmul.f32 %v1085, %v1117
        %v1126 = vmul.f32 %v1090, %v1118
        %v1127 = vmul.f32 %v1086, %v1119
        %v1128 = vmul.f32 %v1091, %v1120
        %v1129 = vmul.f32 %v1087, %v1121
        %v1130 = vmul.f32 %v1092, %v1122
        %v1131 = vmul.f32 %v1088, %v1123
        %v1132 = vadd.f32 %v1060, %v1124
        %v1133 = vadd.f32 %v1061, %v1125
        %v1134 = vadd.f32 %v1062, %v1126
        %v1135 = vadd.f32 %v1063, %v1127
        %v1136 = vadd.f32 %v1064, %v1128
        %v1137 = vadd.f32 %v1065, %v1129
        %v1138 = vadd.f32 %v1066, %v1130
        %v1139 = vadd.f32 %v1067, %v1131
        %1140 = vrot.lane.b32.xlu0 %v955, 3
        %v1141 = vpop.permute.xlu0 %1140
        %1142 = vrot.lane.b32.xlu0 %v957, 3
        %v1143 = vpop.permute.xlu0 %1142
        %1144 = vrot.lane.b32.xlu0 %v959, 3
        %v1145 = vpop.permute.xlu0 %1144
        %1146 = vrot.lane.b32.xlu0 %v961, 3
        %v1147 = vpop.permute.xlu0 %1146
        %1148 = vrot.lane.b32.xlu0 %v956, 3
        %v1149 = vpop.permute.xlu0 %1148
        %1150 = vrot.lane.b32.xlu0 %v958, 3
        %v1151 = vpop.permute.xlu0 %1150
        %1152 = vrot.lane.b32.xlu0 %v960, 3
        %v1153 = vpop.permute.xlu0 %1152
        %1154 = vrot.lane.b32.xlu0 %v962, 3
        %v1155 = vpop.permute.xlu0 %1154
        %vm1156 = vcmp.lt.s32.totalorder %v1012, 3
        %v1157 = vsel %vm1156, %v1141, %v1149
        %v1158 = vsel %vm1156, %v1143, %v1151
        %v1159 = vsel %vm1156, %v1145, %v1153
        %v1160 = vsel %vm1156, %v1147, %v1155
        %v1161 = vsel %vm1156, %v1149, %v1141
        %v1162 = vsel %vm1156, %v1151, %v1143
        %v1163 = vsel %vm1156, %v1153, %v1145
        %v1164 = vsel %vm1156, %v1155, %v1147
        %s1165 = scalar_lea.vmem [#allocation10], 2
        %v1166 = vld [vmem:[%s1165] ss:$8 sm:$0x3]
        %v1168 = vperm.slane %v1166, 0
        %v1169 = vperm.slane %v1166, 1
        %1172 = vset.pattern.permute.xlu0 2
        %1173 = vperm.xlu0 %1172, %v963
        %v1174 = vpop.permute.xlu0 %1173
        %1176 = vset.pattern.permute.xlu0 2
        %1177 = vperm.xlu0 %1176, %v964
        %v1178 = vpop.permute.xlu0 %1177
        %1180 = vset.pattern.permute.xlu0 2
        %1181 = vperm.xlu0 %1180, %v965
        %v1182 = vpop.permute.xlu0 %1181
        %1184 = vset.pattern.permute.xlu0 2
        %1185 = vperm.xlu0 %1184, %v966
        %v1186 = vpop.permute.xlu0 %1185
        %v1188 = vmul.f32 %v1168, %v1174
        %v1189 = vmul.f32 %v1169, %v1174
        %v1190 = vmul.f32 %v1168, %v1178
        %v1191 = vmul.f32 %v1169, %v1178
        %v1192 = vmul.f32 %v1168, %v1182
        %v1193 = vmul.f32 %v1169, %v1182
        %v1194 = vmul.f32 %v1168, %v1186
        %v1195 = vmul.f32 %v1169, %v1186
        %v1196 = vmul.f32 %v1161, %v1188
        %v1197 = vmul.f32 %v1157, %v1189
        %v1198 = vmul.f32 %v1162, %v1190
        %v1199 = vmul.f32 %v1158, %v1191
        %v1200 = vmul.f32 %v1163, %v1192
        %v1201 = vmul.f32 %v1159, %v1193
        %v1202 = vmul.f32 %v1164, %v1194
        %v1203 = vmul.f32 %v1160, %v1195
        %v1204 = vadd.f32 %v1132, %v1196
        %v1205 = vadd.f32 %v1133, %v1197
        %v1206 = vadd.f32 %v1134, %v1198
        %v1207 = vadd.f32 %v1135, %v1199
        %v1208 = vadd.f32 %v1136, %v1200
        %v1209 = vadd.f32 %v1137, %v1201
        %v1210 = vadd.f32 %v1138, %v1202
        %v1211 = vadd.f32 %v1139, %v1203
        %1212 = vrot.lane.b32.xlu0 %v955, 2
        %v1213 = vpop.permute.xlu0 %1212
        %1214 = vrot.lane.b32.xlu0 %v957, 2
        %v1215 = vpop.permute.xlu0 %1214
        %1216 = vrot.lane.b32.xlu0 %v959, 2
        %v1217 = vpop.permute.xlu0 %1216
        %1218 = vrot.lane.b32.xlu0 %v961, 2
        %v1219 = vpop.permute.xlu0 %1218
        %1220 = vrot.lane.b32.xlu0 %v956, 2
        %v1221 = vpop.permute.xlu0 %1220
        %1222 = vrot.lane.b32.xlu0 %v958, 2
        %v1223 = vpop.permute.xlu0 %1222
        %1224 = vrot.lane.b32.xlu0 %v960, 2
        %v1225 = vpop.permute.xlu0 %1224
        %1226 = vrot.lane.b32.xlu0 %v962, 2
        %v1227 = vpop.permute.xlu0 %1226
        %vm1228 = vcmp.lt.s32.totalorder %v1012, 2
        %v1229 = vsel %vm1228, %v1213, %v1221
        %v1230 = vsel %vm1228, %v1215, %v1223
        %v1231 = vsel %vm1228, %v1217, %v1225
        %v1232 = vsel %vm1228, %v1219, %v1227
        %v1233 = vsel %vm1228, %v1221, %v1213
        %v1234 = vsel %vm1228, %v1223, %v1215
        %v1235 = vsel %vm1228, %v1225, %v1217
        %v1236 = vsel %vm1228, %v1227, %v1219
        %s1237 = scalar_lea.vmem [#allocation10], 3
        %v1238 = vld [vmem:[%s1237] ss:$8 sm:$0x3]
        %v1240 = vperm.slane %v1238, 0
        %v1241 = vperm.slane %v1238, 1
        %1244 = vset.pattern.permute.xlu0 3
        %1245 = vperm.xlu0 %1244, %v963
        %v1246 = vpop.permute.xlu0 %1245
        %1248 = vset.pattern.permute.xlu0 3
        %1249 = vperm.xlu0 %1248, %v964
        %v1250 = vpop.permute.xlu0 %1249
        %1252 = vset.pattern.permute.xlu0 3
        %1253 = vperm.xlu0 %1252, %v965
        %v1254 = vpop.permute.xlu0 %1253
        %1256 = vset.pattern.permute.xlu0 3
        %1257 = vperm.xlu0 %1256, %v966
        %v1258 = vpop.permute.xlu0 %1257
        %v1260 = vmul.f32 %v1240, %v1246
        %v1261 = vmul.f32 %v1241, %v1246
        %v1262 = vmul.f32 %v1240, %v1250
        %v1263 = vmul.f32 %v1241, %v1250
        %v1264 = vmul.f32 %v1240, %v1254
        %v1265 = vmul.f32 %v1241, %v1254
        %v1266 = vmul.f32 %v1240, %v1258
        %v1267 = vmul.f32 %v1241, %v1258
        %v1268 = vmul.f32 %v1233, %v1260
        %v1269 = vmul.f32 %v1229, %v1261
        %v1270 = vmul.f32 %v1234, %v1262
        %v1271 = vmul.f32 %v1230, %v1263
        %v1272 = vmul.f32 %v1235, %v1264
        %v1273 = vmul.f32 %v1231, %v1265
        %v1274 = vmul.f32 %v1236, %v1266
        %v1275 = vmul.f32 %v1232, %v1267
        %v1276 = vadd.f32 %v1204, %v1268
        %v1277 = vadd.f32 %v1205, %v1269
        %v1278 = vadd.f32 %v1206, %v1270
        %v1279 = vadd.f32 %v1207, %v1271
        %v1280 = vadd.f32 %v1208, %v1272
        %v1281 = vadd.f32 %v1209, %v1273
        %v1282 = vadd.f32 %v1210, %v1274
        %v1283 = vadd.f32 %v1211, %v1275
        %1284 = vrot.lane.b32.xlu0 %v955, 1
        %v1285 = vpop.permute.xlu0 %1284
        %1286 = vrot.lane.b32.xlu0 %v957, 1
        %v1287 = vpop.permute.xlu0 %1286
        %1288 = vrot.lane.b32.xlu0 %v959, 1
        %v1289 = vpop.permute.xlu0 %1288
        %1290 = vrot.lane.b32.xlu0 %v961, 1
        %v1291 = vpop.permute.xlu0 %1290
        %1292 = vrot.lane.b32.xlu0 %v956, 1
        %v1293 = vpop.permute.xlu0 %1292
        %1294 = vrot.lane.b32.xlu0 %v958, 1
        %v1295 = vpop.permute.xlu0 %1294
        %1296 = vrot.lane.b32.xlu0 %v960, 1
        %v1297 = vpop.permute.xlu0 %1296
        %1298 = vrot.lane.b32.xlu0 %v962, 1
        %v1299 = vpop.permute.xlu0 %1298
        %vm1300 = vcmp.lt.s32.totalorder %v1012, 1
        %v1301 = vsel %vm1300, %v1285, %v1293
        %v1302 = vsel %vm1300, %v1287, %v1295
        %v1303 = vsel %vm1300, %v1289, %v1297
        %v1304 = vsel %vm1300, %v1291, %v1299
        %v1305 = vsel %vm1300, %v1293, %v1285
        %v1306 = vsel %vm1300, %v1295, %v1287
        %v1307 = vsel %vm1300, %v1297, %v1289
        %v1308 = vsel %vm1300, %v1299, %v1291
        %s1309 = scalar_lea.vmem [#allocation10], 4
        %v1310 = vld [vmem:[%s1309] ss:$8 sm:$0x3]
        %v1312 = vperm.slane %v1310, 0
        %v1313 = vperm.slane %v1310, 1
        %1316 = vset.pattern.permute.xlu0 4
        %1317 = vperm.xlu0 %1316, %v963
        %v1318 = vpop.permute.xlu0 %1317
        %1320 = vset.pattern.permute.xlu0 4
        %1321 = vperm.xlu0 %1320, %v964
        %v1322 = vpop.permute.xlu0 %1321
        %1324 = vset.pattern.permute.xlu0 4
        %1325 = vperm.xlu0 %1324, %v965
        %v1326 = vpop.permute.xlu0 %1325
        %1328 = vset.pattern.permute.xlu0 4
        %1329 = vperm.xlu0 %1328, %v966
        %v1330 = vpop.permute.xlu0 %1329
        %v1332 = vmul.f32 %v1312, %v1318
        %v1333 = vmul.f32 %v1313, %v1318
        %v1334 = vmul.f32 %v1312, %v1322
        %v1335 = vmul.f32 %v1313, %v1322
        %v1336 = vmul.f32 %v1312, %v1326
        %v1337 = vmul.f32 %v1313, %v1326
        %v1338 = vmul.f32 %v1312, %v1330
        %v1339 = vmul.f32 %v1313, %v1330
        %v1340 = vmul.f32 %v1305, %v1332
        %v1341 = vmul.f32 %v1301, %v1333
        %v1342 = vmul.f32 %v1306, %v1334
        %v1343 = vmul.f32 %v1302, %v1335
        %v1344 = vmul.f32 %v1307, %v1336
        %v1345 = vmul.f32 %v1303, %v1337
        %v1346 = vmul.f32 %v1308, %v1338
        %v1347 = vmul.f32 %v1304, %v1339
        %v1348 = vadd.f32 %v1276, %v1340
        %v1349 = vadd.f32 %v1277, %v1341
        %v1350 = vadd.f32 %v1278, %v1342
        %v1351 = vadd.f32 %v1279, %v1343
        %v1352 = vadd.f32 %v1280, %v1344
        %v1353 = vadd.f32 %v1281, %v1345
        %v1354 = vadd.f32 %v1282, %v1346
        %v1355 = vadd.f32 %v1283, %v1347
        %1356 = vrot.lane.b32.xlu0 %v955, 127
        %v1357 = vpop.permute.xlu0 %1356
        %1358 = vrot.lane.b32.xlu0 %v957, 127
        %v1359 = vpop.permute.xlu0 %1358
        %1360 = vrot.lane.b32.xlu0 %v959, 127
        %v1361 = vpop.permute.xlu0 %1360
        %1362 = vrot.lane.b32.xlu0 %v961, 127
        %v1363 = vpop.permute.xlu0 %1362
        %1364 = vrot.lane.b32.xlu0 %v956, 127
        %v1365 = vpop.permute.xlu0 %1364
        %1366 = vrot.lane.b32.xlu0 %v958, 127
        %v1367 = vpop.permute.xlu0 %1366
        %1368 = vrot.lane.b32.xlu0 %v960, 127
        %v1369 = vpop.permute.xlu0 %1368
        %1370 = vrot.lane.b32.xlu0 %v962, 127
        %v1371 = vpop.permute.xlu0 %1370
        %vm1372 = vcmp.lt.s32.totalorder %v1012, 127
        %v1373 = vsel %vm1372, %v1357, %v1365
        %v1374 = vsel %vm1372, %v1359, %v1367
        %v1375 = vsel %vm1372, %v1361, %v1369
        %v1376 = vsel %vm1372, %v1363, %v1371
        %v1377 = vsel %vm1372, %v1365, %v1357
        %v1378 = vsel %vm1372, %v1367, %v1359
        %v1379 = vsel %vm1372, %v1369, %v1361
        %v1380 = vsel %vm1372, %v1371, %v1363
        %s1381 = scalar_lea.vmem [#allocation10], 6
        %v1382 = vld [vmem:[%s1381] ss:$8 sm:$0x3]
        %v1384 = vperm.slane %v1382, 0
        %v1385 = vperm.slane %v1382, 1
        %1388 = vset.pattern.permute.xlu0 6
        %1389 = vperm.xlu0 %1388, %v963
        %v1390 = vpop.permute.xlu0 %1389
        %1392 = vset.pattern.permute.xlu0 6
        %1393 = vperm.xlu0 %1392, %v964
        %v1394 = vpop.permute.xlu0 %1393
        %1396 = vset.pattern.permute.xlu0 6
        %1397 = vperm.xlu0 %1396, %v965
        %v1398 = vpop.permute.xlu0 %1397
        %1400 = vset.pattern.permute.xlu0 6
        %1401 = vperm.xlu0 %1400, %v966
        %v1402 = vpop.permute.xlu0 %1401
        %v1404 = vmul.f32 %v1384, %v1390
        %v1405 = vmul.f32 %v1385, %v1390
        %v1406 = vmul.f32 %v1384, %v1394
        %v1407 = vmul.f32 %v1385, %v1394
        %v1408 = vmul.f32 %v1384, %v1398
        %v1409 = vmul.f32 %v1385, %v1398
        %v1410 = vmul.f32 %v1384, %v1402
        %v1411 = vmul.f32 %v1385, %v1402
        %v1412 = vmul.f32 %v1373, %v1404
        %v1413 = vmul.f32 %v1377, %v1405
        %v1414 = vmul.f32 %v1374, %v1406
        %v1415 = vmul.f32 %v1378, %v1407
        %v1416 = vmul.f32 %v1375, %v1408
        %v1417 = vmul.f32 %v1379, %v1409
        %v1418 = vmul.f32 %v1376, %v1410
        %v1419 = vmul.f32 %v1380, %v1411
        %v1420 = vadd.f32 %v1348, %v1412
        %v1421 = vadd.f32 %v1349, %v1413
        %v1422 = vadd.f32 %v1350, %v1414
        %v1423 = vadd.f32 %v1351, %v1415
        %v1424 = vadd.f32 %v1352, %v1416
        %v1425 = vadd.f32 %v1353, %v1417
        %v1426 = vadd.f32 %v1354, %v1418
        %v1427 = vadd.f32 %v1355, %v1419
        %1428 = vrot.lane.b32.xlu0 %v955, 126
        %v1429 = vpop.permute.xlu0 %1428
        %1430 = vrot.lane.b32.xlu0 %v957, 126
        %v1431 = vpop.permute.xlu0 %1430
        %1432 = vrot.lane.b32.xlu0 %v959, 126
        %v1433 = vpop.permute.xlu0 %1432
        %1434 = vrot.lane.b32.xlu0 %v961, 126
        %v1435 = vpop.permute.xlu0 %1434
        %1436 = vrot.lane.b32.xlu0 %v956, 126
        %v1437 = vpop.permute.xlu0 %1436
        %1438 = vrot.lane.b32.xlu0 %v958, 126
        %v1439 = vpop.permute.xlu0 %1438
        %1440 = vrot.lane.b32.xlu0 %v960, 126
        %v1441 = vpop.permute.xlu0 %1440
        %1442 = vrot.lane.b32.xlu0 %v962, 126
        %v1443 = vpop.permute.xlu0 %1442
        %vm1444 = vcmp.lt.s32.totalorder %v1012, 126
        %v1445 = vsel %vm1444, %v1429, %v1437
        %v1446 = vsel %vm1444, %v1431, %v1439
        %v1447 = vsel %vm1444, %v1433, %v1441
        %v1448 = vsel %vm1444, %v1435, %v1443
        %v1449 = vsel %vm1444, %v1437, %v1429
        %v1450 = vsel %vm1444, %v1439, %v1431
        %v1451 = vsel %vm1444, %v1441, %v1433
        %v1452 = vsel %vm1444, %v1443, %v1435
        %s1453 = scalar_lea.vmem [#allocation10], 7
        %v1454 = vld [vmem:[%s1453] ss:$8 sm:$0x3]
        %v1456 = vperm.slane %v1454, 0
        %v1457 = vperm.slane %v1454, 1
        %1460 = vset.pattern.permute.xlu0 7
        %1461 = vperm.xlu0 %1460, %v963
        %v1462 = vpop.permute.xlu0 %1461
        %1464 = vset.pattern.permute.xlu0 7
        %1465 = vperm.xlu0 %1464, %v964
        %v1466 = vpop.permute.xlu0 %1465
        %1468 = vset.pattern.permute.xlu0 7
        %1469 = vperm.xlu0 %1468, %v965
        %v1470 = vpop.permute.xlu0 %1469
        %1472 = vset.pattern.permute.xlu0 7
        %1473 = vperm.xlu0 %1472, %v966
        %v1474 = vpop.permute.xlu0 %1473
        %v1476 = vmul.f32 %v1456, %v1462
        %v1477 = vmul.f32 %v1457, %v1462
        %v1478 = vmul.f32 %v1456, %v1466
        %v1479 = vmul.f32 %v1457, %v1466
        %v1480 = vmul.f32 %v1456, %v1470
        %v1481 = vmul.f32 %v1457, %v1470
        %v1482 = vmul.f32 %v1456, %v1474
        %v1483 = vmul.f32 %v1457, %v1474
        %v1484 = vmul.f32 %v1445, %v1476
        %v1485 = vmul.f32 %v1449, %v1477
        %v1486 = vmul.f32 %v1446, %v1478
        %v1487 = vmul.f32 %v1450, %v1479
        %v1488 = vmul.f32 %v1447, %v1480
        %v1489 = vmul.f32 %v1451, %v1481
        %v1490 = vmul.f32 %v1448, %v1482
        %v1491 = vmul.f32 %v1452, %v1483
        %v1492 = vadd.f32 %v1420, %v1484
        %v1493 = vadd.f32 %v1421, %v1485
        %v1494 = vadd.f32 %v1422, %v1486
        %v1495 = vadd.f32 %v1423, %v1487
        %v1496 = vadd.f32 %v1424, %v1488
        %v1497 = vadd.f32 %v1425, %v1489
        %v1498 = vadd.f32 %v1426, %v1490
        %v1499 = vadd.f32 %v1427, %v1491
        %1500 = vrot.lane.b32.xlu0 %v955, 125
        %v1501 = vpop.permute.xlu0 %1500
        %1502 = vrot.lane.b32.xlu0 %v957, 125
        %v1503 = vpop.permute.xlu0 %1502
        %1504 = vrot.lane.b32.xlu0 %v959, 125
        %v1505 = vpop.permute.xlu0 %1504
        %1506 = vrot.lane.b32.xlu0 %v961, 125
        %v1507 = vpop.permute.xlu0 %1506
        %1508 = vrot.lane.b32.xlu0 %v956, 125
        %v1509 = vpop.permute.xlu0 %1508
        %1510 = vrot.lane.b32.xlu0 %v958, 125
        %v1511 = vpop.permute.xlu0 %1510
        %1512 = vrot.lane.b32.xlu0 %v960, 125
        %v1513 = vpop.permute.xlu0 %1512
        %1514 = vrot.lane.b32.xlu0 %v962, 125
        %v1515 = vpop.permute.xlu0 %1514
        %vm1516 = vcmp.lt.s32.totalorder %v1012, 125
        %v1517 = vsel %vm1516, %v1501, %v1509
        %v1518 = vsel %vm1516, %v1503, %v1511
        %v1519 = vsel %vm1516, %v1505, %v1513
        %v1520 = vsel %vm1516, %v1507, %v1515
        %v1521 = vsel %vm1516, %v1509, %v1501
        %v1522 = vsel %vm1516, %v1511, %v1503
        %v1523 = vsel %vm1516, %v1513, %v1505
        %v1524 = vsel %vm1516, %v1515, %v1507
        %s1525 = scalar_lea.vmem [#allocation10], 16
        %v1526 = vld [vmem:[%s1525] ss:$8 sm:$0x3]
        %v1528 = vperm.slane %v1526, 0
        %v1529 = vperm.slane %v1526, 1
        %1532 = vset.pattern.permute.xlu0 8
        %1533 = vperm.xlu0 %1532, %v963
        %v1534 = vpop.permute.xlu0 %1533
        %1536 = vset.pattern.permute.xlu0 8
        %1537 = vperm.xlu0 %1536, %v964
        %v1538 = vpop.permute.xlu0 %1537
        %1540 = vset.pattern.permute.xlu0 8
        %1541 = vperm.xlu0 %1540, %v965
        %v1542 = vpop.permute.xlu0 %1541
        %1544 = vset.pattern.permute.xlu0 8
        %1545 = vperm.xlu0 %1544, %v966
        %v1546 = vpop.permute.xlu0 %1545
        %v1548 = vmul.f32 %v1528, %v1534
        %v1549 = vmul.f32 %v1529, %v1534
        %v1550 = vmul.f32 %v1528, %v1538
        %v1551 = vmul.f32 %v1529, %v1538
        %v1552 = vmul.f32 %v1528, %v1542
        %v1553 = vmul.f32 %v1529, %v1542
        %v1554 = vmul.f32 %v1528, %v1546
        %v1555 = vmul.f32 %v1529, %v1546
        %v1556 = vmul.f32 %v1517, %v1548
        %v1557 = vmul.f32 %v1521, %v1549
        %v1558 = vmul.f32 %v1518, %v1550
        %v1559 = vmul.f32 %v1522, %v1551
        %v1560 = vmul.f32 %v1519, %v1552
        %v1561 = vmul.f32 %v1523, %v1553
        %v1562 = vmul.f32 %v1520, %v1554
        %v1563 = vmul.f32 %v1524, %v1555
        %v1564 = vadd.f32 %v1492, %v1556
        %v1565 = vadd.f32 %v1493, %v1557
        %v1566 = vadd.f32 %v1494, %v1558
        %v1567 = vadd.f32 %v1495, %v1559
        %v1568 = vadd.f32 %v1496, %v1560
        %v1569 = vadd.f32 %v1497, %v1561
        %v1570 = vadd.f32 %v1498, %v1562
        %v1571 = vadd.f32 %v1499, %v1563
        %1572 = vrot.lane.b32.xlu0 %v955, 124
        %v1573 = vpop.permute.xlu0 %1572
        %1574 = vrot.lane.b32.xlu0 %v957, 124
        %v1575 = vpop.permute.xlu0 %1574
        %1576 = vrot.lane.b32.xlu0 %v959, 124
        %v1577 = vpop.permute.xlu0 %1576
        %1578 = vrot.lane.b32.xlu0 %v961, 124
        %v1579 = vpop.permute.xlu0 %1578
        %1580 = vrot.lane.b32.xlu0 %v956, 124
        %v1581 = vpop.permute.xlu0 %1580
        %1582 = vrot.lane.b32.xlu0 %v958, 124
        %v1583 = vpop.permute.xlu0 %1582
        %1584 = vrot.lane.b32.xlu0 %v960, 124
        %v1585 = vpop.permute.xlu0 %1584
        %1586 = vrot.lane.b32.xlu0 %v962, 124
        %v1587 = vpop.permute.xlu0 %1586
        %vm1588 = vcmp.lt.s32.totalorder %v1012, 124
        %v1589 = vsel %vm1588, %v1573, %v1581
        %v1590 = vsel %vm1588, %v1575, %v1583
        %v1591 = vsel %vm1588, %v1577, %v1585
        %v1592 = vsel %vm1588, %v1579, %v1587
        %v1593 = vsel %vm1588, %v1581, %v1573
        %v1594 = vsel %vm1588, %v1583, %v1575
        %v1595 = vsel %vm1588, %v1585, %v1577
        %v1596 = vsel %vm1588, %v1587, %v1579
        %s1597 = scalar_lea.vmem [#allocation10], 17
        %v1598 = vld [vmem:[%s1597] ss:$8 sm:$0x3]
        %v1600 = vperm.slane %v1598, 0
        %v1601 = vperm.slane %v1598, 1
        %1604 = vset.pattern.permute.xlu0 9
        %1605 = vperm.xlu0 %1604, %v963
        %v1606 = vpop.permute.xlu0 %1605
        %1608 = vset.pattern.permute.xlu0 9
        %1609 = vperm.xlu0 %1608, %v964
        %v1610 = vpop.permute.xlu0 %1609
        %1612 = vset.pattern.permute.xlu0 9
        %1613 = vperm.xlu0 %1612, %v965
        %v1614 = vpop.permute.xlu0 %1613
        %1616 = vset.pattern.permute.xlu0 9
        %1617 = vperm.xlu0 %1616, %v966
        %v1618 = vpop.permute.xlu0 %1617
        %v1620 = vmul.f32 %v1600, %v1606
        %v1621 = vmul.f32 %v1601, %v1606
        %v1622 = vmul.f32 %v1600, %v1610
        %v1623 = vmul.f32 %v1601, %v1610
        %v1624 = vmul.f32 %v1600, %v1614
        %v1625 = vmul.f32 %v1601, %v1614
        %v1626 = vmul.f32 %v1600, %v1618
        %v1627 = vmul.f32 %v1601, %v1618
        %v1628 = vmul.f32 %v1589, %v1620
        %v1629 = vmul.f32 %v1593, %v1621
        %v1630 = vmul.f32 %v1590, %v1622
        %v1631 = vmul.f32 %v1594, %v1623
        %v1632 = vmul.f32 %v1591, %v1624
        %v1633 = vmul.f32 %v1595, %v1625
        %v1634 = vmul.f32 %v1592, %v1626
        %v1635 = vmul.f32 %v1596, %v1627
        %v1636 = vadd.f32 %v1564, %v1628
        %v1637 = vadd.f32 %v1565, %v1629
        %v1638 = vadd.f32 %v1566, %v1630
        %v1639 = vadd.f32 %v1567, %v1631
        %v1640 = vadd.f32 %v1568, %v1632
        %v1641 = vadd.f32 %v1569, %v1633
        %v1642 = vadd.f32 %v1570, %v1634
        %v1643 = vadd.f32 %v1571, %v1635
        %1644 = vrot.lane.b32.xlu0 %v955, 123
        %v1645 = vpop.permute.xlu0 %1644
        %1646 = vrot.lane.b32.xlu0 %v957, 123
        %v1647 = vpop.permute.xlu0 %1646
        %1648 = vrot.lane.b32.xlu0 %v959, 123
        %v1649 = vpop.permute.xlu0 %1648
        %1650 = vrot.lane.b32.xlu0 %v961, 123
        %v1651 = vpop.permute.xlu0 %1650
        %1652 = vrot.lane.b32.xlu0 %v956, 123
        %v1653 = vpop.permute.xlu0 %1652
        %1654 = vrot.lane.b32.xlu0 %v958, 123
        %v1655 = vpop.permute.xlu0 %1654
        %1656 = vrot.lane.b32.xlu0 %v960, 123
        %v1657 = vpop.permute.xlu0 %1656
        %1658 = vrot.lane.b32.xlu0 %v962, 123
        %v1659 = vpop.permute.xlu0 %1658
        %vm1660 = vcmp.lt.s32.totalorder %v1012, 123
        %v1661 = vsel %vm1660, %v1645, %v1653
        %v1662 = vsel %vm1660, %v1647, %v1655
        %v1663 = vsel %vm1660, %v1649, %v1657
        %v1664 = vsel %vm1660, %v1651, %v1659
        %v1665 = vsel %vm1660, %v1653, %v1645
        %v1666 = vsel %vm1660, %v1655, %v1647
        %v1667 = vsel %vm1660, %v1657, %v1649
        %v1668 = vsel %vm1660, %v1659, %v1651
        %s1669 = scalar_lea.vmem [#allocation10], 18
        %v1670 = vld [vmem:[%s1669] ss:$8 sm:$0x3]
        %v1672 = vperm.slane %v1670, 0
        %v1673 = vperm.slane %v1670, 1
        %1676 = vset.pattern.permute.xlu0 10
        %1677 = vperm.xlu0 %1676, %v963
        %v1678 = vpop.permute.xlu0 %1677
        %1680 = vset.pattern.permute.xlu0 10
        %1681 = vperm.xlu0 %1680, %v964
        %v1682 = vpop.permute.xlu0 %1681
        %1684 = vset.pattern.permute.xlu0 10
        %1685 = vperm.xlu0 %1684, %v965
        %v1686 = vpop.permute.xlu0 %1685
        %1688 = vset.pattern.permute.xlu0 10
        %1689 = vperm.xlu0 %1688, %v966
        %v1690 = vpop.permute.xlu0 %1689
        %v1692 = vmul.f32 %v1672, %v1678
        %v1693 = vmul.f32 %v1673, %v1678
        %v1694 = vmul.f32 %v1672, %v1682
        %v1695 = vmul.f32 %v1673, %v1682
        %v1696 = vmul.f32 %v1672, %v1686
        %v1697 = vmul.f32 %v1673, %v1686
        %v1698 = vmul.f32 %v1672, %v1690
        %v1699 = vmul.f32 %v1673, %v1690
        %v1700 = vmul.f32 %v1661, %v1692
        %v1701 = vmul.f32 %v1665, %v1693
        %v1702 = vmul.f32 %v1662, %v1694
        %v1703 = vmul.f32 %v1666, %v1695
        %v1704 = vmul.f32 %v1663, %v1696
        %v1705 = vmul.f32 %v1667, %v1697
        %v1706 = vmul.f32 %v1664, %v1698
        %v1707 = vmul.f32 %v1668, %v1699
        %v1708 = vadd.f32 %v1636, %v1700
        %v1709 = vadd.f32 %v1637, %v1701
        %v1710 = vadd.f32 %v1638, %v1702
        %v1711 = vadd.f32 %v1639, %v1703
        %v1712 = vadd.f32 %v1640, %v1704
        %v1713 = vadd.f32 %v1641, %v1705
        %v1714 = vadd.f32 %v1642, %v1706
        %v1715 = vadd.f32 %v1643, %v1707
        %v1716 = vld [vmem:[%s6] sm:$0xff]
        %v1717 = vld [vmem:[%s6 + $0x8] sm:$0xff]
        %v1718 = vld [vmem:[%s6 + $0x10] sm:$0xff]
        %v1719 = vld [vmem:[%s6 + $0x18] sm:$0xff]
        %1721 = vset.pattern.permute.xlu0 1
        %1722 = vperm.xlu0 %1721, %v1716
        %v1723 = vpop.permute.xlu0 %1722
        %1726 = vset.pattern.permute.xlu0 1
        %1727 = vperm.xlu0 %1726, %v1717
        %v1728 = vpop.permute.xlu0 %1727
        %1731 = vset.pattern.permute.xlu0 1
        %1732 = vperm.xlu0 %1731, %v1718
        %v1733 = vpop.permute.xlu0 %1732
        %1736 = vset.pattern.permute.xlu0 1
        %1737 = vperm.xlu0 %1736, %v1719
        %v1738 = vpop.permute.xlu0 %1737
        %v1740 = vadd.f32 %v1708, %v1723
        %v1741 = vadd.f32 %v1709, %v1723
        %v1742 = vadd.f32 %v1710, %v1728
        %v1743 = vadd.f32 %v1711, %v1728
        %v1744 = vadd.f32 %v1712, %v1733
        %v1745 = vadd.f32 %v1713, %v1733
        %v1746 = vadd.f32 %v1714, %v1738
        %v1747 = vadd.f32 %v1715, %v1738
        %s1748 = smul.addr %s952, 8
        %s1749 = scalar_lea.vmem [#allocation3], %s1748
        %1750 = vst [vmem:[%s1749] sm:$0xff] %v1740
        %1751 = vst [vmem:[%s1749 + $0x8] sm:$0xff] %v1741
        %1752 = vst [vmem:[%s1749 + $0x10] sm:$0xff] %v1742
        %1753 = vst [vmem:[%s1749 + $0x18] sm:$0xff] %v1743
        %1754 = vst [vmem:[%s1749 + $0x20] sm:$0xff] %v1744
        %1755 = vst [vmem:[%s1749 + $0x28] sm:$0xff] %v1745
        %1756 = vst [vmem:[%s1749 + $0x30] sm:$0xff] %v1746
        %1757 = vst [vmem:[%s1749 + $0x38] sm:$0xff] %v1747
        %s1758 = smul.u32 4, 2
        %s1759 = smul.addr %s1758, 8
        %s1760 = scalar_lea.vmem [#allocation2], %s1759
        %v1761 = vld [vmem:[%s1760] sm:$0xff]
        %v1762 = vld [vmem:[%s1760 + $0x8] sm:$0xff]
        %v1763 = vld [vmem:[%s1760 + $0x10] sm:$0xff]
        %v1764 = vld [vmem:[%s1760 + $0x18] sm:$0xff]
        %v1765 = vld [vmem:[%s1760 + $0x20] sm:$0xff]
        %v1766 = vld [vmem:[%s1760 + $0x28] sm:$0xff]
        %v1767 = vld [vmem:[%s1760 + $0x30] sm:$0xff]
        %v1768 = vld [vmem:[%s1760 + $0x38] sm:$0xff]
        %s1769 = scalar_lea.vmem %s4, 32
        %v1770 = vld [vmem:[%s1769] sm:$0xff]
        %v1771 = vld [vmem:[%s1769 + $0x8] sm:$0xff]
        %v1772 = vld [vmem:[%s1769 + $0x10] sm:$0xff]
        %v1773 = vld [vmem:[%s1769 + $0x18] sm:$0xff]
        %1775 = vset.pattern.permute.xlu0 5
        %1776 = vperm.xlu0 %1775, %v1770
        %v1777 = vpop.permute.xlu0 %1776
        %1780 = vset.pattern.permute.xlu0 5
        %1781 = vperm.xlu0 %1780, %v1771
        %v1782 = vpop.permute.xlu0 %1781
        %1785 = vset.pattern.permute.xlu0 5
        %1786 = vperm.xlu0 %1785, %v1772
        %v1787 = vpop.permute.xlu0 %1786
        %1790 = vset.pattern.permute.xlu0 5
        %1791 = vperm.xlu0 %1790, %v1773
        %v1792 = vpop.permute.xlu0 %1791
        %v1794 = vmul.f32 %v1761, %v1777
        %v1795 = vmul.f32 %v1762, %v1777
        %v1796 = vmul.f32 %v1763, %v1782
        %v1797 = vmul.f32 %v1764, %v1782
        %v1798 = vmul.f32 %v1765, %v1787
        %v1799 = vmul.f32 %v1766, %v1787
        %v1800 = vmul.f32 %v1767, %v1792
        %v1801 = vmul.f32 %v1768, %v1792
        %1802 = vrot.lane.b32.xlu0 %v1761, 5
        %v1803 = vpop.permute.xlu0 %1802
        %1804 = vrot.lane.b32.xlu0 %v1763, 5
        %v1805 = vpop.permute.xlu0 %1804
        %1806 = vrot.lane.b32.xlu0 %v1765, 5
        %v1807 = vpop.permute.xlu0 %1806
        %1808 = vrot.lane.b32.xlu0 %v1767, 5
        %v1809 = vpop.permute.xlu0 %1808
        %1810 = vrot.lane.b32.xlu0 %v1762, 5
        %v1811 = vpop.permute.xlu0 %1810
        %1812 = vrot.lane.b32.xlu0 %v1764, 5
        %v1813 = vpop.permute.xlu0 %1812
        %1814 = vrot.lane.b32.xlu0 %v1766, 5
        %v1815 = vpop.permute.xlu0 %1814
        %1816 = vrot.lane.b32.xlu0 %v1768, 5
        %v1817 = vpop.permute.xlu0 %1816
        %v1818 = vsel %vm1013, %v1803, %v1811
        %v1819 = vsel %vm1013, %v1805, %v1813
        %v1820 = vsel %vm1013, %v1807, %v1815
        %v1821 = vsel %vm1013, %v1809, %v1817
        %v1822 = vsel %vm1013, %v1811, %v1803
        %v1823 = vsel %vm1013, %v1813, %v1805
        %v1824 = vsel %vm1013, %v1815, %v1807
        %v1825 = vsel %vm1013, %v1817, %v1809
        %v1826 = vld [vmem:[#allocation10] ss:$8 sm:$0x3]
        %v1828 = vperm.slane %v1826, 0
        %v1829 = vperm.slane %v1826, 1
        %1832 = vset.pattern.permute.xlu0 0
        %1833 = vperm.xlu0 %1832, %v1770
        %v1834 = vpop.permute.xlu0 %1833
        %1836 = vset.pattern.permute.xlu0 0
        %1837 = vperm.xlu0 %1836, %v1771
        %v1838 = vpop.permute.xlu0 %1837
        %1840 = vset.pattern.permute.xlu0 0
        %1841 = vperm.xlu0 %1840, %v1772
        %v1842 = vpop.permute.xlu0 %1841
        %1844 = vset.pattern.permute.xlu0 0
        %1845 = vperm.xlu0 %1844, %v1773
        %v1846 = vpop.permute.xlu0 %1845
        %v1848 = vmul.f32 %v1828, %v1834
        %v1849 = vmul.f32 %v1829, %v1834
        %v1850 = vmul.f32 %v1828, %v1838
        %v1851 = vmul.f32 %v1829, %v1838
        %v1852 = vmul.f32 %v1828, %v1842
        %v1853 = vmul.f32 %v1829, %v1842
        %v1854 = vmul.f32 %v1828, %v1846
        %v1855 = vmul.f32 %v1829, %v1846
        %v1856 = vmul.f32 %v1822, %v1848
        %v1857 = vmul.f32 %v1818, %v1849
        %v1858 = vmul.f32 %v1823, %v1850
        %v1859 = vmul.f32 %v1819, %v1851
        %v1860 = vmul.f32 %v1824, %v1852
        %v1861 = vmul.f32 %v1820, %v1853
        %v1862 = vmul.f32 %v1825, %v1854
        %v1863 = vmul.f32 %v1821, %v1855
        %v1864 = vadd.f32 %v1794, %v1856
        %v1865 = vadd.f32 %v1795, %v1857
        %v1866 = vadd.f32 %v1796, %v1858
        %v1867 = vadd.f32 %v1797, %v1859
        %v1868 = vadd.f32 %v1798, %v1860
        %v1869 = vadd.f32 %v1799, %v1861
        %v1870 = vadd.f32 %v1800, %v1862
        %v1871 = vadd.f32 %v1801, %v1863
        %1872 = vrot.lane.b32.xlu0 %v1761, 4
        %v1873 = vpop.permute.xlu0 %1872
        %1874 = vrot.lane.b32.xlu0 %v1763, 4
        %v1875 = vpop.permute.xlu0 %1874
        %1876 = vrot.lane.b32.xlu0 %v1765, 4
        %v1877 = vpop.permute.xlu0 %1876
        %1878 = vrot.lane.b32.xlu0 %v1767, 4
        %v1879 = vpop.permute.xlu0 %1878
        %1880 = vrot.lane.b32.xlu0 %v1762, 4
        %v1881 = vpop.permute.xlu0 %1880
        %1882 = vrot.lane.b32.xlu0 %v1764, 4
        %v1883 = vpop.permute.xlu0 %1882
        %1884 = vrot.lane.b32.xlu0 %v1766, 4
        %v1885 = vpop.permute.xlu0 %1884
        %1886 = vrot.lane.b32.xlu0 %v1768, 4
        %v1887 = vpop.permute.xlu0 %1886
        %v1888 = vsel %vm1084, %v1873, %v1881
        %v1889 = vsel %vm1084, %v1875, %v1883
        %v1890 = vsel %vm1084, %v1877, %v1885
        %v1891 = vsel %vm1084, %v1879, %v1887
        %v1892 = vsel %vm1084, %v1881, %v1873
        %v1893 = vsel %vm1084, %v1883, %v1875
        %v1894 = vsel %vm1084, %v1885, %v1877
        %v1895 = vsel %vm1084, %v1887, %v1879
        %v1896 = vld [vmem:[%s1093] ss:$8 sm:$0x3]
        %v1898 = vperm.slane %v1896, 0
        %v1899 = vperm.slane %v1896, 1
        %1902 = vset.pattern.permute.xlu0 1
        %1903 = vperm.xlu0 %1902, %v1770
        %v1904 = vpop.permute.xlu0 %1903
        %1906 = vset.pattern.permute.xlu0 1
        %1907 = vperm.xlu0 %1906, %v1771
        %v1908 = vpop.permute.xlu0 %1907
        %1910 = vset.pattern.permute.xlu0 1
        %1911 = vperm.xlu0 %1910, %v1772
        %v1912 = vpop.permute.xlu0 %1911
        %1914 = vset.pattern.permute.xlu0 1
        %1915 = vperm.xlu0 %1914, %v1773
        %v1916 = vpop.permute.xlu0 %1915
        %v1918 = vmul.f32 %v1898, %v1904
        %v1919 = vmul.f32 %v1899, %v1904
        %v1920 = vmul.f32 %v1898, %v1908
        %v1921 = vmul.f32 %v1899, %v1908
        %v1922 = vmul.f32 %v1898, %v1912
        %v1923 = vmul.f32 %v1899, %v1912
        %v1924 = vmul.f32 %v1898, %v1916
        %v1925 = vmul.f32 %v1899, %v1916
        %v1926 = vmul.f32 %v1892, %v1918
        %v1927 = vmul.f32 %v1888, %v1919
        %v1928 = vmul.f32 %v1893, %v1920
        %v1929 = vmul.f32 %v1889, %v1921
        %v1930 = vmul.f32 %v1894, %v1922
        %v1931 = vmul.f32 %v1890, %v1923
        %v1932 = vmul.f32 %v1895, %v1924
        %v1933 = vmul.f32 %v1891, %v1925
        %v1934 = vadd.f32 %v1864, %v1926
        %v1935 = vadd.f32 %v1865, %v1927
        %v1936 = vadd.f32 %v1866, %v1928
        %v1937 = vadd.f32 %v1867, %v1929
        %v1938 = vadd.f32 %v1868, %v1930
        %v1939 = vadd.f32 %v1869, %v1931
        %v1940 = vadd.f32 %v1870, %v1932
        %v1941 = vadd.f32 %v1871, %v1933
        %1942 = vrot.lane.b32.xlu0 %v1761, 3
        %v1943 = vpop.permute.xlu0 %1942
        %1944 = vrot.lane.b32.xlu0 %v1763, 3
        %v1945 = vpop.permute.xlu0 %1944
        %1946 = vrot.lane.b32.xlu0 %v1765, 3
        %v1947 = vpop.permute.xlu0 %1946
        %1948 = vrot.lane.b32.xlu0 %v1767, 3
        %v1949 = vpop.permute.xlu0 %1948
        %1950 = vrot.lane.b32.xlu0 %v1762, 3
        %v1951 = vpop.permute.xlu0 %1950
        %1952 = vrot.lane.b32.xlu0 %v1764, 3
        %v1953 = vpop.permute.xlu0 %1952
        %1954 = vrot.lane.b32.xlu0 %v1766, 3
        %v1955 = vpop.permute.xlu0 %1954
        %1956 = vrot.lane.b32.xlu0 %v1768, 3
        %v1957 = vpop.permute.xlu0 %1956
        %v1958 = vsel %vm1156, %v1943, %v1951
        %v1959 = vsel %vm1156, %v1945, %v1953
        %v1960 = vsel %vm1156, %v1947, %v1955
        %v1961 = vsel %vm1156, %v1949, %v1957
        %v1962 = vsel %vm1156, %v1951, %v1943
        %v1963 = vsel %vm1156, %v1953, %v1945
        %v1964 = vsel %vm1156, %v1955, %v1947
        %v1965 = vsel %vm1156, %v1957, %v1949
        %v1966 = vld [vmem:[%s1165] ss:$8 sm:$0x3]
        %v1968 = vperm.slane %v1966, 0
        %v1969 = vperm.slane %v1966, 1
        %1972 = vset.pattern.permute.xlu0 2
        %1973 = vperm.xlu0 %1972, %v1770
        %v1974 = vpop.permute.xlu0 %1973
        %1976 = vset.pattern.permute.xlu0 2
        %1977 = vperm.xlu0 %1976, %v1771
        %v1978 = vpop.permute.xlu0 %1977
        %1980 = vset.pattern.permute.xlu0 2
        %1981 = vperm.xlu0 %1980, %v1772
        %v1982 = vpop.permute.xlu0 %1981
        %1984 = vset.pattern.permute.xlu0 2
        %1985 = vperm.xlu0 %1984, %v1773
        %v1986 = vpop.permute.xlu0 %1985
        %v1988 = vmul.f32 %v1968, %v1974
        %v1989 = vmul.f32 %v1969, %v1974
        %v1990 = vmul.f32 %v1968, %v1978
        %v1991 = vmul.f32 %v1969, %v1978
        %v1992 = vmul.f32 %v1968, %v1982
        %v1993 = vmul.f32 %v1969, %v1982
        %v1994 = vmul.f32 %v1968, %v1986
        %v1995 = vmul.f32 %v1969, %v1986
        %v1996 = vmul.f32 %v1962, %v1988
        %v1997 = vmul.f32 %v1958, %v1989
        %v1998 = vmul.f32 %v1963, %v1990
        %v1999 = vmul.f32 %v1959, %v1991
        %v2000 = vmul.f32 %v1964, %v1992
        %v2001 = vmul.f32 %v1960, %v1993
        %v2002 = vmul.f32 %v1965, %v1994
        %v2003 = vmul.f32 %v1961, %v1995
        %v2004 = vadd.f32 %v1934, %v1996
        %v2005 = vadd.f32 %v1935, %v1997
        %v2006 = vadd.f32 %v1936, %v1998
        %v2007 = vadd.f32 %v1937, %v1999
        %v2008 = vadd.f32 %v1938, %v2000
        %v2009 = vadd.f32 %v1939, %v2001
        %v2010 = vadd.f32 %v1940, %v2002
        %v2011 = vadd.f32 %v1941, %v2003
        %2012 = vrot.lane.b32.xlu0 %v1761, 2
        %v2013 = vpop.permute.xlu0 %2012
        %2014 = vrot.lane.b32.xlu0 %v1763, 2
        %v2015 = vpop.permute.xlu0 %2014
        %2016 = vrot.lane.b32.xlu0 %v1765, 2
        %v2017 = vpop.permute.xlu0 %2016
        %2018 = vrot.lane.b32.xlu0 %v1767, 2
        %v2019 = vpop.permute.xlu0 %2018
        %2020 = vrot.lane.b32.xlu0 %v1762, 2
        %v2021 = vpop.permute.xlu0 %2020
        %2022 = vrot.lane.b32.xlu0 %v1764, 2
        %v2023 = vpop.permute.xlu0 %2022
        %2024 = vrot.lane.b32.xlu0 %v1766, 2
        %v2025 = vpop.permute.xlu0 %2024
        %2026 = vrot.lane.b32.xlu0 %v1768, 2
        %v2027 = vpop.permute.xlu0 %2026
        %v2028 = vsel %vm1228, %v2013, %v2021
        %v2029 = vsel %vm1228, %v2015, %v2023
        %v2030 = vsel %vm1228, %v2017, %v2025
        %v2031 = vsel %vm1228, %v2019, %v2027
        %v2032 = vsel %vm1228, %v2021, %v2013
        %v2033 = vsel %vm1228, %v2023, %v2015
        %v2034 = vsel %vm1228, %v2025, %v2017
        %v2035 = vsel %vm1228, %v2027, %v2019
        %v2036 = vld [vmem:[%s1237] ss:$8 sm:$0x3]
        %v2038 = vperm.slane %v2036, 0
        %v2039 = vperm.slane %v2036, 1
        %2042 = vset.pattern.permute.xlu0 3
        %2043 = vperm.xlu0 %2042, %v1770
        %v2044 = vpop.permute.xlu0 %2043
        %2046 = vset.pattern.permute.xlu0 3
        %2047 = vperm.xlu0 %2046, %v1771
        %v2048 = vpop.permute.xlu0 %2047
        %2050 = vset.pattern.permute.xlu0 3
        %2051 = vperm.xlu0 %2050, %v1772
        %v2052 = vpop.permute.xlu0 %2051
        %2054 = vset.pattern.permute.xlu0 3
        %2055 = vperm.xlu0 %2054, %v1773
        %v2056 = vpop.permute.xlu0 %2055
        %v2058 = vmul.f32 %v2038, %v2044
        %v2059 = vmul.f32 %v2039, %v2044
        %v2060 = vmul.f32 %v2038, %v2048
        %v2061 = vmul.f32 %v2039, %v2048
        %v2062 = vmul.f32 %v2038, %v2052
        %v2063 = vmul.f32 %v2039, %v2052
        %v2064 = vmul.f32 %v2038, %v2056
        %v2065 = vmul.f32 %v2039, %v2056
        %v2066 = vmul.f32 %v2032, %v2058
        %v2067 = vmul.f32 %v2028, %v2059
        %v2068 = vmul.f32 %v2033, %v2060
        %v2069 = vmul.f32 %v2029, %v2061
        %v2070 = vmul.f32 %v2034, %v2062
        %v2071 = vmul.f32 %v2030, %v2063
        %v2072 = vmul.f32 %v2035, %v2064
        %v2073 = vmul.f32 %v2031, %v2065
        %v2074 = vadd.f32 %v2004, %v2066
        %v2075 = vadd.f32 %v2005, %v2067
        %v2076 = vadd.f32 %v2006, %v2068
        %v2077 = vadd.f32 %v2007, %v2069
        %v2078 = vadd.f32 %v2008, %v2070
        %v2079 = vadd.f32 %v2009, %v2071
        %v2080 = vadd.f32 %v2010, %v2072
        %v2081 = vadd.f32 %v2011, %v2073
        %2082 = vrot.lane.b32.xlu0 %v1761, 1
        %v2083 = vpop.permute.xlu0 %2082
        %2084 = vrot.lane.b32.xlu0 %v1763, 1
        %v2085 = vpop.permute.xlu0 %2084
        %2086 = vrot.lane.b32.xlu0 %v1765, 1
        %v2087 = vpop.permute.xlu0 %2086
        %2088 = vrot.lane.b32.xlu0 %v1767, 1
        %v2089 = vpop.permute.xlu0 %2088
        %2090 = vrot.lane.b32.xlu0 %v1762, 1
        %v2091 = vpop.permute.xlu0 %2090
        %2092 = vrot.lane.b32.xlu0 %v1764, 1
        %v2093 = vpop.permute.xlu0 %2092
        %2094 = vrot.lane.b32.xlu0 %v1766, 1
        %v2095 = vpop.permute.xlu0 %2094
        %2096 = vrot.lane.b32.xlu0 %v1768, 1
        %v2097 = vpop.permute.xlu0 %2096
        %v2098 = vsel %vm1300, %v2083, %v2091
        %v2099 = vsel %vm1300, %v2085, %v2093
        %v2100 = vsel %vm1300, %v2087, %v2095
        %v2101 = vsel %vm1300, %v2089, %v2097
        %v2102 = vsel %vm1300, %v2091, %v2083
        %v2103 = vsel %vm1300, %v2093, %v2085
        %v2104 = vsel %vm1300, %v2095, %v2087
        %v2105 = vsel %vm1300, %v2097, %v2089
        %v2106 = vld [vmem:[%s1309] ss:$8 sm:$0x3]
        %v2108 = vperm.slane %v2106, 0
        %v2109 = vperm.slane %v2106, 1
        %2112 = vset.pattern.permute.xlu0 4
        %2113 = vperm.xlu0 %2112, %v1770
        %v2114 = vpop.permute.xlu0 %2113
        %2116 = vset.pattern.permute.xlu0 4
        %2117 = vperm.xlu0 %2116, %v1771
        %v2118 = vpop.permute.xlu0 %2117
        %2120 = vset.pattern.permute.xlu0 4
        %2121 = vperm.xlu0 %2120, %v1772
        %v2122 = vpop.permute.xlu0 %2121
        %2124 = vset.pattern.permute.xlu0 4
        %2125 = vperm.xlu0 %2124, %v1773
        %v2126 = vpop.permute.xlu0 %2125
        %v2128 = vmul.f32 %v2108, %v2114
        %v2129 = vmul.f32 %v2109, %v2114
        %v2130 = vmul.f32 %v2108, %v2118
        %v2131 = vmul.f32 %v2109, %v2118
        %v2132 = vmul.f32 %v2108, %v2122
        %v2133 = vmul.f32 %v2109, %v2122
        %v2134 = vmul.f32 %v2108, %v2126
        %v2135 = vmul.f32 %v2109, %v2126
        %v2136 = vmul.f32 %v2102, %v2128
        %v2137 = vmul.f32 %v2098, %v2129
        %v2138 = vmul.f32 %v2103, %v2130
        %v2139 = vmul.f32 %v2099, %v2131
        %v2140 = vmul.f32 %v2104, %v2132
        %v2141 = vmul.f32 %v2100, %v2133
        %v2142 = vmul.f32 %v2105, %v2134
        %v2143 = vmul.f32 %v2101, %v2135
        %v2144 = vadd.f32 %v2074, %v2136
        %v2145 = vadd.f32 %v2075, %v2137
        %v2146 = vadd.f32 %v2076, %v2138
        %v2147 = vadd.f32 %v2077, %v2139
        %v2148 = vadd.f32 %v2078, %v2140
        %v2149 = vadd.f32 %v2079, %v2141
        %v2150 = vadd.f32 %v2080, %v2142
        %v2151 = vadd.f32 %v2081, %v2143
        %2152 = vrot.lane.b32.xlu0 %v1761, 127
        %v2153 = vpop.permute.xlu0 %2152
        %2154 = vrot.lane.b32.xlu0 %v1763, 127
        %v2155 = vpop.permute.xlu0 %2154
        %2156 = vrot.lane.b32.xlu0 %v1765, 127
        %v2157 = vpop.permute.xlu0 %2156
        %2158 = vrot.lane.b32.xlu0 %v1767, 127
        %v2159 = vpop.permute.xlu0 %2158
        %2160 = vrot.lane.b32.xlu0 %v1762, 127
        %v2161 = vpop.permute.xlu0 %2160
        %2162 = vrot.lane.b32.xlu0 %v1764, 127
        %v2163 = vpop.permute.xlu0 %2162
        %2164 = vrot.lane.b32.xlu0 %v1766, 127
        %v2165 = vpop.permute.xlu0 %2164
        %2166 = vrot.lane.b32.xlu0 %v1768, 127
        %v2167 = vpop.permute.xlu0 %2166
        %v2168 = vsel %vm1372, %v2153, %v2161
        %v2169 = vsel %vm1372, %v2155, %v2163
        %v2170 = vsel %vm1372, %v2157, %v2165
        %v2171 = vsel %vm1372, %v2159, %v2167
        %v2172 = vsel %vm1372, %v2161, %v2153
        %v2173 = vsel %vm1372, %v2163, %v2155
        %v2174 = vsel %vm1372, %v2165, %v2157
        %v2175 = vsel %vm1372, %v2167, %v2159
        %v2176 = vld [vmem:[%s1381] ss:$8 sm:$0x3]
        %v2178 = vperm.slane %v2176, 0
        %v2179 = vperm.slane %v2176, 1
        %2182 = vset.pattern.permute.xlu0 6
        %2183 = vperm.xlu0 %2182, %v1770
        %v2184 = vpop.permute.xlu0 %2183
        %2186 = vset.pattern.permute.xlu0 6
        %2187 = vperm.xlu0 %2186, %v1771
        %v2188 = vpop.permute.xlu0 %2187
        %2190 = vset.pattern.permute.xlu0 6
        %2191 = vperm.xlu0 %2190, %v1772
        %v2192 = vpop.permute.xlu0 %2191
        %2194 = vset.pattern.permute.xlu0 6
        %2195 = vperm.xlu0 %2194, %v1773
        %v2196 = vpop.permute.xlu0 %2195
        %v2198 = vmul.f32 %v2178, %v2184
        %v2199 = vmul.f32 %v2179, %v2184
        %v2200 = vmul.f32 %v2178, %v2188
        %v2201 = vmul.f32 %v2179, %v2188
        %v2202 = vmul.f32 %v2178, %v2192
        %v2203 = vmul.f32 %v2179, %v2192
        %v2204 = vmul.f32 %v2178, %v2196
        %v2205 = vmul.f32 %v2179, %v2196
        %v2206 = vmul.f32 %v2168, %v2198
        %v2207 = vmul.f32 %v2172, %v2199
        %v2208 = vmul.f32 %v2169, %v2200
        %v2209 = vmul.f32 %v2173, %v2201
        %v2210 = vmul.f32 %v2170, %v2202
        %v2211 = vmul.f32 %v2174, %v2203
        %v2212 = vmul.f32 %v2171, %v2204
        %v2213 = vmul.f32 %v2175, %v2205
        %v2214 = vadd.f32 %v2144, %v2206
        %v2215 = vadd.f32 %v2145, %v2207
        %v2216 = vadd.f32 %v2146, %v2208
        %v2217 = vadd.f32 %v2147, %v2209
        %v2218 = vadd.f32 %v2148, %v2210
        %v2219 = vadd.f32 %v2149, %v2211
        %v2220 = vadd.f32 %v2150, %v2212
        %v2221 = vadd.f32 %v2151, %v2213
        %2222 = vrot.lane.b32.xlu0 %v1761, 126
        %v2223 = vpop.permute.xlu0 %2222
        %2224 = vrot.lane.b32.xlu0 %v1763, 126
        %v2225 = vpop.permute.xlu0 %2224
        %2226 = vrot.lane.b32.xlu0 %v1765, 126
        %v2227 = vpop.permute.xlu0 %2226
        %2228 = vrot.lane.b32.xlu0 %v1767, 126
        %v2229 = vpop.permute.xlu0 %2228
        %2230 = vrot.lane.b32.xlu0 %v1762, 126
        %v2231 = vpop.permute.xlu0 %2230
        %2232 = vrot.lane.b32.xlu0 %v1764, 126
        %v2233 = vpop.permute.xlu0 %2232
        %2234 = vrot.lane.b32.xlu0 %v1766, 126
        %v2235 = vpop.permute.xlu0 %2234
        %2236 = vrot.lane.b32.xlu0 %v1768, 126
        %v2237 = vpop.permute.xlu0 %2236
        %v2238 = vsel %vm1444, %v2223, %v2231
        %v2239 = vsel %vm1444, %v2225, %v2233
        %v2240 = vsel %vm1444, %v2227, %v2235
        %v2241 = vsel %vm1444, %v2229, %v2237
        %v2242 = vsel %vm1444, %v2231, %v2223
        %v2243 = vsel %vm1444, %v2233, %v2225
        %v2244 = vsel %vm1444, %v2235, %v2227
        %v2245 = vsel %vm1444, %v2237, %v2229
        %v2246 = vld [vmem:[%s1453] ss:$8 sm:$0x3]
        %v2248 = vperm.slane %v2246, 0
        %v2249 = vperm.slane %v2246, 1
        %2252 = vset.pattern.permute.xlu0 7
        %2253 = vperm.xlu0 %2252, %v1770
        %v2254 = vpop.permute.xlu0 %2253
        %2256 = vset.pattern.permute.xlu0 7
        %2257 = vperm.xlu0 %2256, %v1771
        %v2258 = vpop.permute.xlu0 %2257
        %2260 = vset.pattern.permute.xlu0 7
        %2261 = vperm.xlu0 %2260, %v1772
        %v2262 = vpop.permute.xlu0 %2261
        %2264 = vset.pattern.permute.xlu0 7
        %2265 = vperm.xlu0 %2264, %v1773
        %v2266 = vpop.permute.xlu0 %2265
        %v2268 = vmul.f32 %v2248, %v2254
        %v2269 = vmul.f32 %v2249, %v2254
        %v2270 = vmul.f32 %v2248, %v2258
        %v2271 = vmul.f32 %v2249, %v2258
        %v2272 = vmul.f32 %v2248, %v2262
        %v2273 = vmul.f32 %v2249, %v2262
        %v2274 = vmul.f32 %v2248, %v2266
        %v2275 = vmul.f32 %v2249, %v2266
        %v2276 = vmul.f32 %v2238, %v2268
        %v2277 = vmul.f32 %v2242, %v2269
        %v2278 = vmul.f32 %v2239, %v2270
        %v2279 = vmul.f32 %v2243, %v2271
        %v2280 = vmul.f32 %v2240, %v2272
        %v2281 = vmul.f32 %v2244, %v2273
        %v2282 = vmul.f32 %v2241, %v2274
        %v2283 = vmul.f32 %v2245, %v2275
        %v2284 = vadd.f32 %v2214, %v2276
        %v2285 = vadd.f32 %v2215, %v2277
        %v2286 = vadd.f32 %v2216, %v2278
        %v2287 = vadd.f32 %v2217, %v2279
        %v2288 = vadd.f32 %v2218, %v2280
        %v2289 = vadd.f32 %v2219, %v2281
        %v2290 = vadd.f32 %v2220, %v2282
        %v2291 = vadd.f32 %v2221, %v2283
        %2292 = vrot.lane.b32.xlu0 %v1761, 125
        %v2293 = vpop.permute.xlu0 %2292
        %2294 = vrot.lane.b32.xlu0 %v1763, 125
        %v2295 = vpop.permute.xlu0 %2294
        %2296 = vrot.lane.b32.xlu0 %v1765, 125
        %v2297 = vpop.permute.xlu0 %2296
        %2298 = vrot.lane.b32.xlu0 %v1767, 125
        %v2299 = vpop.permute.xlu0 %2298
        %2300 = vrot.lane.b32.xlu0 %v1762, 125
        %v2301 = vpop.permute.xlu0 %2300
        %2302 = vrot.lane.b32.xlu0 %v1764, 125
        %v2303 = vpop.permute.xlu0 %2302
        %2304 = vrot.lane.b32.xlu0 %v1766, 125
        %v2305 = vpop.permute.xlu0 %2304
        %2306 = vrot.lane.b32.xlu0 %v1768, 125
        %v2307 = vpop.permute.xlu0 %2306
        %v2308 = vsel %vm1516, %v2293, %v2301
        %v2309 = vsel %vm1516, %v2295, %v2303
        %v2310 = vsel %vm1516, %v2297, %v2305
        %v2311 = vsel %vm1516, %v2299, %v2307
        %v2312 = vsel %vm1516, %v2301, %v2293
        %v2313 = vsel %vm1516, %v2303, %v2295
        %v2314 = vsel %vm1516, %v2305, %v2297
        %v2315 = vsel %vm1516, %v2307, %v2299
        %v2316 = vld [vmem:[%s1525] ss:$8 sm:$0x3]
        %v2318 = vperm.slane %v2316, 0
        %v2319 = vperm.slane %v2316, 1
        %2322 = vset.pattern.permute.xlu0 8
        %2323 = vperm.xlu0 %2322, %v1770
        %v2324 = vpop.permute.xlu0 %2323
        %2326 = vset.pattern.permute.xlu0 8
        %2327 = vperm.xlu0 %2326, %v1771
        %v2328 = vpop.permute.xlu0 %2327
        %2330 = vset.pattern.permute.xlu0 8
        %2331 = vperm.xlu0 %2330, %v1772
        %v2332 = vpop.permute.xlu0 %2331
        %2334 = vset.pattern.permute.xlu0 8
        %2335 = vperm.xlu0 %2334, %v1773
        %v2336 = vpop.permute.xlu0 %2335
        %v2338 = vmul.f32 %v2318, %v2324
        %v2339 = vmul.f32 %v2319, %v2324
        %v2340 = vmul.f32 %v2318, %v2328
        %v2341 = vmul.f32 %v2319, %v2328
        %v2342 = vmul.f32 %v2318, %v2332
        %v2343 = vmul.f32 %v2319, %v2332
        %v2344 = vmul.f32 %v2318, %v2336
        %v2345 = vmul.f32 %v2319, %v2336
        %v2346 = vmul.f32 %v2308, %v2338
        %v2347 = vmul.f32 %v2312, %v2339
        %v2348 = vmul.f32 %v2309, %v2340
        %v2349 = vmul.f32 %v2313, %v2341
        %v2350 = vmul.f32 %v2310, %v2342
        %v2351 = vmul.f32 %v2314, %v2343
        %v2352 = vmul.f32 %v2311, %v2344
        %v2353 = vmul.f32 %v2315, %v2345
        %v2354 = vadd.f32 %v2284, %v2346
        %v2355 = vadd.f32 %v2285, %v2347
        %v2356 = vadd.f32 %v2286, %v2348
        %v2357 = vadd.f32 %v2287, %v2349
        %v2358 = vadd.f32 %v2288, %v2350
        %v2359 = vadd.f32 %v2289, %v2351
        %v2360 = vadd.f32 %v2290, %v2352
        %v2361 = vadd.f32 %v2291, %v2353
        %2362 = vrot.lane.b32.xlu0 %v1761, 124
        %v2363 = vpop.permute.xlu0 %2362
        %2364 = vrot.lane.b32.xlu0 %v1763, 124
        %v2365 = vpop.permute.xlu0 %2364
        %2366 = vrot.lane.b32.xlu0 %v1765, 124
        %v2367 = vpop.permute.xlu0 %2366
        %2368 = vrot.lane.b32.xlu0 %v1767, 124
        %v2369 = vpop.permute.xlu0 %2368
        %2370 = vrot.lane.b32.xlu0 %v1762, 124
        %v2371 = vpop.permute.xlu0 %2370
        %2372 = vrot.lane.b32.xlu0 %v1764, 124
        %v2373 = vpop.permute.xlu0 %2372
        %2374 = vrot.lane.b32.xlu0 %v1766, 124
        %v2375 = vpop.permute.xlu0 %2374
        %2376 = vrot.lane.b32.xlu0 %v1768, 124
        %v2377 = vpop.permute.xlu0 %2376
        %v2378 = vsel %vm1588, %v2363, %v2371
        %v2379 = vsel %vm1588, %v2365, %v2373
        %v2380 = vsel %vm1588, %v2367, %v2375
        %v2381 = vsel %vm1588, %v2369, %v2377
        %v2382 = vsel %vm1588, %v2371, %v2363
        %v2383 = vsel %vm1588, %v2373, %v2365
        %v2384 = vsel %vm1588, %v2375, %v2367
        %v2385 = vsel %vm1588, %v2377, %v2369
        %v2386 = vld [vmem:[%s1597] ss:$8 sm:$0x3]
        %v2388 = vperm.slane %v2386, 0
        %v2389 = vperm.slane %v2386, 1
        %2392 = vset.pattern.permute.xlu0 9
        %2393 = vperm.xlu0 %2392, %v1770
        %v2394 = vpop.permute.xlu0 %2393
        %2396 = vset.pattern.permute.xlu0 9
        %2397 = vperm.xlu0 %2396, %v1771
        %v2398 = vpop.permute.xlu0 %2397
        %2400 = vset.pattern.permute.xlu0 9
        %2401 = vperm.xlu0 %2400, %v1772
        %v2402 = vpop.permute.xlu0 %2401
        %2404 = vset.pattern.permute.xlu0 9
        %2405 = vperm.xlu0 %2404, %v1773
        %v2406 = vpop.permute.xlu0 %2405
        %v2408 = vmul.f32 %v2388, %v2394
        %v2409 = vmul.f32 %v2389, %v2394
        %v2410 = vmul.f32 %v2388, %v2398
        %v2411 = vmul.f32 %v2389, %v2398
        %v2412 = vmul.f32 %v2388, %v2402
        %v2413 = vmul.f32 %v2389, %v2402
        %v2414 = vmul.f32 %v2388, %v2406
        %v2415 = vmul.f32 %v2389, %v2406
        %v2416 = vmul.f32 %v2378, %v2408
        %v2417 = vmul.f32 %v2382, %v2409
        %v2418 = vmul.f32 %v2379, %v2410
        %v2419 = vmul.f32 %v2383, %v2411
        %v2420 = vmul.f32 %v2380, %v2412
        %v2421 = vmul.f32 %v2384, %v2413
        %v2422 = vmul.f32 %v2381, %v2414
        %v2423 = vmul.f32 %v2385, %v2415
        %v2424 = vadd.f32 %v2354, %v2416
        %v2425 = vadd.f32 %v2355, %v2417
        %v2426 = vadd.f32 %v2356, %v2418
        %v2427 = vadd.f32 %v2357, %v2419
        %v2428 = vadd.f32 %v2358, %v2420
        %v2429 = vadd.f32 %v2359, %v2421
        %v2430 = vadd.f32 %v2360, %v2422
        %v2431 = vadd.f32 %v2361, %v2423
        %2432 = vrot.lane.b32.xlu0 %v1761, 123
        %v2433 = vpop.permute.xlu0 %2432
        %2434 = vrot.lane.b32.xlu0 %v1763, 123
        %v2435 = vpop.permute.xlu0 %2434
        %2436 = vrot.lane.b32.xlu0 %v1765, 123
        %v2437 = vpop.permute.xlu0 %2436
        %2438 = vrot.lane.b32.xlu0 %v1767, 123
        %v2439 = vpop.permute.xlu0 %2438
        %2440 = vrot.lane.b32.xlu0 %v1762, 123
        %v2441 = vpop.permute.xlu0 %2440
        %2442 = vrot.lane.b32.xlu0 %v1764, 123
        %v2443 = vpop.permute.xlu0 %2442
        %2444 = vrot.lane.b32.xlu0 %v1766, 123
        %v2445 = vpop.permute.xlu0 %2444
        %2446 = vrot.lane.b32.xlu0 %v1768, 123
        %v2447 = vpop.permute.xlu0 %2446
        %v2448 = vsel %vm1660, %v2433, %v2441
        %v2449 = vsel %vm1660, %v2435, %v2443
        %v2450 = vsel %vm1660, %v2437, %v2445
        %v2451 = vsel %vm1660, %v2439, %v2447
        %v2452 = vsel %vm1660, %v2441, %v2433
        %v2453 = vsel %vm1660, %v2443, %v2435
        %v2454 = vsel %vm1660, %v2445, %v2437
        %v2455 = vsel %vm1660, %v2447, %v2439
        %v2456 = vld [vmem:[%s1669] ss:$8 sm:$0x3]
        %v2458 = vperm.slane %v2456, 0
        %v2459 = vperm.slane %v2456, 1
        %2462 = vset.pattern.permute.xlu0 10
        %2463 = vperm.xlu0 %2462, %v1770
        %v2464 = vpop.permute.xlu0 %2463
        %2466 = vset.pattern.permute.xlu0 10
        %2467 = vperm.xlu0 %2466, %v1771
        %v2468 = vpop.permute.xlu0 %2467
        %2470 = vset.pattern.permute.xlu0 10
        %2471 = vperm.xlu0 %2470, %v1772
        %v2472 = vpop.permute.xlu0 %2471
        %2474 = vset.pattern.permute.xlu0 10
        %2475 = vperm.xlu0 %2474, %v1773
        %v2476 = vpop.permute.xlu0 %2475
        %v2478 = vmul.f32 %v2458, %v2464
        %v2479 = vmul.f32 %v2459, %v2464
        %v2480 = vmul.f32 %v2458, %v2468
        %v2481 = vmul.f32 %v2459, %v2468
        %v2482 = vmul.f32 %v2458, %v2472
        %v2483 = vmul.f32 %v2459, %v2472
        %v2484 = vmul.f32 %v2458, %v2476
        %v2485 = vmul.f32 %v2459, %v2476
        %v2486 = vmul.f32 %v2448, %v2478
        %v2487 = vmul.f32 %v2452, %v2479
        %v2488 = vmul.f32 %v2449, %v2480
        %v2489 = vmul.f32 %v2453, %v2481
        %v2490 = vmul.f32 %v2450, %v2482
        %v2491 = vmul.f32 %v2454, %v2483
        %v2492 = vmul.f32 %v2451, %v2484
        %v2493 = vmul.f32 %v2455, %v2485
        %v2494 = vadd.f32 %v2424, %v2486
        %v2495 = vadd.f32 %v2425, %v2487
        %v2496 = vadd.f32 %v2426, %v2488
        %v2497 = vadd.f32 %v2427, %v2489
        %v2498 = vadd.f32 %v2428, %v2490
        %v2499 = vadd.f32 %v2429, %v2491
        %v2500 = vadd.f32 %v2430, %v2492
        %v2501 = vadd.f32 %v2431, %v2493
        %s2502 = scalar_lea.vmem %s6, 32
        %v2503 = vld [vmem:[%s2502] sm:$0xff]
        %v2504 = vld [vmem:[%s2502 + $0x8] sm:$0xff]
        %v2505 = vld [vmem:[%s2502 + $0x10] sm:$0xff]
        %v2506 = vld [vmem:[%s2502 + $0x18] sm:$0xff]
        %2508 = vset.pattern.permute.xlu0 1
        %2509 = vperm.xlu0 %2508, %v2503
        %v2510 = vpop.permute.xlu0 %2509
        %2513 = vset.pattern.permute.xlu0 1
        %2514 = vperm.xlu0 %2513, %v2504
        %v2515 = vpop.permute.xlu0 %2514
        %2518 = vset.pattern.permute.xlu0 1
        %2519 = vperm.xlu0 %2518, %v2505
        %v2520 = vpop.permute.xlu0 %2519
        %2523 = vset.pattern.permute.xlu0 1
        %2524 = vperm.xlu0 %2523, %v2506
        %v2525 = vpop.permute.xlu0 %2524
        %v2527 = vadd.f32 %v2494, %v2510
        %v2528 = vadd.f32 %v2495, %v2510
        %v2529 = vadd.f32 %v2496, %v2515
        %v2530 = vadd.f32 %v2497, %v2515
        %v2531 = vadd.f32 %v2498, %v2520
        %v2532 = vadd.f32 %v2499, %v2520
        %v2533 = vadd.f32 %v2500, %v2525
        %v2534 = vadd.f32 %v2501, %v2525
        %s2535 = smul.addr %s1758, 8
        %s2536 = scalar_lea.vmem [#allocation3], %s2535
        %2537 = vst [vmem:[%s2536] sm:$0xff] %v2527
        %2538 = vst [vmem:[%s2536 + $0x8] sm:$0xff] %v2528
        %2539 = vst [vmem:[%s2536 + $0x10] sm:$0xff] %v2529
        %2540 = vst [vmem:[%s2536 + $0x18] sm:$0xff] %v2530
        %2541 = vst [vmem:[%s2536 + $0x20] sm:$0xff] %v2531
        %2542 = vst [vmem:[%s2536 + $0x28] sm:$0xff] %v2532
        %2543 = vst [vmem:[%s2536 + $0x30] sm:$0xff] %v2533
        %2544 = vst [vmem:[%s2536 + $0x38] sm:$0xff] %v2534
        %v2545 = vld [vmem:[%s1749] sm:$0xff]
        %v2546 = vld [vmem:[%s1749 + $0x8] sm:$0xff]
        %v2547 = vld [vmem:[%s1749 + $0x10] sm:$0xff]
        %v2548 = vld [vmem:[%s1749 + $0x18] sm:$0xff]
        %v2549 = vld [vmem:[%s1749 + $0x20] sm:$0xff]
        %v2550 = vld [vmem:[%s1749 + $0x28] sm:$0xff]
        %v2551 = vld [vmem:[%s1749 + $0x30] sm:$0xff]
        %v2552 = vld [vmem:[%s1749 + $0x38] sm:$0xff]
        %v2553 = vld [vmem:[%s4] sm:$0xff]
        %v2554 = vld [vmem:[%s4 + $0x8] sm:$0xff]
        %v2555 = vld [vmem:[%s4 + $0x10] sm:$0xff]
        %v2556 = vld [vmem:[%s4 + $0x18] sm:$0xff]
        %2558 = vset.pattern.permute.xlu0 16
        %2559 = vperm.xlu0 %2558, %v2553
        %v2560 = vpop.permute.xlu0 %2559
        %2563 = vset.pattern.permute.xlu0 16
        %2564 = vperm.xlu0 %2563, %v2554
        %v2565 = vpop.permute.xlu0 %2564
        %2568 = vset.pattern.permute.xlu0 16
        %2569 = vperm.xlu0 %2568, %v2555
        %v2570 = vpop.permute.xlu0 %2569
        %2573 = vset.pattern.permute.xlu0 16
        %2574 = vperm.xlu0 %2573, %v2556
        %v2575 = vpop.permute.xlu0 %2574
        %v2577 = vmul.f32 %v2545, %v2560
        %v2578 = vmul.f32 %v2546, %v2560
        %v2579 = vmul.f32 %v2547, %v2565
        %v2580 = vmul.f32 %v2548, %v2565
        %v2581 = vmul.f32 %v2549, %v2570
        %v2582 = vmul.f32 %v2550, %v2570
        %v2583 = vmul.f32 %v2551, %v2575
        %v2584 = vmul.f32 %v2552, %v2575
        %2585 = vrot.lane.b32.xlu0 %v2545, 80
        %v2586 = vpop.permute.xlu0 %2585
        %2587 = vrot.lane.b32.xlu0 %v2547, 80
        %v2588 = vpop.permute.xlu0 %2587
        %2589 = vrot.lane.b32.xlu0 %v2549, 80
        %v2590 = vpop.permute.xlu0 %2589
        %2591 = vrot.lane.b32.xlu0 %v2551, 80
        %v2592 = vpop.permute.xlu0 %2591
        %2593 = vrot.lane.b32.xlu0 %v2546, 80
        %v2594 = vpop.permute.xlu0 %2593
        %2595 = vrot.lane.b32.xlu0 %v2548, 80
        %v2596 = vpop.permute.xlu0 %2595
        %2597 = vrot.lane.b32.xlu0 %v2550, 80
        %v2598 = vpop.permute.xlu0 %2597
        %2599 = vrot.lane.b32.xlu0 %v2552, 80
        %v2600 = vpop.permute.xlu0 %2599
        %vm2601 = vcmp.lt.s32.totalorder %v1012, 80
        %v2602 = vsel %vm2601, %v2586, %v2594
        %v2603 = vsel %vm2601, %v2588, %v2596
        %v2604 = vsel %vm2601, %v2590, %v2598
        %v2605 = vsel %vm2601, %v2592, %v2600
        %v2606 = vsel %vm2601, %v2594, %v2586
        %v2607 = vsel %vm2601, %v2596, %v2588
        %v2608 = vsel %vm2601, %v2598, %v2590
        %v2609 = vsel %vm2601, %v2600, %v2592
        %s2610 = scalar_lea.vmem [#allocation10], 19
        %v2611 = vld [vmem:[%s2610] ss:$8 sm:$0x3]
        %v2613 = vperm.slane %v2611, 0
        %v2614 = vperm.slane %v2611, 1
        %2617 = vset.pattern.permute.xlu0 11
        %2618 = vperm.xlu0 %2617, %v2553
        %v2619 = vpop.permute.xlu0 %2618
        %2621 = vset.pattern.permute.xlu0 11
        %2622 = vperm.xlu0 %2621, %v2554
        %v2623 = vpop.permute.xlu0 %2622
        %2625 = vset.pattern.permute.xlu0 11
        %2626 = vperm.xlu0 %2625, %v2555
        %v2627 = vpop.permute.xlu0 %2626
        %2629 = vset.pattern.permute.xlu0 11
        %2630 = vperm.xlu0 %2629, %v2556
        %v2631 = vpop.permute.xlu0 %2630
        %v2633 = vmul.f32 %v2613, %v2619
        %v2634 = vmul.f32 %v2614, %v2619
        %v2635 = vmul.f32 %v2613, %v2623
        %v2636 = vmul.f32 %v2614, %v2623
        %v2637 = vmul.f32 %v2613, %v2627
        %v2638 = vmul.f32 %v2614, %v2627
        %v2639 = vmul.f32 %v2613, %v2631
        %v2640 = vmul.f32 %v2614, %v2631
        %v2641 = vmul.f32 %v2606, %v2633
        %v2642 = vmul.f32 %v2602, %v2634
        %v2643 = vmul.f32 %v2607, %v2635
        %v2644 = vmul.f32 %v2603, %v2636
        %v2645 = vmul.f32 %v2608, %v2637
        %v2646 = vmul.f32 %v2604, %v2638
        %v2647 = vmul.f32 %v2609, %v2639
        %v2648 = vmul.f32 %v2605, %v2640
        %v2649 = vadd.f32 %v2577, %v2641
        %v2650 = vadd.f32 %v2578, %v2642
        %v2651 = vadd.f32 %v2579, %v2643
        %v2652 = vadd.f32 %v2580, %v2644
        %v2653 = vadd.f32 %v2581, %v2645
        %v2654 = vadd.f32 %v2582, %v2646
        %v2655 = vadd.f32 %v2583, %v2647
        %v2656 = vadd.f32 %v2584, %v2648
        %2657 = vrot.lane.b32.xlu0 %v2545, 64
        %v2658 = vpop.permute.xlu0 %2657
        %2659 = vrot.lane.b32.xlu0 %v2547, 64
        %v2660 = vpop.permute.xlu0 %2659
        %2661 = vrot.lane.b32.xlu0 %v2549, 64
        %v2662 = vpop.permute.xlu0 %2661
        %2663 = vrot.lane.b32.xlu0 %v2551, 64
        %v2664 = vpop.permute.xlu0 %2663
        %2665 = vrot.lane.b32.xlu0 %v2546, 64
        %v2666 = vpop.permute.xlu0 %2665
        %2667 = vrot.lane.b32.xlu0 %v2548, 64
        %v2668 = vpop.permute.xlu0 %2667
        %2669 = vrot.lane.b32.xlu0 %v2550, 64
        %v2670 = vpop.permute.xlu0 %2669
        %2671 = vrot.lane.b32.xlu0 %v2552, 64
        %v2672 = vpop.permute.xlu0 %2671
        %vm2673 = vcmp.lt.s32.totalorder %v1012, 64
        %v2674 = vsel %vm2673, %v2658, %v2666
        %v2675 = vsel %vm2673, %v2660, %v2668
        %v2676 = vsel %vm2673, %v2662, %v2670
        %v2677 = vsel %vm2673, %v2664, %v2672
        %v2678 = vsel %vm2673, %v2666, %v2658
        %v2679 = vsel %vm2673, %v2668, %v2660
        %v2680 = vsel %vm2673, %v2670, %v2662
        %v2681 = vsel %vm2673, %v2672, %v2664
        %s2682 = scalar_lea.vmem [#allocation10], 20
        %v2683 = vld [vmem:[%s2682] ss:$8 sm:$0x3]
        %v2685 = vperm.slane %v2683, 0
        %v2686 = vperm.slane %v2683, 1
        %2689 = vset.pattern.permute.xlu0 12
        %2690 = vperm.xlu0 %2689, %v2553
        %v2691 = vpop.permute.xlu0 %2690
        %2693 = vset.pattern.permute.xlu0 12
        %2694 = vperm.xlu0 %2693, %v2554
        %v2695 = vpop.permute.xlu0 %2694
        %2697 = vset.pattern.permute.xlu0 12
        %2698 = vperm.xlu0 %2697, %v2555
        %v2699 = vpop.permute.xlu0 %2698
        %2701 = vset.pattern.permute.xlu0 12
        %2702 = vperm.xlu0 %2701, %v2556
        %v2703 = vpop.permute.xlu0 %2702
        %v2705 = vmul.f32 %v2685, %v2691
        %v2706 = vmul.f32 %v2686, %v2691
        %v2707 = vmul.f32 %v2685, %v2695
        %v2708 = vmul.f32 %v2686, %v2695
        %v2709 = vmul.f32 %v2685, %v2699
        %v2710 = vmul.f32 %v2686, %v2699
        %v2711 = vmul.f32 %v2685, %v2703
        %v2712 = vmul.f32 %v2686, %v2703
        %v2713 = vmul.f32 %v2678, %v2705
        %v2714 = vmul.f32 %v2674, %v2706
        %v2715 = vmul.f32 %v2679, %v2707
        %v2716 = vmul.f32 %v2675, %v2708
        %v2717 = vmul.f32 %v2680, %v2709
        %v2718 = vmul.f32 %v2676, %v2710
        %v2719 = vmul.f32 %v2681, %v2711
        %v2720 = vmul.f32 %v2677, %v2712
        %v2721 = vadd.f32 %v2649, %v2713
        %v2722 = vadd.f32 %v2650, %v2714
        %v2723 = vadd.f32 %v2651, %v2715
        %v2724 = vadd.f32 %v2652, %v2716
        %v2725 = vadd.f32 %v2653, %v2717
        %v2726 = vadd.f32 %v2654, %v2718
        %v2727 = vadd.f32 %v2655, %v2719
        %v2728 = vadd.f32 %v2656, %v2720
        %2729 = vrot.lane.b32.xlu0 %v2545, 48
        %v2730 = vpop.permute.xlu0 %2729
        %2731 = vrot.lane.b32.xlu0 %v2547, 48
        %v2732 = vpop.permute.xlu0 %2731
        %2733 = vrot.lane.b32.xlu0 %v2549, 48
        %v2734 = vpop.permute.xlu0 %2733
        %2735 = vrot.lane.b32.xlu0 %v2551, 48
        %v2736 = vpop.permute.xlu0 %2735
        %2737 = vrot.lane.b32.xlu0 %v2546, 48
        %v2738 = vpop.permute.xlu0 %2737
        %2739 = vrot.lane.b32.xlu0 %v2548, 48
        %v2740 = vpop.permute.xlu0 %2739
        %2741 = vrot.lane.b32.xlu0 %v2550, 48
        %v2742 = vpop.permute.xlu0 %2741
        %2743 = vrot.lane.b32.xlu0 %v2552, 48
        %v2744 = vpop.permute.xlu0 %2743
        %vm2745 = vcmp.lt.s32.totalorder %v1012, 48
        %v2746 = vsel %vm2745, %v2730, %v2738
        %v2747 = vsel %vm2745, %v2732, %v2740
        %v2748 = vsel %vm2745, %v2734, %v2742
        %v2749 = vsel %vm2745, %v2736, %v2744
        %v2750 = vsel %vm2745, %v2738, %v2730
        %v2751 = vsel %vm2745, %v2740, %v2732
        %v2752 = vsel %vm2745, %v2742, %v2734
        %v2753 = vsel %vm2745, %v2744, %v2736
        %s2754 = scalar_lea.vmem [#allocation10], 21
        %v2755 = vld [vmem:[%s2754] ss:$8 sm:$0x3]
        %v2757 = vperm.slane %v2755, 0
        %v2758 = vperm.slane %v2755, 1
        %2761 = vset.pattern.permute.xlu0 13
        %2762 = vperm.xlu0 %2761, %v2553
        %v2763 = vpop.permute.xlu0 %2762
        %2765 = vset.pattern.permute.xlu0 13
        %2766 = vperm.xlu0 %2765, %v2554
        %v2767 = vpop.permute.xlu0 %2766
        %2769 = vset.pattern.permute.xlu0 13
        %2770 = vperm.xlu0 %2769, %v2555
        %v2771 = vpop.permute.xlu0 %2770
        %2773 = vset.pattern.permute.xlu0 13
        %2774 = vperm.xlu0 %2773, %v2556
        %v2775 = vpop.permute.xlu0 %2774
        %v2777 = vmul.f32 %v2757, %v2763
        %v2778 = vmul.f32 %v2758, %v2763
        %v2779 = vmul.f32 %v2757, %v2767
        %v2780 = vmul.f32 %v2758, %v2767
        %v2781 = vmul.f32 %v2757, %v2771
        %v2782 = vmul.f32 %v2758, %v2771
        %v2783 = vmul.f32 %v2757, %v2775
        %v2784 = vmul.f32 %v2758, %v2775
        %v2785 = vmul.f32 %v2750, %v2777
        %v2786 = vmul.f32 %v2746, %v2778
        %v2787 = vmul.f32 %v2751, %v2779
        %v2788 = vmul.f32 %v2747, %v2780
        %v2789 = vmul.f32 %v2752, %v2781
        %v2790 = vmul.f32 %v2748, %v2782
        %v2791 = vmul.f32 %v2753, %v2783
        %v2792 = vmul.f32 %v2749, %v2784
        %v2793 = vadd.f32 %v2721, %v2785
        %v2794 = vadd.f32 %v2722, %v2786
        %v2795 = vadd.f32 %v2723, %v2787
        %v2796 = vadd.f32 %v2724, %v2788
        %v2797 = vadd.f32 %v2725, %v2789
        %v2798 = vadd.f32 %v2726, %v2790
        %v2799 = vadd.f32 %v2727, %v2791
        %v2800 = vadd.f32 %v2728, %v2792
        %2801 = vrot.lane.b32.xlu0 %v2545, 32
        %v2802 = vpop.permute.xlu0 %2801
        %2803 = vrot.lane.b32.xlu0 %v2547, 32
        %v2804 = vpop.permute.xlu0 %2803
        %2805 = vrot.lane.b32.xlu0 %v2549, 32
        %v2806 = vpop.permute.xlu0 %2805
        %2807 = vrot.lane.b32.xlu0 %v2551, 32
        %v2808 = vpop.permute.xlu0 %2807
        %2809 = vrot.lane.b32.xlu0 %v2546, 32
        %v2810 = vpop.permute.xlu0 %2809
        %2811 = vrot.lane.b32.xlu0 %v2548, 32
        %v2812 = vpop.permute.xlu0 %2811
        %2813 = vrot.lane.b32.xlu0 %v2550, 32
        %v2814 = vpop.permute.xlu0 %2813
        %2815 = vrot.lane.b32.xlu0 %v2552, 32
        %v2816 = vpop.permute.xlu0 %2815
        %vm2817 = vcmp.lt.s32.totalorder %v1012, 32
        %v2818 = vsel %vm2817, %v2802, %v2810
        %v2819 = vsel %vm2817, %v2804, %v2812
        %v2820 = vsel %vm2817, %v2806, %v2814
        %v2821 = vsel %vm2817, %v2808, %v2816
        %v2822 = vsel %vm2817, %v2810, %v2802
        %v2823 = vsel %vm2817, %v2812, %v2804
        %v2824 = vsel %vm2817, %v2814, %v2806
        %v2825 = vsel %vm2817, %v2816, %v2808
        %s2826 = scalar_lea.vmem [#allocation10], 22
        %v2827 = vld [vmem:[%s2826] ss:$8 sm:$0x3]
        %v2829 = vperm.slane %v2827, 0
        %v2830 = vperm.slane %v2827, 1
        %2833 = vset.pattern.permute.xlu0 14
        %2834 = vperm.xlu0 %2833, %v2553
        %v2835 = vpop.permute.xlu0 %2834
        %2837 = vset.pattern.permute.xlu0 14
        %2838 = vperm.xlu0 %2837, %v2554
        %v2839 = vpop.permute.xlu0 %2838
        %2841 = vset.pattern.permute.xlu0 14
        %2842 = vperm.xlu0 %2841, %v2555
        %v2843 = vpop.permute.xlu0 %2842
        %2845 = vset.pattern.permute.xlu0 14
        %2846 = vperm.xlu0 %2845, %v2556
        %v2847 = vpop.permute.xlu0 %2846
        %v2849 = vmul.f32 %v2829, %v2835
        %v2850 = vmul.f32 %v2830, %v2835
        %v2851 = vmul.f32 %v2829, %v2839
        %v2852 = vmul.f32 %v2830, %v2839
        %v2853 = vmul.f32 %v2829, %v2843
        %v2854 = vmul.f32 %v2830, %v2843
        %v2855 = vmul.f32 %v2829, %v2847
        %v2856 = vmul.f32 %v2830, %v2847
        %v2857 = vmul.f32 %v2822, %v2849
        %v2858 = vmul.f32 %v2818, %v2850
        %v2859 = vmul.f32 %v2823, %v2851
        %v2860 = vmul.f32 %v2819, %v2852
        %v2861 = vmul.f32 %v2824, %v2853
        %v2862 = vmul.f32 %v2820, %v2854
        %v2863 = vmul.f32 %v2825, %v2855
        %v2864 = vmul.f32 %v2821, %v2856
        %v2865 = vadd.f32 %v2793, %v2857
        %v2866 = vadd.f32 %v2794, %v2858
        %v2867 = vadd.f32 %v2795, %v2859
        %v2868 = vadd.f32 %v2796, %v2860
        %v2869 = vadd.f32 %v2797, %v2861
        %v2870 = vadd.f32 %v2798, %v2862
        %v2871 = vadd.f32 %v2799, %v2863
        %v2872 = vadd.f32 %v2800, %v2864
        %2873 = vrot.lane.b32.xlu0 %v2545, 16
        %v2874 = vpop.permute.xlu0 %2873
        %2875 = vrot.lane.b32.xlu0 %v2547, 16
        %v2876 = vpop.permute.xlu0 %2875
        %2877 = vrot.lane.b32.xlu0 %v2549, 16
        %v2878 = vpop.permute.xlu0 %2877
        %2879 = vrot.lane.b32.xlu0 %v2551, 16
        %v2880 = vpop.permute.xlu0 %2879
        %2881 = vrot.lane.b32.xlu0 %v2546, 16
        %v2882 = vpop.permute.xlu0 %2881
        %2883 = vrot.lane.b32.xlu0 %v2548, 16
        %v2884 = vpop.permute.xlu0 %2883
        %2885 = vrot.lane.b32.xlu0 %v2550, 16
        %v2886 = vpop.permute.xlu0 %2885
        %2887 = vrot.lane.b32.xlu0 %v2552, 16
        %v2888 = vpop.permute.xlu0 %2887
        %vm2889 = vcmp.lt.s32.totalorder %v1012, 16
        %v2890 = vsel %vm2889, %v2874, %v2882
        %v2891 = vsel %vm2889, %v2876, %v2884
        %v2892 = vsel %vm2889, %v2878, %v2886
        %v2893 = vsel %vm2889, %v2880, %v2888
        %v2894 = vsel %vm2889, %v2882, %v2874
        %v2895 = vsel %vm2889, %v2884, %v2876
        %v2896 = vsel %vm2889, %v2886, %v2878
        %v2897 = vsel %vm2889, %v2888, %v2880
        %s2898 = scalar_lea.vmem [#allocation10], 23
        %v2899 = vld [vmem:[%s2898] ss:$8 sm:$0x3]
        %v2901 = vperm.slane %v2899, 0
        %v2902 = vperm.slane %v2899, 1
        %2905 = vset.pattern.permute.xlu0 15
        %2906 = vperm.xlu0 %2905, %v2553
        %v2907 = vpop.permute.xlu0 %2906
        %2909 = vset.pattern.permute.xlu0 15
        %2910 = vperm.xlu0 %2909, %v2554
        %v2911 = vpop.permute.xlu0 %2910
        %2913 = vset.pattern.permute.xlu0 15
        %2914 = vperm.xlu0 %2913, %v2555
        %v2915 = vpop.permute.xlu0 %2914
        %2917 = vset.pattern.permute.xlu0 15
        %2918 = vperm.xlu0 %2917, %v2556
        %v2919 = vpop.permute.xlu0 %2918
        %v2921 = vmul.f32 %v2901, %v2907
        %v2922 = vmul.f32 %v2902, %v2907
        %v2923 = vmul.f32 %v2901, %v2911
        %v2924 = vmul.f32 %v2902, %v2911
        %v2925 = vmul.f32 %v2901, %v2915
        %v2926 = vmul.f32 %v2902, %v2915
        %v2927 = vmul.f32 %v2901, %v2919
        %v2928 = vmul.f32 %v2902, %v2919
        %v2929 = vmul.f32 %v2894, %v2921
        %v2930 = vmul.f32 %v2890, %v2922
        %v2931 = vmul.f32 %v2895, %v2923
        %v2932 = vmul.f32 %v2891, %v2924
        %v2933 = vmul.f32 %v2896, %v2925
        %v2934 = vmul.f32 %v2892, %v2926
        %v2935 = vmul.f32 %v2897, %v2927
        %v2936 = vmul.f32 %v2893, %v2928
        %v2937 = vadd.f32 %v2865, %v2929
        %v2938 = vadd.f32 %v2866, %v2930
        %v2939 = vadd.f32 %v2867, %v2931
        %v2940 = vadd.f32 %v2868, %v2932
        %v2941 = vadd.f32 %v2869, %v2933
        %v2942 = vadd.f32 %v2870, %v2934
        %v2943 = vadd.f32 %v2871, %v2935
        %v2944 = vadd.f32 %v2872, %v2936
        %2945 = vrot.lane.b32.xlu0 %v2545, 112
        %v2946 = vpop.permute.xlu0 %2945
        %2947 = vrot.lane.b32.xlu0 %v2547, 112
        %v2948 = vpop.permute.xlu0 %2947
        %2949 = vrot.lane.b32.xlu0 %v2549, 112
        %v2950 = vpop.permute.xlu0 %2949
        %2951 = vrot.lane.b32.xlu0 %v2551, 112
        %v2952 = vpop.permute.xlu0 %2951
        %2953 = vrot.lane.b32.xlu0 %v2546, 112
        %v2954 = vpop.permute.xlu0 %2953
        %2955 = vrot.lane.b32.xlu0 %v2548, 112
        %v2956 = vpop.permute.xlu0 %2955
        %2957 = vrot.lane.b32.xlu0 %v2550, 112
        %v2958 = vpop.permute.xlu0 %2957
        %2959 = vrot.lane.b32.xlu0 %v2552, 112
        %v2960 = vpop.permute.xlu0 %2959
        %vm2961 = vcmp.lt.s32.totalorder %v1012, 112
        %v2962 = vsel %vm2961, %v2946, %v2954
        %v2963 = vsel %vm2961, %v2948, %v2956
        %v2964 = vsel %vm2961, %v2950, %v2958
        %v2965 = vsel %vm2961, %v2952, %v2960
        %v2966 = vsel %vm2961, %v2954, %v2946
        %v2967 = vsel %vm2961, %v2956, %v2948
        %v2968 = vsel %vm2961, %v2958, %v2950
        %v2969 = vsel %vm2961, %v2960, %v2952
        %s2970 = scalar_lea.vmem [#allocation10], 33
        %v2971 = vld [vmem:[%s2970] ss:$8 sm:$0x3]
        %v2973 = vperm.slane %v2971, 0
        %v2974 = vperm.slane %v2971, 1
        %2977 = vset.pattern.permute.xlu0 17
        %2978 = vperm.xlu0 %2977, %v2553
        %v2979 = vpop.permute.xlu0 %2978
        %2981 = vset.pattern.permute.xlu0 17
        %2982 = vperm.xlu0 %2981, %v2554
        %v2983 = vpop.permute.xlu0 %2982
        %2985 = vset.pattern.permute.xlu0 17
        %2986 = vperm.xlu0 %2985, %v2555
        %v2987 = vpop.permute.xlu0 %2986
        %2989 = vset.pattern.permute.xlu0 17
        %2990 = vperm.xlu0 %2989, %v2556
        %v2991 = vpop.permute.xlu0 %2990
        %v2993 = vmul.f32 %v2973, %v2979
        %v2994 = vmul.f32 %v2974, %v2979
        %v2995 = vmul.f32 %v2973, %v2983
        %v2996 = vmul.f32 %v2974, %v2983
        %v2997 = vmul.f32 %v2973, %v2987
        %v2998 = vmul.f32 %v2974, %v2987
        %v2999 = vmul.f32 %v2973, %v2991
        %v3000 = vmul.f32 %v2974, %v2991
        %v3001 = vmul.f32 %v2962, %v2993
        %v3002 = vmul.f32 %v2966, %v2994
        %v3003 = vmul.f32 %v2963, %v2995
        %v3004 = vmul.f32 %v2967, %v2996
        %v3005 = vmul.f32 %v2964, %v2997
        %v3006 = vmul.f32 %v2968, %v2998
        %v3007 = vmul.f32 %v2965, %v2999
        %v3008 = vmul.f32 %v2969, %v3000
        %v3009 = vadd.f32 %v2937, %v3001
        %v3010 = vadd.f32 %v2938, %v3002
        %v3011 = vadd.f32 %v2939, %v3003
        %v3012 = vadd.f32 %v2940, %v3004
        %v3013 = vadd.f32 %v2941, %v3005
        %v3014 = vadd.f32 %v2942, %v3006
        %v3015 = vadd.f32 %v2943, %v3007
        %v3016 = vadd.f32 %v2944, %v3008
        %3017 = vrot.lane.b32.xlu0 %v2545, 96
        %v3018 = vpop.permute.xlu0 %3017
        %3019 = vrot.lane.b32.xlu0 %v2547, 96
        %v3020 = vpop.permute.xlu0 %3019
        %3021 = vrot.lane.b32.xlu0 %v2549, 96
        %v3022 = vpop.permute.xlu0 %3021
        %3023 = vrot.lane.b32.xlu0 %v2551, 96
        %v3024 = vpop.permute.xlu0 %3023
        %3025 = vrot.lane.b32.xlu0 %v2546, 96
        %v3026 = vpop.permute.xlu0 %3025
        %3027 = vrot.lane.b32.xlu0 %v2548, 96
        %v3028 = vpop.permute.xlu0 %3027
        %3029 = vrot.lane.b32.xlu0 %v2550, 96
        %v3030 = vpop.permute.xlu0 %3029
        %3031 = vrot.lane.b32.xlu0 %v2552, 96
        %v3032 = vpop.permute.xlu0 %3031
        %vm3033 = vcmp.lt.s32.totalorder %v1012, 96
        %v3034 = vsel %vm3033, %v3018, %v3026
        %v3035 = vsel %vm3033, %v3020, %v3028
        %v3036 = vsel %vm3033, %v3022, %v3030
        %v3037 = vsel %vm3033, %v3024, %v3032
        %v3038 = vsel %vm3033, %v3026, %v3018
        %v3039 = vsel %vm3033, %v3028, %v3020
        %v3040 = vsel %vm3033, %v3030, %v3022
        %v3041 = vsel %vm3033, %v3032, %v3024
        %s3042 = scalar_lea.vmem [#allocation10], 34
        %v3043 = vld [vmem:[%s3042] ss:$8 sm:$0x3]
        %v3045 = vperm.slane %v3043, 0
        %v3046 = vperm.slane %v3043, 1
        %3049 = vset.pattern.permute.xlu0 18
        %3050 = vperm.xlu0 %3049, %v2553
        %v3051 = vpop.permute.xlu0 %3050
        %3053 = vset.pattern.permute.xlu0 18
        %3054 = vperm.xlu0 %3053, %v2554
        %v3055 = vpop.permute.xlu0 %3054
        %3057 = vset.pattern.permute.xlu0 18
        %3058 = vperm.xlu0 %3057, %v2555
        %v3059 = vpop.permute.xlu0 %3058
        %3061 = vset.pattern.permute.xlu0 18
        %3062 = vperm.xlu0 %3061, %v2556
        %v3063 = vpop.permute.xlu0 %3062
        %v3065 = vmul.f32 %v3045, %v3051
        %v3066 = vmul.f32 %v3046, %v3051
        %v3067 = vmul.f32 %v3045, %v3055
        %v3068 = vmul.f32 %v3046, %v3055
        %v3069 = vmul.f32 %v3045, %v3059
        %v3070 = vmul.f32 %v3046, %v3059
        %v3071 = vmul.f32 %v3045, %v3063
        %v3072 = vmul.f32 %v3046, %v3063
        %v3073 = vmul.f32 %v3034, %v3065
        %v3074 = vmul.f32 %v3038, %v3066
        %v3075 = vmul.f32 %v3035, %v3067
        %v3076 = vmul.f32 %v3039, %v3068
        %v3077 = vmul.f32 %v3036, %v3069
        %v3078 = vmul.f32 %v3040, %v3070
        %v3079 = vmul.f32 %v3037, %v3071
        %v3080 = vmul.f32 %v3041, %v3072
        %v3081 = vadd.f32 %v3009, %v3073
        %v3082 = vadd.f32 %v3010, %v3074
        %v3083 = vadd.f32 %v3011, %v3075
        %v3084 = vadd.f32 %v3012, %v3076
        %v3085 = vadd.f32 %v3013, %v3077
        %v3086 = vadd.f32 %v3014, %v3078
        %v3087 = vadd.f32 %v3015, %v3079
        %v3088 = vadd.f32 %v3016, %v3080
        %s3089 = scalar_lea.vmem [#allocation10], 35
        %v3090 = vld [vmem:[%s3089] ss:$8 sm:$0x3]
        %v3092 = vperm.slane %v3090, 0
        %v3093 = vperm.slane %v3090, 1
        %3096 = vset.pattern.permute.xlu0 19
        %3097 = vperm.xlu0 %3096, %v2553
        %v3098 = vpop.permute.xlu0 %3097
        %3100 = vset.pattern.permute.xlu0 19
        %3101 = vperm.xlu0 %3100, %v2554
        %v3102 = vpop.permute.xlu0 %3101
        %3104 = vset.pattern.permute.xlu0 19
        %3105 = vperm.xlu0 %3104, %v2555
        %v3106 = vpop.permute.xlu0 %3105
        %3108 = vset.pattern.permute.xlu0 19
        %3109 = vperm.xlu0 %3108, %v2556
        %v3110 = vpop.permute.xlu0 %3109
        %v3112 = vmul.f32 %v3092, %v3098
        %v3113 = vmul.f32 %v3093, %v3098
        %v3114 = vmul.f32 %v3092, %v3102
        %v3115 = vmul.f32 %v3093, %v3102
        %v3116 = vmul.f32 %v3092, %v3106
        %v3117 = vmul.f32 %v3093, %v3106
        %v3118 = vmul.f32 %v3092, %v3110
        %v3119 = vmul.f32 %v3093, %v3110
        %v3120 = vmul.f32 %v2602, %v3112
        %v3121 = vmul.f32 %v2606, %v3113
        %v3122 = vmul.f32 %v2603, %v3114
        %v3123 = vmul.f32 %v2607, %v3115
        %v3124 = vmul.f32 %v2604, %v3116
        %v3125 = vmul.f32 %v2608, %v3117
        %v3126 = vmul.f32 %v2605, %v3118
        %v3127 = vmul.f32 %v2609, %v3119
        %v3128 = vadd.f32 %v3081, %v3120
        %v3129 = vadd.f32 %v3082, %v3121
        %v3130 = vadd.f32 %v3083, %v3122
        %v3131 = vadd.f32 %v3084, %v3123
        %v3132 = vadd.f32 %v3085, %v3124
        %v3133 = vadd.f32 %v3086, %v3125
        %v3134 = vadd.f32 %v3087, %v3126
        %v3135 = vadd.f32 %v3088, %v3127
        %s3136 = scalar_lea.vmem [#allocation10], 36
        %v3137 = vld [vmem:[%s3136] ss:$8 sm:$0x3]
        %v3139 = vperm.slane %v3137, 0
        %v3140 = vperm.slane %v3137, 1
        %3143 = vset.pattern.permute.xlu0 20
        %3144 = vperm.xlu0 %3143, %v2553
        %v3145 = vpop.permute.xlu0 %3144
        %3147 = vset.pattern.permute.xlu0 20
        %3148 = vperm.xlu0 %3147, %v2554
        %v3149 = vpop.permute.xlu0 %3148
        %3151 = vset.pattern.permute.xlu0 20
        %3152 = vperm.xlu0 %3151, %v2555
        %v3153 = vpop.permute.xlu0 %3152
        %3155 = vset.pattern.permute.xlu0 20
        %3156 = vperm.xlu0 %3155, %v2556
        %v3157 = vpop.permute.xlu0 %3156
        %v3159 = vmul.f32 %v3139, %v3145
        %v3160 = vmul.f32 %v3140, %v3145
        %v3161 = vmul.f32 %v3139, %v3149
        %v3162 = vmul.f32 %v3140, %v3149
        %v3163 = vmul.f32 %v3139, %v3153
        %v3164 = vmul.f32 %v3140, %v3153
        %v3165 = vmul.f32 %v3139, %v3157
        %v3166 = vmul.f32 %v3140, %v3157
        %v3167 = vmul.f32 %v2674, %v3159
        %v3168 = vmul.f32 %v2678, %v3160
        %v3169 = vmul.f32 %v2675, %v3161
        %v3170 = vmul.f32 %v2679, %v3162
        %v3171 = vmul.f32 %v2676, %v3163
        %v3172 = vmul.f32 %v2680, %v3164
        %v3173 = vmul.f32 %v2677, %v3165
        %v3174 = vmul.f32 %v2681, %v3166
        %v3175 = vadd.f32 %v3128, %v3167
        %v3176 = vadd.f32 %v3129, %v3168
        %v3177 = vadd.f32 %v3130, %v3169
        %v3178 = vadd.f32 %v3131, %v3170
        %v3179 = vadd.f32 %v3132, %v3171
        %v3180 = vadd.f32 %v3133, %v3172
        %v3181 = vadd.f32 %v3134, %v3173
        %v3182 = vadd.f32 %v3135, %v3174
        %s3183 = scalar_lea.vmem [#allocation10], 37
        %v3184 = vld [vmem:[%s3183] ss:$8 sm:$0x3]
        %v3186 = vperm.slane %v3184, 0
        %v3187 = vperm.slane %v3184, 1
        %3190 = vset.pattern.permute.xlu0 21
        %3191 = vperm.xlu0 %3190, %v2553
        %v3192 = vpop.permute.xlu0 %3191
        %3194 = vset.pattern.permute.xlu0 21
        %3195 = vperm.xlu0 %3194, %v2554
        %v3196 = vpop.permute.xlu0 %3195
        %3198 = vset.pattern.permute.xlu0 21
        %3199 = vperm.xlu0 %3198, %v2555
        %v3200 = vpop.permute.xlu0 %3199
        %3202 = vset.pattern.permute.xlu0 21
        %3203 = vperm.xlu0 %3202, %v2556
        %v3204 = vpop.permute.xlu0 %3203
        %v3206 = vmul.f32 %v3186, %v3192
        %v3207 = vmul.f32 %v3187, %v3192
        %v3208 = vmul.f32 %v3186, %v3196
        %v3209 = vmul.f32 %v3187, %v3196
        %v3210 = vmul.f32 %v3186, %v3200
        %v3211 = vmul.f32 %v3187, %v3200
        %v3212 = vmul.f32 %v3186, %v3204
        %v3213 = vmul.f32 %v3187, %v3204
        %v3214 = vmul.f32 %v2746, %v3206
        %v3215 = vmul.f32 %v2750, %v3207
        %v3216 = vmul.f32 %v2747, %v3208
        %v3217 = vmul.f32 %v2751, %v3209
        %v3218 = vmul.f32 %v2748, %v3210
        %v3219 = vmul.f32 %v2752, %v3211
        %v3220 = vmul.f32 %v2749, %v3212
        %v3221 = vmul.f32 %v2753, %v3213
        %v3222 = vadd.f32 %v3175, %v3214
        %v3223 = vadd.f32 %v3176, %v3215
        %v3224 = vadd.f32 %v3177, %v3216
        %v3225 = vadd.f32 %v3178, %v3217
        %v3226 = vadd.f32 %v3179, %v3218
        %v3227 = vadd.f32 %v3180, %v3219
        %v3228 = vadd.f32 %v3181, %v3220
        %v3229 = vadd.f32 %v3182, %v3221
        %v3230 = vld [vmem:[%s6] sm:$0xff]
        %v3231 = vld [vmem:[%s6 + $0x8] sm:$0xff]
        %v3232 = vld [vmem:[%s6 + $0x10] sm:$0xff]
        %v3233 = vld [vmem:[%s6 + $0x18] sm:$0xff]
        %3235 = vset.pattern.permute.xlu0 2
        %3236 = vperm.xlu0 %3235, %v3230
        %v3237 = vpop.permute.xlu0 %3236
        %3240 = vset.pattern.permute.xlu0 2
        %3241 = vperm.xlu0 %3240, %v3231
        %v3242 = vpop.permute.xlu0 %3241
        %3245 = vset.pattern.permute.xlu0 2
        %3246 = vperm.xlu0 %3245, %v3232
        %v3247 = vpop.permute.xlu0 %3246
        %3250 = vset.pattern.permute.xlu0 2
        %3251 = vperm.xlu0 %3250, %v3233
        %v3252 = vpop.permute.xlu0 %3251
        %v3254 = vadd.f32 %v3222, %v3237
        %v3255 = vadd.f32 %v3223, %v3237
        %v3256 = vadd.f32 %v3224, %v3242
        %v3257 = vadd.f32 %v3225, %v3242
        %v3258 = vadd.f32 %v3226, %v3247
        %v3259 = vadd.f32 %v3227, %v3247
        %v3260 = vadd.f32 %v3228, %v3252
        %v3261 = vadd.f32 %v3229, %v3252
        %3262 = vst [vmem:[%s954] sm:$0xff] %v3254
        %3263 = vst [vmem:[%s954 + $0x8] sm:$0xff] %v3255
        %3264 = vst [vmem:[%s954 + $0x10] sm:$0xff] %v3256
        %3265 = vst [vmem:[%s954 + $0x18] sm:$0xff] %v3257
        %3266 = vst [vmem:[%s954 + $0x20] sm:$0xff] %v3258
        %3267 = vst [vmem:[%s954 + $0x28] sm:$0xff] %v3259
        %3268 = vst [vmem:[%s954 + $0x30] sm:$0xff] %v3260
        %3269 = vst [vmem:[%s954 + $0x38] sm:$0xff] %v3261
        %v3270 = vld [vmem:[%s2536] sm:$0xff]
        %v3271 = vld [vmem:[%s2536 + $0x8] sm:$0xff]
        %v3272 = vld [vmem:[%s2536 + $0x10] sm:$0xff]
        %v3273 = vld [vmem:[%s2536 + $0x18] sm:$0xff]
        %v3274 = vld [vmem:[%s2536 + $0x20] sm:$0xff]
        %v3275 = vld [vmem:[%s2536 + $0x28] sm:$0xff]
        %v3276 = vld [vmem:[%s2536 + $0x30] sm:$0xff]
        %v3277 = vld [vmem:[%s2536 + $0x38] sm:$0xff]
        %v3278 = vld [vmem:[%s1769] sm:$0xff]
        %v3279 = vld [vmem:[%s1769 + $0x8] sm:$0xff]
        %v3280 = vld [vmem:[%s1769 + $0x10] sm:$0xff]
        %v3281 = vld [vmem:[%s1769 + $0x18] sm:$0xff]
        %3283 = vset.pattern.permute.xlu0 16
        %3284 = vperm.xlu0 %3283, %v3278
        %v3285 = vpop.permute.xlu0 %3284
        %3288 = vset.pattern.permute.xlu0 16
        %3289 = vperm.xlu0 %3288, %v3279
        %v3290 = vpop.permute.xlu0 %3289
        %3293 = vset.pattern.permute.xlu0 16
        %3294 = vperm.xlu0 %3293, %v3280
        %v3295 = vpop.permute.xlu0 %3294
        %3298 = vset.pattern.permute.xlu0 16
        %3299 = vperm.xlu0 %3298, %v3281
        %v3300 = vpop.permute.xlu0 %3299
        %v3302 = vmul.f32 %v3270, %v3285
        %v3303 = vmul.f32 %v3271, %v3285
        %v3304 = vmul.f32 %v3272, %v3290
        %v3305 = vmul.f32 %v3273, %v3290
        %v3306 = vmul.f32 %v3274, %v3295
        %v3307 = vmul.f32 %v3275, %v3295
        %v3308 = vmul.f32 %v3276, %v3300
        %v3309 = vmul.f32 %v3277, %v3300
        %3310 = vrot.lane.b32.xlu0 %v3270, 80
        %v3311 = vpop.permute.xlu0 %3310
        %3312 = vrot.lane.b32.xlu0 %v3272, 80
        %v3313 = vpop.permute.xlu0 %3312
        %3314 = vrot.lane.b32.xlu0 %v3274, 80
        %v3315 = vpop.permute.xlu0 %3314
        %3316 = vrot.lane.b32.xlu0 %v3276, 80
        %v3317 = vpop.permute.xlu0 %3316
        %3318 = vrot.lane.b32.xlu0 %v3271, 80
        %v3319 = vpop.permute.xlu0 %3318
        %3320 = vrot.lane.b32.xlu0 %v3273, 80
        %v3321 = vpop.permute.xlu0 %3320
        %3322 = vrot.lane.b32.xlu0 %v3275, 80
        %v3323 = vpop.permute.xlu0 %3322
        %3324 = vrot.lane.b32.xlu0 %v3277, 80
        %v3325 = vpop.permute.xlu0 %3324
        %v3326 = vsel %vm2601, %v3311, %v3319
        %v3327 = vsel %vm2601, %v3313, %v3321
        %v3328 = vsel %vm2601, %v3315, %v3323
        %v3329 = vsel %vm2601, %v3317, %v3325
        %v3330 = vsel %vm2601, %v3319, %v3311
        %v3331 = vsel %vm2601, %v3321, %v3313
        %v3332 = vsel %vm2601, %v3323, %v3315
        %v3333 = vsel %vm2601, %v3325, %v3317
        %v3334 = vld [vmem:[%s2610] ss:$8 sm:$0x3]
        %v3336 = vperm.slane %v3334, 0
        %v3337 = vperm.slane %v3334, 1
        %3340 = vset.pattern.permute.xlu0 11
        %3341 = vperm.xlu0 %3340, %v3278
        %v3342 = vpop.permute.xlu0 %3341
        %3344 = vset.pattern.permute.xlu0 11
        %3345 = vperm.xlu0 %3344, %v3279
        %v3346 = vpop.permute.xlu0 %3345
        %3348 = vset.pattern.permute.xlu0 11
        %3349 = vperm.xlu0 %3348, %v3280
        %v3350 = vpop.permute.xlu0 %3349
        %3352 = vset.pattern.permute.xlu0 11
        %3353 = vperm.xlu0 %3352, %v3281
        %v3354 = vpop.permute.xlu0 %3353
        %v3356 = vmul.f32 %v3336, %v3342
        %v3357 = vmul.f32 %v3337, %v3342
        %v3358 = vmul.f32 %v3336, %v3346
        %v3359 = vmul.f32 %v3337, %v3346
        %v3360 = vmul.f32 %v3336, %v3350
        %v3361 = vmul.f32 %v3337, %v3350
        %v3362 = vmul.f32 %v3336, %v3354
        %v3363 = vmul.f32 %v3337, %v3354
        %v3364 = vmul.f32 %v3330, %v3356
        %v3365 = vmul.f32 %v3326, %v3357
        %v3366 = vmul.f32 %v3331, %v3358
        %v3367 = vmul.f32 %v3327, %v3359
        %v3368 = vmul.f32 %v3332, %v3360
        %v3369 = vmul.f32 %v3328, %v3361
        %v3370 = vmul.f32 %v3333, %v3362
        %v3371 = vmul.f32 %v3329, %v3363
        %v3372 = vadd.f32 %v3302, %v3364
        %v3373 = vadd.f32 %v3303, %v3365
        %v3374 = vadd.f32 %v3304, %v3366
        %v3375 = vadd.f32 %v3305, %v3367
        %v3376 = vadd.f32 %v3306, %v3368
        %v3377 = vadd.f32 %v3307, %v3369
        %v3378 = vadd.f32 %v3308, %v3370
        %v3379 = vadd.f32 %v3309, %v3371
        %3380 = vrot.lane.b32.xlu0 %v3270, 64
        %v3381 = vpop.permute.xlu0 %3380
        %3382 = vrot.lane.b32.xlu0 %v3272, 64
        %v3383 = vpop.permute.xlu0 %3382
        %3384 = vrot.lane.b32.xlu0 %v3274, 64
        %v3385 = vpop.permute.xlu0 %3384
        %3386 = vrot.lane.b32.xlu0 %v3276, 64
        %v3387 = vpop.permute.xlu0 %3386
        %3388 = vrot.lane.b32.xlu0 %v3271, 64
        %v3389 = vpop.permute.xlu0 %3388
        %3390 = vrot.lane.b32.xlu0 %v3273, 64
        %v3391 = vpop.permute.xlu0 %3390
        %3392 = vrot.lane.b32.xlu0 %v3275, 64
        %v3393 = vpop.permute.xlu0 %3392
        %3394 = vrot.lane.b32.xlu0 %v3277, 64
        %v3395 = vpop.permute.xlu0 %3394
        %v3396 = vsel %vm2673, %v3381, %v3389
        %v3397 = vsel %vm2673, %v3383, %v3391
        %v3398 = vsel %vm2673, %v3385, %v3393
        %v3399 = vsel %vm2673, %v3387, %v3395
        %v3400 = vsel %vm2673, %v3389, %v3381
        %v3401 = vsel %vm2673, %v3391, %v3383
        %v3402 = vsel %vm2673, %v3393, %v3385
        %v3403 = vsel %vm2673, %v3395, %v3387
        %v3404 = vld [vmem:[%s2682] ss:$8 sm:$0x3]
        %v3406 = vperm.slane %v3404, 0
        %v3407 = vperm.slane %v3404, 1
        %3410 = vset.pattern.permute.xlu0 12
        %3411 = vperm.xlu0 %3410, %v3278
        %v3412 = vpop.permute.xlu0 %3411
        %3414 = vset.pattern.permute.xlu0 12
        %3415 = vperm.xlu0 %3414, %v3279
        %v3416 = vpop.permute.xlu0 %3415
        %3418 = vset.pattern.permute.xlu0 12
        %3419 = vperm.xlu0 %3418, %v3280
        %v3420 = vpop.permute.xlu0 %3419
        %3422 = vset.pattern.permute.xlu0 12
        %3423 = vperm.xlu0 %3422, %v3281
        %v3424 = vpop.permute.xlu0 %3423
        %v3426 = vmul.f32 %v3406, %v3412
        %v3427 = vmul.f32 %v3407, %v3412
        %v3428 = vmul.f32 %v3406, %v3416
        %v3429 = vmul.f32 %v3407, %v3416
        %v3430 = vmul.f32 %v3406, %v3420
        %v3431 = vmul.f32 %v3407, %v3420
        %v3432 = vmul.f32 %v3406, %v3424
        %v3433 = vmul.f32 %v3407, %v3424
        %v3434 = vmul.f32 %v3400, %v3426
        %v3435 = vmul.f32 %v3396, %v3427
        %v3436 = vmul.f32 %v3401, %v3428
        %v3437 = vmul.f32 %v3397, %v3429
        %v3438 = vmul.f32 %v3402, %v3430
        %v3439 = vmul.f32 %v3398, %v3431
        %v3440 = vmul.f32 %v3403, %v3432
        %v3441 = vmul.f32 %v3399, %v3433
        %v3442 = vadd.f32 %v3372, %v3434
        %v3443 = vadd.f32 %v3373, %v3435
        %v3444 = vadd.f32 %v3374, %v3436
        %v3445 = vadd.f32 %v3375, %v3437
        %v3446 = vadd.f32 %v3376, %v3438
        %v3447 = vadd.f32 %v3377, %v3439
        %v3448 = vadd.f32 %v3378, %v3440
        %v3449 = vadd.f32 %v3379, %v3441
        %3450 = vrot.lane.b32.xlu0 %v3270, 48
        %v3451 = vpop.permute.xlu0 %3450
        %3452 = vrot.lane.b32.xlu0 %v3272, 48
        %v3453 = vpop.permute.xlu0 %3452
        %3454 = vrot.lane.b32.xlu0 %v3274, 48
        %v3455 = vpop.permute.xlu0 %3454
        %3456 = vrot.lane.b32.xlu0 %v3276, 48
        %v3457 = vpop.permute.xlu0 %3456
        %3458 = vrot.lane.b32.xlu0 %v3271, 48
        %v3459 = vpop.permute.xlu0 %3458
        %3460 = vrot.lane.b32.xlu0 %v3273, 48
        %v3461 = vpop.permute.xlu0 %3460
        %3462 = vrot.lane.b32.xlu0 %v3275, 48
        %v3463 = vpop.permute.xlu0 %3462
        %3464 = vrot.lane.b32.xlu0 %v3277, 48
        %v3465 = vpop.permute.xlu0 %3464
        %v3466 = vsel %vm2745, %v3451, %v3459
        %v3467 = vsel %vm2745, %v3453, %v3461
        %v3468 = vsel %vm2745, %v3455, %v3463
        %v3469 = vsel %vm2745, %v3457, %v3465
        %v3470 = vsel %vm2745, %v3459, %v3451
        %v3471 = vsel %vm2745, %v3461, %v3453
        %v3472 = vsel %vm2745, %v3463, %v3455
        %v3473 = vsel %vm2745, %v3465, %v3457
        %v3474 = vld [vmem:[%s2754] ss:$8 sm:$0x3]
        %v3476 = vperm.slane %v3474, 0
        %v3477 = vperm.slane %v3474, 1
        %3480 = vset.pattern.permute.xlu0 13
        %3481 = vperm.xlu0 %3480, %v3278
        %v3482 = vpop.permute.xlu0 %3481
        %3484 = vset.pattern.permute.xlu0 13
        %3485 = vperm.xlu0 %3484, %v3279
        %v3486 = vpop.permute.xlu0 %3485
        %3488 = vset.pattern.permute.xlu0 13
        %3489 = vperm.xlu0 %3488, %v3280
        %v3490 = vpop.permute.xlu0 %3489
        %3492 = vset.pattern.permute.xlu0 13
        %3493 = vperm.xlu0 %3492, %v3281
        %v3494 = vpop.permute.xlu0 %3493
        %v3496 = vmul.f32 %v3476, %v3482
        %v3497 = vmul.f32 %v3477, %v3482
        %v3498 = vmul.f32 %v3476, %v3486
        %v3499 = vmul.f32 %v3477, %v3486
        %v3500 = vmul.f32 %v3476, %v3490
        %v3501 = vmul.f32 %v3477, %v3490
        %v3502 = vmul.f32 %v3476, %v3494
        %v3503 = vmul.f32 %v3477, %v3494
        %v3504 = vmul.f32 %v3470, %v3496
        %v3505 = vmul.f32 %v3466, %v3497
        %v3506 = vmul.f32 %v3471, %v3498
        %v3507 = vmul.f32 %v3467, %v3499
        %v3508 = vmul.f32 %v3472, %v3500
        %v3509 = vmul.f32 %v3468, %v3501
        %v3510 = vmul.f32 %v3473, %v3502
        %v3511 = vmul.f32 %v3469, %v3503
        %v3512 = vadd.f32 %v3442, %v3504
        %v3513 = vadd.f32 %v3443, %v3505
        %v3514 = vadd.f32 %v3444, %v3506
        %v3515 = vadd.f32 %v3445, %v3507
        %v3516 = vadd.f32 %v3446, %v3508
        %v3517 = vadd.f32 %v3447, %v3509
        %v3518 = vadd.f32 %v3448, %v3510
        %v3519 = vadd.f32 %v3449, %v3511
        %3520 = vrot.lane.b32.xlu0 %v3270, 32
        %v3521 = vpop.permute.xlu0 %3520
        %3522 = vrot.lane.b32.xlu0 %v3272, 32
        %v3523 = vpop.permute.xlu0 %3522
        %3524 = vrot.lane.b32.xlu0 %v3274, 32
        %v3525 = vpop.permute.xlu0 %3524
        %3526 = vrot.lane.b32.xlu0 %v3276, 32
        %v3527 = vpop.permute.xlu0 %3526
        %3528 = vrot.lane.b32.xlu0 %v3271, 32
        %v3529 = vpop.permute.xlu0 %3528
        %3530 = vrot.lane.b32.xlu0 %v3273, 32
        %v3531 = vpop.permute.xlu0 %3530
        %3532 = vrot.lane.b32.xlu0 %v3275, 32
        %v3533 = vpop.permute.xlu0 %3532
        %3534 = vrot.lane.b32.xlu0 %v3277, 32
        %v3535 = vpop.permute.xlu0 %3534
        %v3536 = vsel %vm2817, %v3521, %v3529
        %v3537 = vsel %vm2817, %v3523, %v3531
        %v3538 = vsel %vm2817, %v3525, %v3533
        %v3539 = vsel %vm2817, %v3527, %v3535
        %v3540 = vsel %vm2817, %v3529, %v3521
        %v3541 = vsel %vm2817, %v3531, %v3523
        %v3542 = vsel %vm2817, %v3533, %v3525
        %v3543 = vsel %vm2817, %v3535, %v3527
        %v3544 = vld [vmem:[%s2826] ss:$8 sm:$0x3]
        %v3546 = vperm.slane %v3544, 0
        %v3547 = vperm.slane %v3544, 1
        %3550 = vset.pattern.permute.xlu0 14
        %3551 = vperm.xlu0 %3550, %v3278
        %v3552 = vpop.permute.xlu0 %3551
        %3554 = vset.pattern.permute.xlu0 14
        %3555 = vperm.xlu0 %3554, %v3279
        %v3556 = vpop.permute.xlu0 %3555
        %3558 = vset.pattern.permute.xlu0 14
        %3559 = vperm.xlu0 %3558, %v3280
        %v3560 = vpop.permute.xlu0 %3559
        %3562 = vset.pattern.permute.xlu0 14
        %3563 = vperm.xlu0 %3562, %v3281
        %v3564 = vpop.permute.xlu0 %3563
        %v3566 = vmul.f32 %v3546, %v3552
        %v3567 = vmul.f32 %v3547, %v3552
        %v3568 = vmul.f32 %v3546, %v3556
        %v3569 = vmul.f32 %v3547, %v3556
        %v3570 = vmul.f32 %v3546, %v3560
        %v3571 = vmul.f32 %v3547, %v3560
        %v3572 = vmul.f32 %v3546, %v3564
        %v3573 = vmul.f32 %v3547, %v3564
        %v3574 = vmul.f32 %v3540, %v3566
        %v3575 = vmul.f32 %v3536, %v3567
        %v3576 = vmul.f32 %v3541, %v3568
        %v3577 = vmul.f32 %v3537, %v3569
        %v3578 = vmul.f32 %v3542, %v3570
        %v3579 = vmul.f32 %v3538, %v3571
        %v3580 = vmul.f32 %v3543, %v3572
        %v3581 = vmul.f32 %v3539, %v3573
        %v3582 = vadd.f32 %v3512, %v3574
        %v3583 = vadd.f32 %v3513, %v3575
        %v3584 = vadd.f32 %v3514, %v3576
        %v3585 = vadd.f32 %v3515, %v3577
        %v3586 = vadd.f32 %v3516, %v3578
        %v3587 = vadd.f32 %v3517, %v3579
        %v3588 = vadd.f32 %v3518, %v3580
        %v3589 = vadd.f32 %v3519, %v3581
        %3590 = vrot.lane.b32.xlu0 %v3270, 16
        %v3591 = vpop.permute.xlu0 %3590
        %3592 = vrot.lane.b32.xlu0 %v3272, 16
        %v3593 = vpop.permute.xlu0 %3592
        %3594 = vrot.lane.b32.xlu0 %v3274, 16
        %v3595 = vpop.permute.xlu0 %3594
        %3596 = vrot.lane.b32.xlu0 %v3276, 16
        %v3597 = vpop.permute.xlu0 %3596
        %3598 = vrot.lane.b32.xlu0 %v3271, 16
        %v3599 = vpop.permute.xlu0 %3598
        %3600 = vrot.lane.b32.xlu0 %v3273, 16
        %v3601 = vpop.permute.xlu0 %3600
        %3602 = vrot.lane.b32.xlu0 %v3275, 16
        %v3603 = vpop.permute.xlu0 %3602
        %3604 = vrot.lane.b32.xlu0 %v3277, 16
        %v3605 = vpop.permute.xlu0 %3604
        %v3606 = vsel %vm2889, %v3591, %v3599
        %v3607 = vsel %vm2889, %v3593, %v3601
        %v3608 = vsel %vm2889, %v3595, %v3603
        %v3609 = vsel %vm2889, %v3597, %v3605
        %v3610 = vsel %vm2889, %v3599, %v3591
        %v3611 = vsel %vm2889, %v3601, %v3593
        %v3612 = vsel %vm2889, %v3603, %v3595
        %v3613 = vsel %vm2889, %v3605, %v3597
        %v3614 = vld [vmem:[%s2898] ss:$8 sm:$0x3]
        %v3616 = vperm.slane %v3614, 0
        %v3617 = vperm.slane %v3614, 1
        %3620 = vset.pattern.permute.xlu0 15
        %3621 = vperm.xlu0 %3620, %v3278
        %v3622 = vpop.permute.xlu0 %3621
        %3624 = vset.pattern.permute.xlu0 15
        %3625 = vperm.xlu0 %3624, %v3279
        %v3626 = vpop.permute.xlu0 %3625
        %3628 = vset.pattern.permute.xlu0 15
        %3629 = vperm.xlu0 %3628, %v3280
        %v3630 = vpop.permute.xlu0 %3629
        %3632 = vset.pattern.permute.xlu0 15
        %3633 = vperm.xlu0 %3632, %v3281
        %v3634 = vpop.permute.xlu0 %3633
        %v3636 = vmul.f32 %v3616, %v3622
        %v3637 = vmul.f32 %v3617, %v3622
        %v3638 = vmul.f32 %v3616, %v3626
        %v3639 = vmul.f32 %v3617, %v3626
        %v3640 = vmul.f32 %v3616, %v3630
        %v3641 = vmul.f32 %v3617, %v3630
        %v3642 = vmul.f32 %v3616, %v3634
        %v3643 = vmul.f32 %v3617, %v3634
        %v3644 = vmul.f32 %v3610, %v3636
        %v3645 = vmul.f32 %v3606, %v3637
        %v3646 = vmul.f32 %v3611, %v3638
        %v3647 = vmul.f32 %v3607, %v3639
        %v3648 = vmul.f32 %v3612, %v3640
        %v3649 = vmul.f32 %v3608, %v3641
        %v3650 = vmul.f32 %v3613, %v3642
        %v3651 = vmul.f32 %v3609, %v3643
        %v3652 = vadd.f32 %v3582, %v3644
        %v3653 = vadd.f32 %v3583, %v3645
        %v3654 = vadd.f32 %v3584, %v3646
        %v3655 = vadd.f32 %v3585, %v3647
        %v3656 = vadd.f32 %v3586, %v3648
        %v3657 = vadd.f32 %v3587, %v3649
        %v3658 = vadd.f32 %v3588, %v3650
        %v3659 = vadd.f32 %v3589, %v3651
        %3660 = vrot.lane.b32.xlu0 %v3270, 112
        %v3661 = vpop.permute.xlu0 %3660
        %3662 = vrot.lane.b32.xlu0 %v3272, 112
        %v3663 = vpop.permute.xlu0 %3662
        %3664 = vrot.lane.b32.xlu0 %v3274, 112
        %v3665 = vpop.permute.xlu0 %3664
        %3666 = vrot.lane.b32.xlu0 %v3276, 112
        %v3667 = vpop.permute.xlu0 %3666
        %3668 = vrot.lane.b32.xlu0 %v3271, 112
        %v3669 = vpop.permute.xlu0 %3668
        %3670 = vrot.lane.b32.xlu0 %v3273, 112
        %v3671 = vpop.permute.xlu0 %3670
        %3672 = vrot.lane.b32.xlu0 %v3275, 112
        %v3673 = vpop.permute.xlu0 %3672
        %3674 = vrot.lane.b32.xlu0 %v3277, 112
        %v3675 = vpop.permute.xlu0 %3674
        %v3676 = vsel %vm2961, %v3661, %v3669
        %v3677 = vsel %vm2961, %v3663, %v3671
        %v3678 = vsel %vm2961, %v3665, %v3673
        %v3679 = vsel %vm2961, %v3667, %v3675
        %v3680 = vsel %vm2961, %v3669, %v3661
        %v3681 = vsel %vm2961, %v3671, %v3663
        %v3682 = vsel %vm2961, %v3673, %v3665
        %v3683 = vsel %vm2961, %v3675, %v3667
        %v3684 = vld [vmem:[%s2970] ss:$8 sm:$0x3]
        %v3686 = vperm.slane %v3684, 0
        %v3687 = vperm.slane %v3684, 1
        %3690 = vset.pattern.permute.xlu0 17
        %3691 = vperm.xlu0 %3690, %v3278
        %v3692 = vpop.permute.xlu0 %3691
        %3694 = vset.pattern.permute.xlu0 17
        %3695 = vperm.xlu0 %3694, %v3279
        %v3696 = vpop.permute.xlu0 %3695
        %3698 = vset.pattern.permute.xlu0 17
        %3699 = vperm.xlu0 %3698, %v3280
        %v3700 = vpop.permute.xlu0 %3699
        %3702 = vset.pattern.permute.xlu0 17
        %3703 = vperm.xlu0 %3702, %v3281
        %v3704 = vpop.permute.xlu0 %3703
        %v3706 = vmul.f32 %v3686, %v3692
        %v3707 = vmul.f32 %v3687, %v3692
        %v3708 = vmul.f32 %v3686, %v3696
        %v3709 = vmul.f32 %v3687, %v3696
        %v3710 = vmul.f32 %v3686, %v3700
        %v3711 = vmul.f32 %v3687, %v3700
        %v3712 = vmul.f32 %v3686, %v3704
        %v3713 = vmul.f32 %v3687, %v3704
        %v3714 = vmul.f32 %v3676, %v3706
        %v3715 = vmul.f32 %v3680, %v3707
        %v3716 = vmul.f32 %v3677, %v3708
        %v3717 = vmul.f32 %v3681, %v3709
        %v3718 = vmul.f32 %v3678, %v3710
        %v3719 = vmul.f32 %v3682, %v3711
        %v3720 = vmul.f32 %v3679, %v3712
        %v3721 = vmul.f32 %v3683, %v3713
        %v3722 = vadd.f32 %v3652, %v3714
        %v3723 = vadd.f32 %v3653, %v3715
        %v3724 = vadd.f32 %v3654, %v3716
        %v3725 = vadd.f32 %v3655, %v3717
        %v3726 = vadd.f32 %v3656, %v3718
        %v3727 = vadd.f32 %v3657, %v3719
        %v3728 = vadd.f32 %v3658, %v3720
        %v3729 = vadd.f32 %v3659, %v3721
        %3730 = vrot.lane.b32.xlu0 %v3270, 96
        %v3731 = vpop.permute.xlu0 %3730
        %3732 = vrot.lane.b32.xlu0 %v3272, 96
        %v3733 = vpop.permute.xlu0 %3732
        %3734 = vrot.lane.b32.xlu0 %v3274, 96
        %v3735 = vpop.permute.xlu0 %3734
        %3736 = vrot.lane.b32.xlu0 %v3276, 96
        %v3737 = vpop.permute.xlu0 %3736
        %3738 = vrot.lane.b32.xlu0 %v3271, 96
        %v3739 = vpop.permute.xlu0 %3738
        %3740 = vrot.lane.b32.xlu0 %v3273, 96
        %v3741 = vpop.permute.xlu0 %3740
        %3742 = vrot.lane.b32.xlu0 %v3275, 96
        %v3743 = vpop.permute.xlu0 %3742
        %3744 = vrot.lane.b32.xlu0 %v3277, 96
        %v3745 = vpop.permute.xlu0 %3744
        %v3746 = vsel %vm3033, %v3731, %v3739
        %v3747 = vsel %vm3033, %v3733, %v3741
        %v3748 = vsel %vm3033, %v3735, %v3743
        %v3749 = vsel %vm3033, %v3737, %v3745
        %v3750 = vsel %vm3033, %v3739, %v3731
        %v3751 = vsel %vm3033, %v3741, %v3733
        %v3752 = vsel %vm3033, %v3743, %v3735
        %v3753 = vsel %vm3033, %v3745, %v3737
        %v3754 = vld [vmem:[%s3042] ss:$8 sm:$0x3]
        %v3756 = vperm.slane %v3754, 0
        %v3757 = vperm.slane %v3754, 1
        %3760 = vset.pattern.permute.xlu0 18
        %3761 = vperm.xlu0 %3760, %v3278
        %v3762 = vpop.permute.xlu0 %3761
        %3764 = vset.pattern.permute.xlu0 18
        %3765 = vperm.xlu0 %3764, %v3279
        %v3766 = vpop.permute.xlu0 %3765
        %3768 = vset.pattern.permute.xlu0 18
        %3769 = vperm.xlu0 %3768, %v3280
        %v3770 = vpop.permute.xlu0 %3769
        %3772 = vset.pattern.permute.xlu0 18
        %3773 = vperm.xlu0 %3772, %v3281
        %v3774 = vpop.permute.xlu0 %3773
        %v3776 = vmul.f32 %v3756, %v3762
        %v3777 = vmul.f32 %v3757, %v3762
        %v3778 = vmul.f32 %v3756, %v3766
        %v3779 = vmul.f32 %v3757, %v3766
        %v3780 = vmul.f32 %v3756, %v3770
        %v3781 = vmul.f32 %v3757, %v3770
        %v3782 = vmul.f32 %v3756, %v3774
        %v3783 = vmul.f32 %v3757, %v3774
        %v3784 = vmul.f32 %v3746, %v3776
        %v3785 = vmul.f32 %v3750, %v3777
        %v3786 = vmul.f32 %v3747, %v3778
        %v3787 = vmul.f32 %v3751, %v3779
        %v3788 = vmul.f32 %v3748, %v3780
        %v3789 = vmul.f32 %v3752, %v3781
        %v3790 = vmul.f32 %v3749, %v3782
        %v3791 = vmul.f32 %v3753, %v3783
        %v3792 = vadd.f32 %v3722, %v3784
        %v3793 = vadd.f32 %v3723, %v3785
        %v3794 = vadd.f32 %v3724, %v3786
        %v3795 = vadd.f32 %v3725, %v3787
        %v3796 = vadd.f32 %v3726, %v3788
        %v3797 = vadd.f32 %v3727, %v3789
        %v3798 = vadd.f32 %v3728, %v3790
        %v3799 = vadd.f32 %v3729, %v3791
        %v3800 = vld [vmem:[%s3089] ss:$8 sm:$0x3]
        %v3802 = vperm.slane %v3800, 0
        %v3803 = vperm.slane %v3800, 1
        %3806 = vset.pattern.permute.xlu0 19
        %3807 = vperm.xlu0 %3806, %v3278
        %v3808 = vpop.permute.xlu0 %3807
        %3810 = vset.pattern.permute.xlu0 19
        %3811 = vperm.xlu0 %3810, %v3279
        %v3812 = vpop.permute.xlu0 %3811
        %3814 = vset.pattern.permute.xlu0 19
        %3815 = vperm.xlu0 %3814, %v3280
        %v3816 = vpop.permute.xlu0 %3815
        %3818 = vset.pattern.permute.xlu0 19
        %3819 = vperm.xlu0 %3818, %v3281
        %v3820 = vpop.permute.xlu0 %3819
        %v3822 = vmul.f32 %v3802, %v3808
        %v3823 = vmul.f32 %v3803, %v3808
        %v3824 = vmul.f32 %v3802, %v3812
        %v3825 = vmul.f32 %v3803, %v3812
        %v3826 = vmul.f32 %v3802, %v3816
        %v3827 = vmul.f32 %v3803, %v3816
        %v3828 = vmul.f32 %v3802, %v3820
        %v3829 = vmul.f32 %v3803, %v3820
        %v3830 = vmul.f32 %v3326, %v3822
        %v3831 = vmul.f32 %v3330, %v3823
        %v3832 = vmul.f32 %v3327, %v3824
        %v3833 = vmul.f32 %v3331, %v3825
        %v3834 = vmul.f32 %v3328, %v3826
        %v3835 = vmul.f32 %v3332, %v3827
        %v3836 = vmul.f32 %v3329, %v3828
        %v3837 = vmul.f32 %v3333, %v3829
        %v3838 = vadd.f32 %v3792, %v3830
        %v3839 = vadd.f32 %v3793, %v3831
        %v3840 = vadd.f32 %v3794, %v3832
        %v3841 = vadd.f32 %v3795, %v3833
        %v3842 = vadd.f32 %v3796, %v3834
        %v3843 = vadd.f32 %v3797, %v3835
        %v3844 = vadd.f32 %v3798, %v3836
        %v3845 = vadd.f32 %v3799, %v3837
        %v3846 = vld [vmem:[%s3136] ss:$8 sm:$0x3]
        %v3848 = vperm.slane %v3846, 0
        %v3849 = vperm.slane %v3846, 1
        %3852 = vset.pattern.permute.xlu0 20
        %3853 = vperm.xlu0 %3852, %v3278
        %v3854 = vpop.permute.xlu0 %3853
        %3856 = vset.pattern.permute.xlu0 20
        %3857 = vperm.xlu0 %3856, %v3279
        %v3858 = vpop.permute.xlu0 %3857
        %3860 = vset.pattern.permute.xlu0 20
        %3861 = vperm.xlu0 %3860, %v3280
        %v3862 = vpop.permute.xlu0 %3861
        %3864 = vset.pattern.permute.xlu0 20
        %3865 = vperm.xlu0 %3864, %v3281
        %v3866 = vpop.permute.xlu0 %3865
        %v3868 = vmul.f32 %v3848, %v3854
        %v3869 = vmul.f32 %v3849, %v3854
        %v3870 = vmul.f32 %v3848, %v3858
        %v3871 = vmul.f32 %v3849, %v3858
        %v3872 = vmul.f32 %v3848, %v3862
        %v3873 = vmul.f32 %v3849, %v3862
        %v3874 = vmul.f32 %v3848, %v3866
        %v3875 = vmul.f32 %v3849, %v3866
        %v3876 = vmul.f32 %v3396, %v3868
        %v3877 = vmul.f32 %v3400, %v3869
        %v3878 = vmul.f32 %v3397, %v3870
        %v3879 = vmul.f32 %v3401, %v3871
        %v3880 = vmul.f32 %v3398, %v3872
        %v3881 = vmul.f32 %v3402, %v3873
        %v3882 = vmul.f32 %v3399, %v3874
        %v3883 = vmul.f32 %v3403, %v3875
        %v3884 = vadd.f32 %v3838, %v3876
        %v3885 = vadd.f32 %v3839, %v3877
        %v3886 = vadd.f32 %v3840, %v3878
        %v3887 = vadd.f32 %v3841, %v3879
        %v3888 = vadd.f32 %v3842, %v3880
        %v3889 = vadd.f32 %v3843, %v3881
        %v3890 = vadd.f32 %v3844, %v3882
        %v3891 = vadd.f32 %v3845, %v3883
        %v3892 = vld [vmem:[%s3183] ss:$8 sm:$0x3]
        %v3894 = vperm.slane %v3892, 0
        %v3895 = vperm.slane %v3892, 1
        %3898 = vset.pattern.permute.xlu0 21
        %3899 = vperm.xlu0 %3898, %v3278
        %v3900 = vpop.permute.xlu0 %3899
        %3902 = vset.pattern.permute.xlu0 21
        %3903 = vperm.xlu0 %3902, %v3279
        %v3904 = vpop.permute.xlu0 %3903
        %3906 = vset.pattern.permute.xlu0 21
        %3907 = vperm.xlu0 %3906, %v3280
        %v3908 = vpop.permute.xlu0 %3907
        %3910 = vset.pattern.permute.xlu0 21
        %3911 = vperm.xlu0 %3910, %v3281
        %v3912 = vpop.permute.xlu0 %3911
        %v3914 = vmul.f32 %v3894, %v3900
        %v3915 = vmul.f32 %v3895, %v3900
        %v3916 = vmul.f32 %v3894, %v3904
        %v3917 = vmul.f32 %v3895, %v3904
        %v3918 = vmul.f32 %v3894, %v3908
        %v3919 = vmul.f32 %v3895, %v3908
        %v3920 = vmul.f32 %v3894, %v3912
        %v3921 = vmul.f32 %v3895, %v3912
        %v3922 = vmul.f32 %v3466, %v3914
        %v3923 = vmul.f32 %v3470, %v3915
        %v3924 = vmul.f32 %v3467, %v3916
        %v3925 = vmul.f32 %v3471, %v3917
        %v3926 = vmul.f32 %v3468, %v3918
        %v3927 = vmul.f32 %v3472, %v3919
        %v3928 = vmul.f32 %v3469, %v3920
        %v3929 = vmul.f32 %v3473, %v3921
        %v3930 = vadd.f32 %v3884, %v3922
        %v3931 = vadd.f32 %v3885, %v3923
        %v3932 = vadd.f32 %v3886, %v3924
        %v3933 = vadd.f32 %v3887, %v3925
        %v3934 = vadd.f32 %v3888, %v3926
        %v3935 = vadd.f32 %v3889, %v3927
        %v3936 = vadd.f32 %v3890, %v3928
        %v3937 = vadd.f32 %v3891, %v3929
        %v3938 = vld [vmem:[%s2502] sm:$0xff]
        %v3939 = vld [vmem:[%s2502 + $0x8] sm:$0xff]
        %v3940 = vld [vmem:[%s2502 + $0x10] sm:$0xff]
        %v3941 = vld [vmem:[%s2502 + $0x18] sm:$0xff]
        %3943 = vset.pattern.permute.xlu0 2
        %3944 = vperm.xlu0 %3943, %v3938
        %v3945 = vpop.permute.xlu0 %3944
        %3948 = vset.pattern.permute.xlu0 2
        %3949 = vperm.xlu0 %3948, %v3939
        %v3950 = vpop.permute.xlu0 %3949
        %3953 = vset.pattern.permute.xlu0 2
        %3954 = vperm.xlu0 %3953, %v3940
        %v3955 = vpop.permute.xlu0 %3954
        %3958 = vset.pattern.permute.xlu0 2
        %3959 = vperm.xlu0 %3958, %v3941
        %v3960 = vpop.permute.xlu0 %3959
        %v3962 = vadd.f32 %v3930, %v3945
        %v3963 = vadd.f32 %v3931, %v3945
        %v3964 = vadd.f32 %v3932, %v3950
        %v3965 = vadd.f32 %v3933, %v3950
        %v3966 = vadd.f32 %v3934, %v3955
        %v3967 = vadd.f32 %v3935, %v3955
        %v3968 = vadd.f32 %v3936, %v3960
        %v3969 = vadd.f32 %v3937, %v3960
        %3970 = vst [vmem:[%s1760] sm:$0xff] %v3962
        %3971 = vst [vmem:[%s1760 + $0x8] sm:$0xff] %v3963
        %3972 = vst [vmem:[%s1760 + $0x10] sm:$0xff] %v3964
        %3973 = vst [vmem:[%s1760 + $0x18] sm:$0xff] %v3965
        %3974 = vst [vmem:[%s1760 + $0x20] sm:$0xff] %v3966
        %3975 = vst [vmem:[%s1760 + $0x28] sm:$0xff] %v3967
        %3976 = vst [vmem:[%s1760 + $0x30] sm:$0xff] %v3968
        %3977 = vst [vmem:[%s1760 + $0x38] sm:$0xff] %v3969
        %v3978 = vld [vmem:[#allocation9] sm:$0xf]
        %v3979 = vld [vmem:[#allocation9 + $0x4] sm:$0xf]
        %v3980 = vld [vmem:[#allocation9 + $0x8] sm:$0xf]
        %v3981 = vld [vmem:[#allocation9 + $0xc] sm:$0xf]
        %v3982 = vld [vmem:[#allocation9 + $0x10] sm:$0xf]
        %v3983 = vld [vmem:[#allocation9 + $0x14] sm:$0xf]
        %v3984 = vld [vmem:[#allocation9 + $0x18] sm:$0xf]
        %v3985 = vld [vmem:[#allocation9 + $0x1c] sm:$0xf]
        %v3986 = vld [vmem:[#allocation2] sm:$0xff]
        %v3987 = vld [vmem:[#allocation2 + $0x8] sm:$0xff]
        %v3988 = vld [vmem:[#allocation2 + $0x10] sm:$0xff]
        %v3989 = vld [vmem:[#allocation2 + $0x18] sm:$0xff]
        %v3990 = vld [vmem:[#allocation2 + $0x20] sm:$0xff]
        %v3991 = vld [vmem:[#allocation2 + $0x28] sm:$0xff]
        %v3992 = vld [vmem:[#allocation2 + $0x30] sm:$0xff]
        %v3993 = vld [vmem:[#allocation2 + $0x38] sm:$0xff]
        %v3994 = vld [vmem:[#allocation2 + $0x40] sm:$0xff]
        %v3995 = vld [vmem:[#allocation2 + $0x48] sm:$0xff]
        %v3996 = vld [vmem:[#allocation2 + $0x50] sm:$0xff]
        %v3997 = vld [vmem:[#allocation2 + $0x58] sm:$0xff]
        %v3998 = vld [vmem:[#allocation2 + $0x60] sm:$0xff]
        %v3999 = vld [vmem:[#allocation2 + $0x68] sm:$0xff]
        %v4000 = vld [vmem:[#allocation2 + $0x70] sm:$0xff]
        %v4001 = vld [vmem:[#allocation2 + $0x78] sm:$0xff]
        %v4002 = vpack.c.bf16 %v3988, %v3986
        %v4003 = vpack.c.bf16 %v3989, %v3987
        %v4004 = vpack.c.bf16 %v3992, %v3990
        %v4005 = vpack.c.bf16 %v3993, %v3991
        %v4006 = vpack.c.bf16 %v3996, %v3994
        %v4007 = vpack.c.bf16 %v3997, %v3995
        %v4008 = vpack.c.bf16 %v4000, %v3998
        %v4009 = vpack.c.bf16 %v4001, %v3999
        %v4010 = vld [vmem:[%s6] sm:$0xff]
        %v4011 = vld [vmem:[%s6 + $0x8] sm:$0xff]
        %v4012 = vld [vmem:[%s6 + $0x10] sm:$0xff]
        %v4013 = vld [vmem:[%s6 + $0x18] sm:$0xff]
        %v4014 = vld [vmem:[%s6 + $0x20] sm:$0xff]
        %v4015 = vld [vmem:[%s6 + $0x28] sm:$0xff]
        %v4016 = vld [vmem:[%s6 + $0x30] sm:$0xff]
        %v4017 = vld [vmem:[%s6 + $0x38] sm:$0xff]
        %4019 = vset.pattern.permute.xlu0 3
        %4020 = vperm.xlu0 %4019, %v4010
        %v4021 = vpop.permute.xlu0 %4020
        %4024 = vset.pattern.permute.xlu0 3
        %4025 = vperm.xlu0 %4024, %v4011
        %v4026 = vpop.permute.xlu0 %4025
        %4029 = vset.pattern.permute.xlu0 3
        %4030 = vperm.xlu0 %4029, %v4012
        %v4031 = vpop.permute.xlu0 %4030
        %4034 = vset.pattern.permute.xlu0 3
        %4035 = vperm.xlu0 %4034, %v4013
        %v4036 = vpop.permute.xlu0 %4035
        %4039 = vset.pattern.permute.xlu0 3
        %4040 = vperm.xlu0 %4039, %v4014
        %v4041 = vpop.permute.xlu0 %4040
        %4044 = vset.pattern.permute.xlu0 3
        %4045 = vperm.xlu0 %4044, %v4015
        %v4046 = vpop.permute.xlu0 %4045
        %4049 = vset.pattern.permute.xlu0 3
        %4050 = vperm.xlu0 %4049, %v4016
        %v4051 = vpop.permute.xlu0 %4050
        %4054 = vset.pattern.permute.xlu0 3
        %4055 = vperm.xlu0 %4054, %v4017
        %v4056 = vpop.permute.xlu0 %4055
        %v4066 = vunpack.c.l.b16 %v3978
        %v4067 = vunpack.c.l.b16 %v3979
        %v4068 = vunpack.c.l.b16 %v3980
        %v4069 = vunpack.c.l.b16 %v3981
        %v4070 = vunpack.c.l.b16 %v3982
        %v4071 = vunpack.c.l.b16 %v3983
        %v4072 = vunpack.c.l.b16 %v3984
        %v4073 = vunpack.c.l.b16 %v3985
        %v4074 = vpack.c.b16 %v4067, %v4066
        %v4075 = vpack.c.b16 %v4069, %v4068
        %v4076 = vpack.c.b16 %v4071, %v4070
        %v4077 = vpack.c.b16 %v4073, %v4072
        %v4079 = vsel %vm785, %v4074, 0
        %v4082 = vsel %vm785, %v4075, 0
        %v4085 = vsel %vm785, %v4076, 0
        %v4088 = vsel %vm785, %v4077, 0
        %4090 = vmatpush.bf16.msra.mxu0 0
        %4091 = vmatpush.bf16.msra.mxu0 0
        %4092 = vmatpush.bf16.msra.mxu0 0
        %4093 = vmatpush.bf16.msra.mxu0 0
        %4094 = vmatpush.bf16.msra.mxu0 %v4008
        %4095 = vmatpush.bf16.msra.mxu0 %v4006
        %4096 = vmatpush.bf16.msra.mxu0 %v4004
        %4097 = vmatpush.bf16.msra.mxu0 %v4002
        %4098 = vmatmul.bf16.gmra.mxu0 %v4079
        %v4099 = vpop.f32.mrf.mxu0
        %v4100 = vadd.f32 %v4021, %v4099
        %v4101 = vpop.f32.mrf.mxu0
        %v4102 = vadd.f32 %v4026, %v4101
        %4103 = vmatmul.bf16.gmra.mxu0 %v4082
        %v4104 = vpop.f32.mrf.mxu0
        %v4105 = vadd.f32 %v4031, %v4104
        %v4106 = vpop.f32.mrf.mxu0
        %v4107 = vadd.f32 %v4036, %v4106
        %4108 = vmatmul.bf16.gmra.mxu0 %v4085
        %v4109 = vpop.f32.mrf.mxu0
        %v4110 = vadd.f32 %v4041, %v4109
        %v4111 = vpop.f32.mrf.mxu0
        %v4112 = vadd.f32 %v4046, %v4111
        %4113 = vmatmul.bf16.gmra.mxu0 %v4088
        %v4114 = vpop.f32.mrf.mxu0
        %v4115 = vadd.f32 %v4051, %v4114
        %v4116 = vpop.f32.mrf.mxu0
        %v4117 = vadd.f32 %v4056, %v4116
        %4118 = vdwg.mxu0
        %4119 = vmatpush.bf16.msra.mxu0 0
        %4120 = vmatpush.bf16.msra.mxu0 0
        %4121 = vmatpush.bf16.msra.mxu0 0
        %4122 = vmatpush.bf16.msra.mxu0 0
        %4123 = vmatpush.bf16.msra.mxu0 %v4009
        %4124 = vmatpush.bf16.msra.mxu0 %v4007
        %4125 = vmatpush.bf16.msra.mxu0 %v4005
        %4126 = vmatpush.bf16.msra.mxu0 %v4003
        %4127 = vmatmul.bf16.gmra.mxu0 %v4079
        %v4128 = vpop.f32.mrf.mxu0
        %v4129 = vadd.f32 %v4021, %v4128
        %v4130 = vpop.f32.mrf.mxu0
        %v4131 = vadd.f32 %v4026, %v4130
        %4132 = vmatmul.bf16.gmra.mxu0 %v4082
        %v4133 = vpop.f32.mrf.mxu0
        %v4134 = vadd.f32 %v4031, %v4133
        %v4135 = vpop.f32.mrf.mxu0
        %v4136 = vadd.f32 %v4036, %v4135
        %4137 = vmatmul.bf16.gmra.mxu0 %v4085
        %v4138 = vpop.f32.mrf.mxu0
        %v4139 = vadd.f32 %v4041, %v4138
        %v4140 = vpop.f32.mrf.mxu0
        %v4141 = vadd.f32 %v4046, %v4140
        %4142 = vmatmul.bf16.gmra.mxu0 %v4088
        %v4143 = vpop.f32.mrf.mxu0
        %v4144 = vadd.f32 %v4051, %v4143
        %v4145 = vpop.f32.mrf.mxu0
        %v4146 = vadd.f32 %v4056, %v4145
        %4147 = vdwg.mxu0
        %v4148 = vmul.f32 %v4100, 0.5
        %v4149 = vmul.f32 %v4129, 0.5
        %v4150 = vmul.f32 %v4102, 0.5
        %v4151 = vmul.f32 %v4131, 0.5
        %v4152 = vmul.f32 %v4105, 0.5
        %v4153 = vmul.f32 %v4134, 0.5
        %v4154 = vmul.f32 %v4107, 0.5
        %v4155 = vmul.f32 %v4136, 0.5
        %v4156 = vmul.f32 %v4110, 0.5
        %v4157 = vmul.f32 %v4139, 0.5
        %v4158 = vmul.f32 %v4112, 0.5
        %v4159 = vmul.f32 %v4141, 0.5
        %v4160 = vmul.f32 %v4115, 0.5
        %v4161 = vmul.f32 %v4144, 0.5
        %v4162 = vmul.f32 %v4117, 0.5
        %v4163 = vmul.f32 %v4146, 0.5
        %v4164 = vtanh.pop %v4148
        %v4165 = vtanh.pop %v4149
        %v4166 = vtanh.pop %v4150
        %v4167 = vtanh.pop %v4151
        %v4168 = vtanh.pop %v4152
        %v4169 = vtanh.pop %v4153
        %v4170 = vtanh.pop %v4154
        %v4171 = vtanh.pop %v4155
        %v4172 = vtanh.pop %v4156
        %v4173 = vtanh.pop %v4157
        %v4174 = vtanh.pop %v4158
        %v4175 = vtanh.pop %v4159
        %v4176 = vtanh.pop %v4160
        %v4177 = vtanh.pop %v4161
        %v4178 = vtanh.pop %v4162
        %v4179 = vtanh.pop %v4163
        %v4180 = vadd.f32 %v4164, 1.0
        %v4181 = vadd.f32 %v4165, 1.0
        %v4182 = vadd.f32 %v4166, 1.0
        %v4183 = vadd.f32 %v4167, 1.0
        %v4184 = vadd.f32 %v4168, 1.0
        %v4185 = vadd.f32 %v4169, 1.0
        %v4186 = vadd.f32 %v4170, 1.0
        %v4187 = vadd.f32 %v4171, 1.0
        %v4188 = vadd.f32 %v4172, 1.0
        %v4189 = vadd.f32 %v4173, 1.0
        %v4190 = vadd.f32 %v4174, 1.0
        %v4191 = vadd.f32 %v4175, 1.0
        %v4192 = vadd.f32 %v4176, 1.0
        %v4193 = vadd.f32 %v4177, 1.0
        %v4194 = vadd.f32 %v4178, 1.0
        %v4195 = vadd.f32 %v4179, 1.0
        %v4196 = vmul.f32 %v4180, 0.5
        %v4197 = vmul.f32 %v4181, 0.5
        %v4198 = vmul.f32 %v4182, 0.5
        %v4199 = vmul.f32 %v4183, 0.5
        %v4200 = vmul.f32 %v4184, 0.5
        %v4201 = vmul.f32 %v4185, 0.5
        %v4202 = vmul.f32 %v4186, 0.5
        %v4203 = vmul.f32 %v4187, 0.5
        %v4204 = vmul.f32 %v4188, 0.5
        %v4205 = vmul.f32 %v4189, 0.5
        %v4206 = vmul.f32 %v4190, 0.5
        %v4207 = vmul.f32 %v4191, 0.5
        %v4208 = vmul.f32 %v4192, 0.5
        %v4209 = vmul.f32 %v4193, 0.5
        %v4210 = vmul.f32 %v4194, 0.5
        %v4211 = vmul.f32 %v4195, 0.5
        %v4212 = vmul.f32 %v4100, %v4196
        %v4213 = vmul.f32 %v4129, %v4197
        %v4214 = vmul.f32 %v4102, %v4198
        %v4215 = vmul.f32 %v4131, %v4199
        %v4216 = vmul.f32 %v4105, %v4200
        %v4217 = vmul.f32 %v4134, %v4201
        %v4218 = vmul.f32 %v4107, %v4202
        %v4219 = vmul.f32 %v4136, %v4203
        %v4220 = vmul.f32 %v4110, %v4204
        %v4221 = vmul.f32 %v4139, %v4205
        %v4222 = vmul.f32 %v4112, %v4206
        %v4223 = vmul.f32 %v4141, %v4207
        %v4224 = vmul.f32 %v4115, %v4208
        %v4225 = vmul.f32 %v4144, %v4209
        %v4226 = vmul.f32 %v4117, %v4210
        %v4227 = vmul.f32 %v4146, %v4211
        %v4228 = vmul.f32 %v4212, 0.5
        %v4229 = vmul.f32 %v4213, 0.5
        %v4230 = vmul.f32 %v4214, 0.5
        %v4231 = vmul.f32 %v4215, 0.5
        %v4232 = vmul.f32 %v4216, 0.5
        %v4233 = vmul.f32 %v4217, 0.5
        %v4234 = vmul.f32 %v4218, 0.5
        %v4235 = vmul.f32 %v4219, 0.5
        %v4236 = vmul.f32 %v4220, 0.5
        %v4237 = vmul.f32 %v4221, 0.5
        %v4238 = vmul.f32 %v4222, 0.5
        %v4239 = vmul.f32 %v4223, 0.5
        %v4240 = vmul.f32 %v4224, 0.5
        %v4241 = vmul.f32 %v4225, 0.5
        %v4242 = vmul.f32 %v4226, 0.5
        %v4243 = vmul.f32 %v4227, 0.5
        %v4244 = vtanh.pop %v4228
        %v4245 = vtanh.pop %v4229
        %v4246 = vtanh.pop %v4230
        %v4247 = vtanh.pop %v4231
        %v4248 = vtanh.pop %v4232
        %v4249 = vtanh.pop %v4233
        %v4250 = vtanh.pop %v4234
        %v4251 = vtanh.pop %v4235
        %v4252 = vtanh.pop %v4236
        %v4253 = vtanh.pop %v4237
        %v4254 = vtanh.pop %v4238
        %v4255 = vtanh.pop %v4239
        %v4256 = vtanh.pop %v4240
        %v4257 = vtanh.pop %v4241
        %v4258 = vtanh.pop %v4242
        %v4259 = vtanh.pop %v4243
        %v4260 = vadd.f32 %v4244, 1.0
        %v4261 = vadd.f32 %v4245, 1.0
        %v4262 = vadd.f32 %v4246, 1.0
        %v4263 = vadd.f32 %v4247, 1.0
        %v4264 = vadd.f32 %v4248, 1.0
        %v4265 = vadd.f32 %v4249, 1.0
        %v4266 = vadd.f32 %v4250, 1.0
        %v4267 = vadd.f32 %v4251, 1.0
        %v4268 = vadd.f32 %v4252, 1.0
        %v4269 = vadd.f32 %v4253, 1.0
        %v4270 = vadd.f32 %v4254, 1.0
        %v4271 = vadd.f32 %v4255, 1.0
        %v4272 = vadd.f32 %v4256, 1.0
        %v4273 = vadd.f32 %v4257, 1.0
        %v4274 = vadd.f32 %v4258, 1.0
        %v4275 = vadd.f32 %v4259, 1.0
        %v4276 = vmul.f32 %v4260, 0.5
        %v4277 = vmul.f32 %v4261, 0.5
        %v4278 = vmul.f32 %v4262, 0.5
        %v4279 = vmul.f32 %v4263, 0.5
        %v4280 = vmul.f32 %v4264, 0.5
        %v4281 = vmul.f32 %v4265, 0.5
        %v4282 = vmul.f32 %v4266, 0.5
        %v4283 = vmul.f32 %v4267, 0.5
        %v4284 = vmul.f32 %v4268, 0.5
        %v4285 = vmul.f32 %v4269, 0.5
        %v4286 = vmul.f32 %v4270, 0.5
        %v4287 = vmul.f32 %v4271, 0.5
        %v4288 = vmul.f32 %v4272, 0.5
        %v4289 = vmul.f32 %v4273, 0.5
        %v4290 = vmul.f32 %v4274, 0.5
        %v4291 = vmul.f32 %v4275, 0.5
        %4292 = vst [vmem:[%s338] sm:$0xff] %v4276
        %4293 = vst [vmem:[%s338 + $0x8] sm:$0xff] %v4277
        %4294 = vst [vmem:[%s338 + $0x10] sm:$0xff] %v4278
        %4295 = vst [vmem:[%s338 + $0x18] sm:$0xff] %v4279
        %4296 = vst [vmem:[%s338 + $0x20] sm:$0xff] %v4280
        %4297 = vst [vmem:[%s338 + $0x28] sm:$0xff] %v4281
        %4298 = vst [vmem:[%s338 + $0x30] sm:$0xff] %v4282
        %4299 = vst [vmem:[%s338 + $0x38] sm:$0xff] %v4283
        %4300 = vst [vmem:[%s338 + $0x40] sm:$0xff] %v4284
        %4301 = vst [vmem:[%s338 + $0x48] sm:$0xff] %v4285
        %4302 = vst [vmem:[%s338 + $0x50] sm:$0xff] %v4286
        %4303 = vst [vmem:[%s338 + $0x58] sm:$0xff] %v4287
        %4304 = vst [vmem:[%s338 + $0x60] sm:$0xff] %v4288
        %4305 = vst [vmem:[%s338 + $0x68] sm:$0xff] %v4289
        %4306 = vst [vmem:[%s338 + $0x70] sm:$0xff] %v4290
        %4307 = vst [vmem:[%s338 + $0x78] sm:$0xff] %v4291
        %s4308 = sand.u32 %s184, 1
        %s4309 = scalar_lea.sflag [#allocation6], %s4308
        %s4310 = sand.u32 %s184, 1
        %s4311 = smul.addr %s4310, 128
        %s4312 = scalar_lea.vmem [#allocation12], %s4311
        // Predicated region
        $region65: #{tpu_custom_call.1} parent=47 // pred_check
          %p4313 = pneg %p194
        $region66: #{tpu_custom_call.1} parent=47 // pred_check_branch
          %4315 = sbr.rel (%p4313) target = $region68
        $region67: #{tpu_custom_call.1} parent=47 // pred_region
          %4317 = vsyncadd %s4309, 0
          %s4318 = smul.addr %s24, 16
          %s4319 = smul.addr %s4318, 8
          %s4320 = scalar_lea.hbm %s7, %s4319
          %s4321 = sshll.u32 %s4312, 4
          %s4322 = int_to_ptr.vmem [resolvable:$true] %s4321
          %s4323 = sshll.u32 %s4320, 4
          %s4324 = int_to_ptr.hbm [resolvable:$true] %s4323
          %4329 = dma.vmem_to_hbm [thread:$0]  %s4322, 2048, %s4324, %s4309, 256, 256, 16
        $region68: #{tpu_custom_call.1} parent=47 // pred_fallthru
          _
      $region48: #{tpu_custom_call.1} parent=5 // pred_fallthru
        _
      %p4330 = scmp.le.s32.totalorder 2, %s19
      // Predicated region
      $region69: #{tpu_custom_call.1} parent=5 // pred_check
        %p4331 = pneg %p4330
      $region70: #{tpu_custom_call.1} parent=5 // pred_check_branch
        %4333 = sbr.rel (%p4331) target = $region72
      $region71: #{tpu_custom_call.1} parent=5 // pred_region
        %s4334 = ssub.s32 %s19, 2
        // Predicated region
        $region73: #{tpu_custom_call.1} parent=71 // pred_check
          %p4335 = pneg %p200
        $region74: #{tpu_custom_call.1} parent=71 // pred_check_branch
          %4337 = sbr.rel (%p4335) target = $region76
        $region75: #{tpu_custom_call.1} parent=71 // pred_region
          %s4338 = sand.u32 %s185, 1
          %s4339 = scalar_lea.sflag [#allocation6], %s4338
          %s4340 = sand.u32 %s185, 1
          %s4341 = smul.addr %s4340, 128
          %s4342 = scalar_lea.vmem [#allocation12], %s4341
          %4344 = dma.done %s4339, 2048
        $region76: #{tpu_custom_call.1} parent=71 // pred_fallthru
          _
      $region72: #{tpu_custom_call.1} parent=5 // pred_fallthru
        _
    $region6: #{tpu_custom_call.1} parent=1 // loop_footer
      %s23 = sadd.s32 1, %s19
    $region7: #{tpu_custom_call.1} parent=1 // loop_footer_branch
      %18 = sbr.rel target = $region3
    $region8: #{tpu_custom_call.1} parent=1 // loop_exit
      _
    %4345 = vsyncpa [#allocation5], 1
    %s4346 = scalar_lea.sflag [#allocation5], 1
    %4347 = vsyncpa %s4346, 1
    %4348 = vsyncpa [#allocation8], 1
    %4349 = vsyncpa [#allocation11], 1
    %4350 = vsyncpa [#allocation6], 1
    %s4351 = scalar_lea.sflag [#allocation6], 1
    %4352 = vsyncpa %s4351, 1

</llo_original>
